<compile_context>
chip_gen: v6e
topology: v6e:2x2x1
jax: 0.10.0
libtpu: 0.0.40
codegen_flags: <defaults>
</compile_context>

<pallas_src>
import math

import jax
import jax.numpy as jnp
from jax import lax
from jax.experimental import pallas as pl
from jax.experimental.pallas import tpu as pltpu


def _round_up(x, m):
    return ((x + m - 1) // m) * m


def _gru_kernel(emb_ref, wih_ref, whh_ref, bgi_ref, bhn_ref, h0_ref,
                out_ref, hout_ref,
                x_buf, gi_buf):
    seq_len, Hp = emb_ref.shape
    n_layers = h0_ref.shape[0]

    # Full unroll only for short sequences; bounded unroll keeps LLO visibility
    # without exploding code size / vreg pressure for long sequences.
    unroll_amt = True if seq_len <= 16 else 8

    for l in range(n_layers):  # static, small
        # ---- per-layer, loop-invariant loads (hoisted off the time loop) ----
        w_i = wih_ref[l]                          # (Hp, 3Hp) bf16, fused [r|z|n]
        w_h = whh_ref[l]                          # (Hp, 3Hp) bf16, fused [r|z|n]
        b_gi = bgi_ref[pl.ds(l, 1), :]            # (1, 3Hp) f32 (r/z hidden bias folded)
        b_hn = bhn_ref[pl.ds(l, 1), :]            # (1, Hp)  f32 (stays per-step, r-gated)

        # ---- batched input projection for ALL timesteps (off critical path) ----
        if l == 0:
            x_all = emb_ref[...]                  # (T, Hp) bf16, no copy/round-trip
        else:
            x_all = x_buf[...].astype(jnp.bfloat16)
        gi_buf[...] = jnp.dot(x_all, w_i,
                              preferred_element_type=jnp.float32) + b_gi

        is_last = (l == n_layers - 1)

        # ---- sequential recurrence: ONE h @ W_h slab matmul per step ----
        def step(t, h):
            gh = jnp.dot(h.astype(jnp.bfloat16), w_h,
                         preferred_element_type=jnp.float32)        # (1, 3Hp)
            gi = gi_buf[pl.ds(t, 1), :]                              # (1, 3Hp)
            r = jax.nn.sigmoid(gi[:, 0:Hp] + gh[:, 0:Hp])
            z = jax.nn.sigmoid(gi[:, Hp:2 * Hp] + gh[:, Hp:2 * Hp])
            n = jnp.tanh(gi[:, 2 * Hp:3 * Hp]
                         + r * (gh[:, 2 * Hp:3 * Hp] + b_hn))
            h_new = (1.0 - z) * n + z * h                            # (1, Hp) f32
            if is_last:
                out_ref[pl.ds(t, 1), :] = h_new                      # direct output
            else:
                x_buf[pl.ds(t, 1), :] = h_new                        # next layer's input
            return h_new

        h0_l = h0_ref[pl.ds(l, 1), :]                                # (1, Hp) f32
        h_last = lax.fori_loop(0, seq_len, step, h0_l, unroll=unroll_amt)
        hout_ref[pl.ds(l, 1), :] = h_last


def _vmem_limit_bytes(arg_bytes, scratch_bytes, out_bytes):
    try:
        cap = int(pltpu.get_tpu_info().vmem_capacity_bytes)
    except Exception:
        cap = 64 * 1024 * 1024
    # Leave headroom below physical capacity for the compiler's own scratch /
    # double-buffering (matters on v7x's 64 MiB).
    ceiling = max(16 * 1024 * 1024, cap - 8 * 1024 * 1024)
    need = 2 * (arg_bytes + scratch_bytes + out_bytes)
    return int(min(ceiling, max(8 * 1024 * 1024, need)))


def pack_params(params, hidden_size, n_layers):
    """Repack PyTorch-layout GRU params into fused, lane-padded kernel slabs."""
    H = hidden_size
    Hp = _round_up(max(H, 128), 128)

    w_i_l, w_h_l, b_gi_l, b_hn_l = [], [], [], []
    for l in range(n_layers):
        w_ih = params[f"w_ih_l{l}"]               # (3H, H) gates [r, z, n]
        w_hh = params[f"w_hh_l{l}"]               # (3H, H)
        b_ih = params[f"b_ih_l{l}"]               # (3H,)
        b_hh = params[f"b_hh_l{l}"]               # (3H,)

        wi = jnp.zeros((Hp, 3 * Hp), jnp.float32)
        wh = jnp.zeros((Hp, 3 * Hp), jnp.float32)
        bgi = jnp.zeros((3 * Hp,), jnp.float32)
        for g in range(3):
            wi = wi.at[:H, g * Hp:g * Hp + H].set(w_ih[g * H:(g + 1) * H, :].T)
            wh = wh.at[:H, g * Hp:g * Hp + H].set(w_hh[g * H:(g + 1) * H, :].T)
            bg = b_ih[g * H:(g + 1) * H]
            if g < 2:                              # fold hidden bias for r, z
                bg = bg + b_hh[g * H:(g + 1) * H]
            bgi = bgi.at[g * Hp:g * Hp + H].set(bg)
        bhn = jnp.zeros((Hp,), jnp.float32).at[:H].set(b_hh[2 * H:3 * H])

        w_i_l.append(wi); w_h_l.append(wh); b_gi_l.append(bgi); b_hn_l.append(bhn)

    packed = {
        "embedding": params["embedding"],                       # (vocab, H) f32
        "w_ih": jnp.stack(w_i_l).astype(jnp.bfloat16),           # (L, Hp, 3Hp)
        "w_hh": jnp.stack(w_h_l).astype(jnp.bfloat16),           # (L, Hp, 3Hp)
        "b_gi": jnp.stack(b_gi_l),                               # (L, 3Hp) f32
        "b_hn": jnp.stack(b_hn_l),                               # (L, Hp)  f32
    }
    return packed, Hp


def encoder_rnn_forward(word_inputs, hidden, packed):
    """word_inputs: (seq_len,) int32; hidden: (n_layers, 1, H).

    Returns (output (seq_len, 1, H), hidden (n_layers, 1, H)) like PyTorch.
    """
    emb_table = packed["embedding"]
    w_ih, w_hh = packed["w_ih"], packed["w_hh"]
    b_gi, b_hn = packed["b_gi"], packed["b_hn"]

    seq_len = word_inputs.shape[0]
    n_layers, _, H = hidden.shape
    Hp = w_ih.shape[1]

    # Embedding lookup (row gather) stays as JAX glue; the GRU recurrence is the
    # Pallas hot path. Pad the embedded tokens / h0 to lane-dense Hp (zeros in
    # padded lanes stay exactly zero through the recurrence).
    embedded = jnp.take(emb_table, word_inputs, axis=0)          # (T, H) f32
    emb_p = jnp.zeros((seq_len, Hp), jnp.bfloat16)
    emb_p = emb_p.at[:, :H].set(embedded.astype(jnp.bfloat16))
    h0 = jnp.zeros((n_layers, Hp), jnp.float32)
    h0 = h0.at[:, :H].set(hidden.reshape(n_layers, H).astype(jnp.float32))

    vmem = pl.BlockSpec(memory_space=pltpu.MemorySpace.VMEM)

    arg_bytes = sum(int(a.size) * jnp.dtype(a.dtype).itemsize
                    for a in (emb_p, w_ih, w_hh, b_gi, b_hn, h0))
    scratch_bytes = (seq_len * Hp + seq_len * 3 * Hp) * 4
    out_bytes = (seq_len * Hp + n_layers * Hp) * 4
    vmem_limit = _vmem_limit_bytes(arg_bytes, scratch_bytes, out_bytes)

    out, h_out = pl.pallas_call(
        _gru_kernel,
        out_shape=(
            jax.ShapeDtypeStruct((seq_len, Hp), jnp.float32),
            jax.ShapeDtypeStruct((n_layers, Hp), jnp.float32),
        ),
        in_specs=[vmem] * 6,
        out_specs=(vmem, vmem),
        scratch_shapes=[
            pltpu.VMEM((seq_len, Hp), jnp.float32),      # inter-layer activations
            pltpu.VMEM((seq_len, 3 * Hp), jnp.float32),  # fused input projections
        ],
        compiler_params=pltpu.CompilerParams(vmem_limit_bytes=vmem_limit),
    )(emb_p, w_ih, w_hh, b_gi, b_hn, h0)

    return (out[:, :H].reshape(seq_len, 1, H),
            h_out[:, :H].reshape(n_layers, 1, H))


def init_params(key, input_size, hidden_size, n_layers):
    """Deterministic synthetic params in PyTorch nn.GRU layout (gates [r,z,n])."""
    H = hidden_size
    keys = jax.random.split(key, 1 + 4 * n_layers)
    bound = 1.0 / math.sqrt(H)
    params = {"embedding": jax.random.normal(keys[0], (input_size, H), jnp.float32)}
    k = 1
    for l in range(n_layers):
        params[f"w_ih_l{l}"] = jax.random.uniform(keys[k], (3 * H, H), jnp.float32,
                                                  -bound, bound); k += 1
        params[f"w_hh_l{l}"] = jax.random.uniform(keys[k], (3 * H, H), jnp.float32,
                                                  -bound, bound); k += 1
        params[f"b_ih_l{l}"] = jax.random.uniform(keys[k], (3 * H,), jnp.float32,
                                                  -bound, bound); k += 1
        params[f"b_hh_l{l}"] = jax.random.uniform(keys[k], (3 * H,), jnp.float32,
                                                  -bound, bound); k += 1
    return params


def _ref_forward(word_inputs, hidden, params, hidden_size, n_layers):
    """Pure-JAX f32 reference matching PyTorch GRU semantics."""
    H = hidden_size
    x = jnp.take(params["embedding"], word_inputs, axis=0)       # (T, H)
    h = hidden.reshape(n_layers, H)
    layer_in = x
    h_out = []
    for l in range(n_layers):
        w_ih, w_hh = params[f"w_ih_l{l}"], params[f"w_hh_l{l}"]
        b_ih, b_hh = params[f"b_ih_l{l}"], params[f"b_hh_l{l}"]
        hl = h[l]
        rows = []
        for t in range(x.shape[0]):
            gi = w_ih @ layer_in[t] + b_ih
            gh = w_hh @ hl + b_hh
            r = jax.nn.sigmoid(gi[:H] + gh[:H])
            z = jax.nn.sigmoid(gi[H:2 * H] + gh[H:2 * H])
            n = jnp.tanh(gi[2 * H:] + r * gh[2 * H:])
            hl = (1.0 - z) * n + z * hl
            rows.append(hl)
        layer_in = jnp.stack(rows)
        h_out.append(hl)
    return (layer_in.reshape(-1, 1, H), jnp.stack(h_out).reshape(n_layers, 1, H))


if __name__ == "__main__":
    input_size = 16     # vocab size
    hidden_size = 32
    n_layers = 2
    seq_len = 8

    key = jax.random.PRNGKey(0)
    k_params, k_tokens = jax.random.split(key)

    params = init_params(k_params, input_size, hidden_size, n_layers)
    packed, _ = pack_params(params, hidden_size, n_layers)

    word_inputs = jax.random.randint(k_tokens, (seq_len,), 0, input_size,
                                     dtype=jnp.int32)
    hidden0 = jnp.zeros((n_layers, 1, hidden_size), jnp.float32)  # init_hidden()

    output, hidden = encoder_rnn_forward(word_inputs, hidden0, packed)
    jax.block_until_ready((output, hidden))

    assert output.shape == (seq_len, 1, hidden_size)
    assert hidden.shape == (n_layers, 1, hidden_size)
    assert bool(jnp.all(jnp.isfinite(output))) and bool(jnp.all(jnp.isfinite(hidden)))

    # Loose-tolerance check vs. the f32 reference (kernel uses bf16 MXU operands).
    ref_out, ref_hid = _ref_forward(word_inputs, hidden0, params,
                                    hidden_size, n_layers)
    err = max(float(jnp.max(jnp.abs(output - ref_out))),
              float(jnp.max(jnp.abs(hidden - ref_hid))))
    assert err < 0.1, f"max abs error vs reference: {err}"

    print("KERNEL_OK")
</pallas_src>

<mosaic_0001>
module attributes {stable_mosaic.version = 11 : i64} {
  func.func @_gru_kernel(%arg0: memref<8x128xbf16, #tpu.memory_space<vmem>>, %arg1: memref<2x128x384xbf16, #tpu.memory_space<vmem>>, %arg2: memref<2x128x384xbf16, #tpu.memory_space<vmem>>, %arg3: memref<2x384xf32, #tpu.memory_space<vmem>>, %arg4: memref<2x128xf32, #tpu.memory_space<vmem>>, %arg5: memref<2x128xf32, #tpu.memory_space<vmem>>, %arg6: memref<8x128xf32, #tpu.memory_space<vmem>>, %arg7: memref<2x128xf32, #tpu.memory_space<vmem>>, %arg8: memref<8x128xf32, #tpu.memory_space<vmem>>, %arg9: memref<8x384xf32, #tpu.memory_space<vmem>>) attributes {dimension_semantics = [], scalar_prefetch = 0 : i64, scratch_operands = 2 : i64, tpu.core_type = #tpu.core_type<tc>} {
    %c0 = arith.constant 0 : index
    %c0_0 = arith.constant 0 : index
    %c0_1 = arith.constant 0 : index
    %0 = vector.load %arg1[%c0, %c0_0, %c0_1] : memref<2x128x384xbf16, #tpu.memory_space<vmem>>, vector<1x128x384xbf16>
    %1 = vector.shape_cast %0 : vector<1x128x384xbf16> to vector<128x384xbf16>
    %c0_2 = arith.constant 0 : index
    %c0_3 = arith.constant 0 : index
    %c0_4 = arith.constant 0 : index
    %2 = vector.load %arg2[%c0_2, %c0_3, %c0_4] : memref<2x128x384xbf16, #tpu.memory_space<vmem>>, vector<1x128x384xbf16>
    %3 = vector.shape_cast %2 : vector<1x128x384xbf16> to vector<128x384xbf16>
    %c0_5 = arith.constant 0 : index
    %c0_6 = arith.constant 0 : index
    %4 = vector.load %arg3[%c0_5, %c0_6] : memref<2x384xf32, #tpu.memory_space<vmem>>, vector<1x384xf32>
    %c0_7 = arith.constant 0 : index
    %c0_8 = arith.constant 0 : index
    %5 = vector.load %arg4[%c0_7, %c0_8] : memref<2x128xf32, #tpu.memory_space<vmem>>, vector<1x128xf32>
    %c0_9 = arith.constant 0 : index
    %c0_10 = arith.constant 0 : index
    %6 = vector.load %arg0[%c0_9, %c0_10] : memref<8x128xbf16, #tpu.memory_space<vmem>>, vector<8x128xbf16>
    %cst = arith.constant dense<0.000000e+00> : vector<8x384xf32>
    %7 = tpu.matmul %6, %1, %cst {dimension_numbers = #tpu.dot_dimension_numbers<[1], [0], [0], [1], [0, 0, 1, 1], [], []>} : vector<8x128xbf16>, vector<128x384xbf16>, vector<8x384xf32> -> vector<8x384xf32>
    %8 = vector.broadcast %4 : vector<1x384xf32> to vector<8x384xf32>
    %9 = arith.addf %7, %8 : vector<8x384xf32>
    %c0_11 = arith.constant 0 : index
    %c0_12 = arith.constant 0 : index
    %10 = vector.load %arg9[%c0_11, %c0_12] : memref<8x384xf32, #tpu.memory_space<vmem>>, vector<8x384xf32>
    tpu.vector_store %arg9[%c0_11, %c0_12], %9 {strides = array<i32>} : memref<8x384xf32, #tpu.memory_space<vmem>>, vector<8x384xf32>,
    %c0_13 = arith.constant 0 : index
    %c0_14 = arith.constant 0 : index
    %11 = vector.load %arg5[%c0_13, %c0_14] : memref<2x128xf32, #tpu.memory_space<vmem>>, vector<1x128xf32>
    %c0_i32 = arith.constant 0 : i32
    %12 = arith.truncf %11 : vector<1x128xf32> to vector<1x128xbf16>
    %cst_15 = arith.constant dense<0.000000e+00> : vector<1x384xf32>
    %13 = tpu.matmul %12, %3, %cst_15 {dimension_numbers = #tpu.dot_dimension_numbers<[1], [0], [0], [1], [0, 0, 1, 1], [], []>} : vector<1x128xbf16>, vector<128x384xbf16>, vector<1x384xf32> -> vector<1x384xf32>
    %14 = arith.index_cast %c0_i32 : i32 to index
    %c0_16 = arith.constant 0 : index
    %15 = vector.load %arg9[%14, %c0_16] : memref<8x384xf32, #tpu.memory_space<vmem>>, vector<1x384xf32>
    %16 = vector.extract_strided_slice %15 {offsets = [0, 0], sizes = [1, 128], strides = [1, 1]} : vector<1x384xf32> to vector<1x128xf32>
    %17 = vector.extract_strided_slice %13 {offsets = [0, 0], sizes = [1, 128], strides = [1, 1]} : vector<1x384xf32> to vector<1x128xf32>
    %18 = arith.addf %16, %17 : vector<1x128xf32>
    %19 = arith.negf %18 : vector<1x128xf32>
    %20 = math.exp %19 : vector<1x128xf32>
    %cst_17 = arith.constant 1.000000e+00 : f32
    %21 = vector.broadcast %cst_17 : f32 to vector<1x128xf32>
    %22 = arith.addf %21, %20 : vector<1x128xf32>
    %23 = arith.divf %21, %22 : vector<1x128xf32>
    %24 = vector.extract_strided_slice %15 {offsets = [0, 128], sizes = [1, 128], strides = [1, 1]} : vector<1x384xf32> to vector<1x128xf32>
    %25 = vector.extract_strided_slice %13 {offsets = [0, 128], sizes = [1, 128], strides = [1, 1]} : vector<1x384xf32> to vector<1x128xf32>
    %26 = arith.addf %24, %25 : vector<1x128xf32>
    %27 = arith.negf %26 : vector<1x128xf32>
    %28 = math.exp %27 : vector<1x128xf32>
    %cst_18 = arith.constant 1.000000e+00 : f32
    %29 = vector.broadcast %cst_18 : f32 to vector<1x128xf32>
    %30 = arith.addf %29, %28 : vector<1x128xf32>
    %31 = arith.divf %29, %30 : vector<1x128xf32>
    %32 = vector.extract_strided_slice %15 {offsets = [0, 256], sizes = [1, 128], strides = [1, 1]} : vector<1x384xf32> to vector<1x128xf32>
    %33 = vector.extract_strided_slice %13 {offsets = [0, 256], sizes = [1, 128], strides = [1, 1]} : vector<1x384xf32> to vector<1x128xf32>
    %34 = arith.addf %33, %5 : vector<1x128xf32>
    %35 = arith.mulf %23, %34 : vector<1x128xf32>
    %36 = arith.addf %32, %35 : vector<1x128xf32>
    %37 = math.tanh %36 : vector<1x128xf32>
    %cst_19 = arith.constant 1.000000e+00 : f32
    %38 = vector.broadcast %cst_19 : f32 to vector<1x128xf32>
    %39 = arith.subf %38, %31 : vector<1x128xf32>
    %40 = arith.mulf %39, %37 : vector<1x128xf32>
    %41 = arith.mulf %31, %11 : vector<1x128xf32>
    %42 = arith.addf %40, %41 : vector<1x128xf32>
    %43 = arith.index_cast %c0_i32 : i32 to index
    %c0_20 = arith.constant 0 : index
    %44 = vector.load %arg8[%43, %c0_20] : memref<8x128xf32, #tpu.memory_space<vmem>>, vector<1x128xf32>
    tpu.vector_store %arg8[%43, %c0_20], %42 {strides = array<i32>} : memref<8x128xf32, #tpu.memory_space<vmem>>, vector<1x128xf32>,
    %c1_i32 = arith.constant 1 : i32
    %45 = arith.truncf %42 : vector<1x128xf32> to vector<1x128xbf16>
    %cst_21 = arith.constant dense<0.000000e+00> : vector<1x384xf32>
    %46 = tpu.matmul %45, %3, %cst_21 {dimension_numbers = #tpu.dot_dimension_numbers<[1], [0], [0], [1], [0, 0, 1, 1], [], []>} : vector<1x128xbf16>, vector<128x384xbf16>, vector<1x384xf32> -> vector<1x384xf32>
    %47 = arith.index_cast %c1_i32 : i32 to index
    %c0_22 = arith.constant 0 : index
    %48 = vector.load %arg9[%47, %c0_22] : memref<8x384xf32, #tpu.memory_space<vmem>>, vector<1x384xf32>
    %49 = vector.extract_strided_slice %48 {offsets = [0, 0], sizes = [1, 128], strides = [1, 1]} : vector<1x384xf32> to vector<1x128xf32>
    %50 = vector.extract_strided_slice %46 {offsets = [0, 0], sizes = [1, 128], strides = [1, 1]} : vector<1x384xf32> to vector<1x128xf32>
    %51 = arith.addf %49, %50 : vector<1x128xf32>
    %52 = arith.negf %51 : vector<1x128xf32>
    %53 = math.exp %52 : vector<1x128xf32>
    %cst_23 = arith.constant 1.000000e+00 : f32
    %54 = vector.broadcast %cst_23 : f32 to vector<1x128xf32>
    %55 = arith.addf %54, %53 : vector<1x128xf32>
    %56 = arith.divf %54, %55 : vector<1x128xf32>
    %57 = vector.extract_strided_slice %48 {offsets = [0, 128], sizes = [1, 128], strides = [1, 1]} : vector<1x384xf32> to vector<1x128xf32>
    %58 = vector.extract_strided_slice %46 {offsets = [0, 128], sizes = [1, 128], strides = [1, 1]} : vector<1x384xf32> to vector<1x128xf32>
    %59 = arith.addf %57, %58 : vector<1x128xf32>
    %60 = arith.negf %59 : vector<1x128xf32>
    %61 = math.exp %60 : vector<1x128xf32>
    %cst_24 = arith.constant 1.000000e+00 : f32
    %62 = vector.broadcast %cst_24 : f32 to vector<1x128xf32>
    %63 = arith.addf %62, %61 : vector<1x128xf32>
    %64 = arith.divf %62, %63 : vector<1x128xf32>
    %65 = vector.extract_strided_slice %48 {offsets = [0, 256], sizes = [1, 128], strides = [1, 1]} : vector<1x384xf32> to vector<1x128xf32>
    %66 = vector.extract_strided_slice %46 {offsets = [0, 256], sizes = [1, 128], strides = [1, 1]} : vector<1x384xf32> to vector<1x128xf32>
    %67 = arith.addf %66, %5 : vector<1x128xf32>
    %68 = arith.mulf %56, %67 : vector<1x128xf32>
    %69 = arith.addf %65, %68 : vector<1x128xf32>
    %70 = math.tanh %69 : vector<1x128xf32>
    %cst_25 = arith.constant 1.000000e+00 : f32
    %71 = vector.broadcast %cst_25 : f32 to vector<1x128xf32>
    %72 = arith.subf %71, %64 : vector<1x128xf32>
    %73 = arith.mulf %72, %70 : vector<1x128xf32>
    %74 = arith.mulf %64, %42 : vector<1x128xf32>
    %75 = arith.addf %73, %74 : vector<1x128xf32>
    %76 = arith.index_cast %c1_i32 : i32 to index
    %c0_26 = arith.constant 0 : index
    %77 = vector.load %arg8[%76, %c0_26] : memref<8x128xf32, #tpu.memory_space<vmem>>, vector<1x128xf32>
    tpu.vector_store %arg8[%76, %c0_26], %75 {strides = array<i32>} : memref<8x128xf32, #tpu.memory_space<vmem>>, vector<1x128xf32>,
    %c2_i32 = arith.constant 2 : i32
    %78 = arith.truncf %75 : vector<1x128xf32> to vector<1x128xbf16>
    %cst_27 = arith.constant dense<0.000000e+00> : vector<1x384xf32>
    %79 = tpu.matmul %78, %3, %cst_27 {dimension_numbers = #tpu.dot_dimension_numbers<[1], [0], [0], [1], [0, 0, 1, 1], [], []>} : vector<1x128xbf16>, vector<128x384xbf16>, vector<1x384xf32> -> vector<1x384xf32>
    %80 = arith.index_cast %c2_i32 : i32 to index
    %c0_28 = arith.constant 0 : index
    %81 = vector.load %arg9[%80, %c0_28] : memref<8x384xf32, #tpu.memory_space<vmem>>, vector<1x384xf32>
    %82 = vector.extract_strided_slice %81 {offsets = [0, 0], sizes = [1, 128], strides = [1, 1]} : vector<1x384xf32> to vector<1x128xf32>
    %83 = vector.extract_strided_slice %79 {offsets = [0, 0], sizes = [1, 128], strides = [1, 1]} : vector<1x384xf32> to vector<1x128xf32>
    %84 = arith.addf %82, %83 : vector<1x128xf32>
    %85 = arith.negf %84 : vector<1x128xf32>
    %86 = math.exp %85 : vector<1x128xf32>
    %cst_29 = arith.constant 1.000000e+00 : f32
    %87 = vector.broadcast %cst_29 : f32 to vector<1x128xf32>
    %88 = arith.addf %87, %86 : vector<1x128xf32>
    %89 = arith.divf %87, %88 : vector<1x128xf32>
    %90 = vector.extract_strided_slice %81 {offsets = [0, 128], sizes = [1, 128], strides = [1, 1]} : vector<1x384xf32> to vector<1x128xf32>
    %91 = vector.extract_strided_slice %79 {offsets = [0, 128], sizes = [1, 128], strides = [1, 1]} : vector<1x384xf32> to vector<1x128xf32>
    %92 = arith.addf %90, %91 : vector<1x128xf32>
    %93 = arith.negf %92 : vector<1x128xf32>
    %94 = math.exp %93 : vector<1x128xf32>
    %cst_30 = arith.constant 1.000000e+00 : f32
    %95 = vector.broadcast %cst_30 : f32 to vector<1x128xf32>
    %96 = arith.addf %95, %94 : vector<1x128xf32>
    %97 = arith.divf %95, %96 : vector<1x128xf32>
    %98 = vector.extract_strided_slice %81 {offsets = [0, 256], sizes = [1, 128], strides = [1, 1]} : vector<1x384xf32> to vector<1x128xf32>
    %99 = vector.extract_strided_slice %79 {offsets = [0, 256], sizes = [1, 128], strides = [1, 1]} : vector<1x384xf32> to vector<1x128xf32>
    %100 = arith.addf %99, %5 : vector<1x128xf32>
    %101 = arith.mulf %89, %100 : vector<1x128xf32>
    %102 = arith.addf %98, %101 : vector<1x128xf32>
    %103 = math.tanh %102 : vector<1x128xf32>
    %cst_31 = arith.constant 1.000000e+00 : f32
    %104 = vector.broadcast %cst_31 : f32 to vector<1x128xf32>
    %105 = arith.subf %104, %97 : vector<1x128xf32>
    %106 = arith.mulf %105, %103 : vector<1x128xf32>
    %107 = arith.mulf %97, %75 : vector<1x128xf32>
    %108 = arith.addf %106, %107 : vector<1x128xf32>
    %109 = arith.index_cast %c2_i32 : i32 to index
    %c0_32 = arith.constant 0 : index
    %110 = vector.load %arg8[%109, %c0_32] : memref<8x128xf32, #tpu.memory_space<vmem>>, vector<1x128xf32>
    tpu.vector_store %arg8[%109, %c0_32], %108 {strides = array<i32>} : memref<8x128xf32, #tpu.memory_space<vmem>>, vector<1x128xf32>,
    %c3_i32 = arith.constant 3 : i32
    %111 = arith.truncf %108 : vector<1x128xf32> to vector<1x128xbf16>
    %cst_33 = arith.constant dense<0.000000e+00> : vector<1x384xf32>
    %112 = tpu.matmul %111, %3, %cst_33 {dimension_numbers = #tpu.dot_dimension_numbers<[1], [0], [0], [1], [0, 0, 1, 1], [], []>} : vector<1x128xbf16>, vector<128x384xbf16>, vector<1x384xf32> -> vector<1x384xf32>
    %113 = arith.index_cast %c3_i32 : i32 to index
    %c0_34 = arith.constant 0 : index
    %114 = vector.load %arg9[%113, %c0_34] : memref<8x384xf32, #tpu.memory_space<vmem>>, vector<1x384xf32>
    %115 = vector.extract_strided_slice %114 {offsets = [0, 0], sizes = [1, 128], strides = [1, 1]} : vector<1x384xf32> to vector<1x128xf32>
    %116 = vector.extract_strided_slice %112 {offsets = [0, 0], sizes = [1, 128], strides = [1, 1]} : vector<1x384xf32> to vector<1x128xf32>
    %117 = arith.addf %115, %116 : vector<1x128xf32>
    %118 = arith.negf %117 : vector<1x128xf32>
    %119 = math.exp %118 : vector<1x128xf32>
    %cst_35 = arith.constant 1.000000e+00 : f32
    %120 = vector.broadcast %cst_35 : f32 to vector<1x128xf32>
    %121 = arith.addf %120, %119 : vector<1x128xf32>
    %122 = arith.divf %120, %121 : vector<1x128xf32>
    %123 = vector.extract_strided_slice %114 {offsets = [0, 128], sizes = [1, 128], strides = [1, 1]} : vector<1x384xf32> to vector<1x128xf32>
    %124 = vector.extract_strided_slice %112 {offsets = [0, 128], sizes = [1, 128], strides = [1, 1]} : vector<1x384xf32> to vector<1x128xf32>
    %125 = arith.addf %123, %124 : vector<1x128xf32>
    %126 = arith.negf %125 : vector<1x128xf32>
    %127 = math.exp %126 : vector<1x128xf32>
    %cst_36 = arith.constant 1.000000e+00 : f32
    %128 = vector.broadcast %cst_36 : f32 to vector<1x128xf32>
    %129 = arith.addf %128, %127 : vector<1x128xf32>
    %130 = arith.divf %128, %129 : vector<1x128xf32>
    %131 = vector.extract_strided_slice %114 {offsets = [0, 256], sizes = [1, 128], strides = [1, 1]} : vector<1x384xf32> to vector<1x128xf32>
    %132 = vector.extract_strided_slice %112 {offsets = [0, 256], sizes = [1, 128], strides = [1, 1]} : vector<1x384xf32> to vector<1x128xf32>
    %133 = arith.addf %132, %5 : vector<1x128xf32>
    %134 = arith.mulf %122, %133 : vector<1x128xf32>
    %135 = arith.addf %131, %134 : vector<1x128xf32>
    %136 = math.tanh %135 : vector<1x128xf32>
    %cst_37 = arith.constant 1.000000e+00 : f32
    %137 = vector.broadcast %cst_37 : f32 to vector<1x128xf32>
    %138 = arith.subf %137, %130 : vector<1x128xf32>
    %139 = arith.mulf %138, %136 : vector<1x128xf32>
    %140 = arith.mulf %130, %108 : vector<1x128xf32>
    %141 = arith.addf %139, %140 : vector<1x128xf32>
    %142 = arith.index_cast %c3_i32 : i32 to index
    %c0_38 = arith.constant 0 : index
    %143 = vector.load %arg8[%142, %c0_38] : memref<8x128xf32, #tpu.memory_space<vmem>>, vector<1x128xf32>
    tpu.vector_store %arg8[%142, %c0_38], %141 {strides = array<i32>} : memref<8x128xf32, #tpu.memory_space<vmem>>, vector<1x128xf32>,
    %c4_i32 = arith.constant 4 : i32
    %144 = arith.truncf %141 : vector<1x128xf32> to vector<1x128xbf16>
    %cst_39 = arith.constant dense<0.000000e+00> : vector<1x384xf32>
    %145 = tpu.matmul %144, %3, %cst_39 {dimension_numbers = #tpu.dot_dimension_numbers<[1], [0], [0], [1], [0, 0, 1, 1], [], []>} : vector<1x128xbf16>, vector<128x384xbf16>, vector<1x384xf32> -> vector<1x384xf32>
    %146 = arith.index_cast %c4_i32 : i32 to index
    %c0_40 = arith.constant 0 : index
    %147 = vector.load %arg9[%146, %c0_40] : memref<8x384xf32, #tpu.memory_space<vmem>>, vector<1x384xf32>
    %148 = vector.extract_strided_slice %147 {offsets = [0, 0], sizes = [1, 128], strides = [1, 1]} : vector<1x384xf32> to vector<1x128xf32>
    %149 = vector.extract_strided_slice %145 {offsets = [0, 0], sizes = [1, 128], strides = [1, 1]} : vector<1x384xf32> to vector<1x128xf32>
    %150 = arith.addf %148, %149 : vector<1x128xf32>
    %151 = arith.negf %150 : vector<1x128xf32>
    %152 = math.exp %151 : vector<1x128xf32>
    %cst_41 = arith.constant 1.000000e+00 : f32
    %153 = vector.broadcast %cst_41 : f32 to vector<1x128xf32>
    %154 = arith.addf %153, %152 : vector<1x128xf32>
    %155 = arith.divf %153, %154 : vector<1x128xf32>
    %156 = vector.extract_strided_slice %147 {offsets = [0, 128], sizes = [1, 128], strides = [1, 1]} : vector<1x384xf32> to vector<1x128xf32>
    %157 = vector.extract_strided_slice %145 {offsets = [0, 128], sizes = [1, 128], strides = [1, 1]} : vector<1x384xf32> to vector<1x128xf32>
    %158 = arith.addf %156, %157 : vector<1x128xf32>
    %159 = arith.negf %158 : vector<1x128xf32>
    %160 = math.exp %159 : vector<1x128xf32>
    %cst_42 = arith.constant 1.000000e+00 : f32
    %161 = vector.broadcast %cst_42 : f32 to vector<1x128xf32>
    %162 = arith.addf %161, %160 : vector<1x128xf32>
    %163 = arith.divf %161, %162 : vector<1x128xf32>
    %164 = vector.extract_strided_slice %147 {offsets = [0, 256], sizes = [1, 128], strides = [1, 1]} : vector<1x384xf32> to vector<1x128xf32>
    %165 = vector.extract_strided_slice %145 {offsets = [0, 256], sizes = [1, 128], strides = [1, 1]} : vector<1x384xf32> to vector<1x128xf32>
    %166 = arith.addf %165, %5 : vector<1x128xf32>
    %167 = arith.mulf %155, %166 : vector<1x128xf32>
    %168 = arith.addf %164, %167 : vector<1x128xf32>
    %169 = math.tanh %168 : vector<1x128xf32>
    %cst_43 = arith.constant 1.000000e+00 : f32
    %170 = vector.broadcast %cst_43 : f32 to vector<1x128xf32>
    %171 = arith.subf %170, %163 : vector<1x128xf32>
    %172 = arith.mulf %171, %169 : vector<1x128xf32>
    %173 = arith.mulf %163, %141 : vector<1x128xf32>
    %174 = arith.addf %172, %173 : vector<1x128xf32>
    %175 = arith.index_cast %c4_i32 : i32 to index
    %c0_44 = arith.constant 0 : index
    %176 = vector.load %arg8[%175, %c0_44] : memref<8x128xf32, #tpu.memory_space<vmem>>, vector<1x128xf32>
    tpu.vector_store %arg8[%175, %c0_44], %174 {strides = array<i32>} : memref<8x128xf32, #tpu.memory_space<vmem>>, vector<1x128xf32>,
    %c5_i32 = arith.constant 5 : i32
    %177 = arith.truncf %174 : vector<1x128xf32> to vector<1x128xbf16>
    %cst_45 = arith.constant dense<0.000000e+00> : vector<1x384xf32>
    %178 = tpu.matmul %177, %3, %cst_45 {dimension_numbers = #tpu.dot_dimension_numbers<[1], [0], [0], [1], [0, 0, 1, 1], [], []>} : vector<1x128xbf16>, vector<128x384xbf16>, vector<1x384xf32> -> vector<1x384xf32>
    %179 = arith.index_cast %c5_i32 : i32 to index
    %c0_46 = arith.constant 0 : index
    %180 = vector.load %arg9[%179, %c0_46] : memref<8x384xf32, #tpu.memory_space<vmem>>, vector<1x384xf32>
    %181 = vector.extract_strided_slice %180 {offsets = [0, 0], sizes = [1, 128], strides = [1, 1]} : vector<1x384xf32> to vector<1x128xf32>
    %182 = vector.extract_strided_slice %178 {offsets = [0, 0], sizes = [1, 128], strides = [1, 1]} : vector<1x384xf32> to vector<1x128xf32>
    %183 = arith.addf %181, %182 : vector<1x128xf32>
    %184 = arith.negf %183 : vector<1x128xf32>
    %185 = math.exp %184 : vector<1x128xf32>
    %cst_47 = arith.constant 1.000000e+00 : f32
    %186 = vector.broadcast %cst_47 : f32 to vector<1x128xf32>
    %187 = arith.addf %186, %185 : vector<1x128xf32>
    %188 = arith.divf %186, %187 : vector<1x128xf32>
    %189 = vector.extract_strided_slice %180 {offsets = [0, 128], sizes = [1, 128], strides = [1, 1]} : vector<1x384xf32> to vector<1x128xf32>
    %190 = vector.extract_strided_slice %178 {offsets = [0, 128], sizes = [1, 128], strides = [1, 1]} : vector<1x384xf32> to vector<1x128xf32>
    %191 = arith.addf %189, %190 : vector<1x128xf32>
    %192 = arith.negf %191 : vector<1x128xf32>
    %193 = math.exp %192 : vector<1x128xf32>
    %cst_48 = arith.constant 1.000000e+00 : f32
    %194 = vector.broadcast %cst_48 : f32 to vector<1x128xf32>
    %195 = arith.addf %194, %193 : vector<1x128xf32>
    %196 = arith.divf %194, %195 : vector<1x128xf32>
    %197 = vector.extract_strided_slice %180 {offsets = [0, 256], sizes = [1, 128], strides = [1, 1]} : vector<1x384xf32> to vector<1x128xf32>
    %198 = vector.extract_strided_slice %178 {offsets = [0, 256], sizes = [1, 128], strides = [1, 1]} : vector<1x384xf32> to vector<1x128xf32>
    %199 = arith.addf %198, %5 : vector<1x128xf32>
    %200 = arith.mulf %188, %199 : vector<1x128xf32>
    %201 = arith.addf %197, %200 : vector<1x128xf32>
    %202 = math.tanh %201 : vector<1x128xf32>
    %cst_49 = arith.constant 1.000000e+00 : f32
    %203 = vector.broadcast %cst_49 : f32 to vector<1x128xf32>
    %204 = arith.subf %203, %196 : vector<1x128xf32>
    %205 = arith.mulf %204, %202 : vector<1x128xf32>
    %206 = arith.mulf %196, %174 : vector<1x128xf32>
    %207 = arith.addf %205, %206 : vector<1x128xf32>
    %208 = arith.index_cast %c5_i32 : i32 to index
    %c0_50 = arith.constant 0 : index
    %209 = vector.load %arg8[%208, %c0_50] : memref<8x128xf32, #tpu.memory_space<vmem>>, vector<1x128xf32>
    tpu.vector_store %arg8[%208, %c0_50], %207 {strides = array<i32>} : memref<8x128xf32, #tpu.memory_space<vmem>>, vector<1x128xf32>,
    %c6_i32 = arith.constant 6 : i32
    %210 = arith.truncf %207 : vector<1x128xf32> to vector<1x128xbf16>
    %cst_51 = arith.constant dense<0.000000e+00> : vector<1x384xf32>
    %211 = tpu.matmul %210, %3, %cst_51 {dimension_numbers = #tpu.dot_dimension_numbers<[1], [0], [0], [1], [0, 0, 1, 1], [], []>} : vector<1x128xbf16>, vector<128x384xbf16>, vector<1x384xf32> -> vector<1x384xf32>
    %212 = arith.index_cast %c6_i32 : i32 to index
    %c0_52 = arith.constant 0 : index
    %213 = vector.load %arg9[%212, %c0_52] : memref<8x384xf32, #tpu.memory_space<vmem>>, vector<1x384xf32>
    %214 = vector.extract_strided_slice %213 {offsets = [0, 0], sizes = [1, 128], strides = [1, 1]} : vector<1x384xf32> to vector<1x128xf32>
    %215 = vector.extract_strided_slice %211 {offsets = [0, 0], sizes = [1, 128], strides = [1, 1]} : vector<1x384xf32> to vector<1x128xf32>
    %216 = arith.addf %214, %215 : vector<1x128xf32>
    %217 = arith.negf %216 : vector<1x128xf32>
    %218 = math.exp %217 : vector<1x128xf32>
    %cst_53 = arith.constant 1.000000e+00 : f32
    %219 = vector.broadcast %cst_53 : f32 to vector<1x128xf32>
    %220 = arith.addf %219, %218 : vector<1x128xf32>
    %221 = arith.divf %219, %220 : vector<1x128xf32>
    %222 = vector.extract_strided_slice %213 {offsets = [0, 128], sizes = [1, 128], strides = [1, 1]} : vector<1x384xf32> to vector<1x128xf32>
    %223 = vector.extract_strided_slice %211 {offsets = [0, 128], sizes = [1, 128], strides = [1, 1]} : vector<1x384xf32> to vector<1x128xf32>
    %224 = arith.addf %222, %223 : vector<1x128xf32>
    %225 = arith.negf %224 : vector<1x128xf32>
    %226 = math.exp %225 : vector<1x128xf32>
    %cst_54 = arith.constant 1.000000e+00 : f32
    %227 = vector.broadcast %cst_54 : f32 to vector<1x128xf32>
    %228 = arith.addf %227, %226 : vector<1x128xf32>
    %229 = arith.divf %227, %228 : vector<1x128xf32>
    %230 = vector.extract_strided_slice %213 {offsets = [0, 256], sizes = [1, 128], strides = [1, 1]} : vector<1x384xf32> to vector<1x128xf32>
    %231 = vector.extract_strided_slice %211 {offsets = [0, 256], sizes = [1, 128], strides = [1, 1]} : vector<1x384xf32> to vector<1x128xf32>
    %232 = arith.addf %231, %5 : vector<1x128xf32>
    %233 = arith.mulf %221, %232 : vector<1x128xf32>
    %234 = arith.addf %230, %233 : vector<1x128xf32>
    %235 = math.tanh %234 : vector<1x128xf32>
    %cst_55 = arith.constant 1.000000e+00 : f32
    %236 = vector.broadcast %cst_55 : f32 to vector<1x128xf32>
    %237 = arith.subf %236, %229 : vector<1x128xf32>
    %238 = arith.mulf %237, %235 : vector<1x128xf32>
    %239 = arith.mulf %229, %207 : vector<1x128xf32>
    %240 = arith.addf %238, %239 : vector<1x128xf32>
    %241 = arith.index_cast %c6_i32 : i32 to index
    %c0_56 = arith.constant 0 : index
    %242 = vector.load %arg8[%241, %c0_56] : memref<8x128xf32, #tpu.memory_space<vmem>>, vector<1x128xf32>
    tpu.vector_store %arg8[%241, %c0_56], %240 {strides = array<i32>} : memref<8x128xf32, #tpu.memory_space<vmem>>, vector<1x128xf32>,
    %c7_i32 = arith.constant 7 : i32
    %243 = arith.truncf %240 : vector<1x128xf32> to vector<1x128xbf16>
    %cst_57 = arith.constant dense<0.000000e+00> : vector<1x384xf32>
    %244 = tpu.matmul %243, %3, %cst_57 {dimension_numbers = #tpu.dot_dimension_numbers<[1], [0], [0], [1], [0, 0, 1, 1], [], []>} : vector<1x128xbf16>, vector<128x384xbf16>, vector<1x384xf32> -> vector<1x384xf32>
    %245 = arith.index_cast %c7_i32 : i32 to index
    %c0_58 = arith.constant 0 : index
    %246 = vector.load %arg9[%245, %c0_58] : memref<8x384xf32, #tpu.memory_space<vmem>>, vector<1x384xf32>
    %247 = vector.extract_strided_slice %246 {offsets = [0, 0], sizes = [1, 128], strides = [1, 1]} : vector<1x384xf32> to vector<1x128xf32>
    %248 = vector.extract_strided_slice %244 {offsets = [0, 0], sizes = [1, 128], strides = [1, 1]} : vector<1x384xf32> to vector<1x128xf32>
    %249 = arith.addf %247, %248 : vector<1x128xf32>
    %250 = arith.negf %249 : vector<1x128xf32>
    %251 = math.exp %250 : vector<1x128xf32>
    %cst_59 = arith.constant 1.000000e+00 : f32
    %252 = vector.broadcast %cst_59 : f32 to vector<1x128xf32>
    %253 = arith.addf %252, %251 : vector<1x128xf32>
    %254 = arith.divf %252, %253 : vector<1x128xf32>
    %255 = vector.extract_strided_slice %246 {offsets = [0, 128], sizes = [1, 128], strides = [1, 1]} : vector<1x384xf32> to vector<1x128xf32>
    %256 = vector.extract_strided_slice %244 {offsets = [0, 128], sizes = [1, 128], strides = [1, 1]} : vector<1x384xf32> to vector<1x128xf32>
    %257 = arith.addf %255, %256 : vector<1x128xf32>
    %258 = arith.negf %257 : vector<1x128xf32>
    %259 = math.exp %258 : vector<1x128xf32>
    %cst_60 = arith.constant 1.000000e+00 : f32
    %260 = vector.broadcast %cst_60 : f32 to vector<1x128xf32>
    %261 = arith.addf %260, %259 : vector<1x128xf32>
    %262 = arith.divf %260, %261 : vector<1x128xf32>
    %263 = vector.extract_strided_slice %246 {offsets = [0, 256], sizes = [1, 128], strides = [1, 1]} : vector<1x384xf32> to vector<1x128xf32>
    %264 = vector.extract_strided_slice %244 {offsets = [0, 256], sizes = [1, 128], strides = [1, 1]} : vector<1x384xf32> to vector<1x128xf32>
    %265 = arith.addf %264, %5 : vector<1x128xf32>
    %266 = arith.mulf %254, %265 : vector<1x128xf32>
    %267 = arith.addf %263, %266 : vector<1x128xf32>
    %268 = math.tanh %267 : vector<1x128xf32>
    %cst_61 = arith.constant 1.000000e+00 : f32
    %269 = vector.broadcast %cst_61 : f32 to vector<1x128xf32>
    %270 = arith.subf %269, %262 : vector<1x128xf32>
    %271 = arith.mulf %270, %268 : vector<1x128xf32>
    %272 = arith.mulf %262, %240 : vector<1x128xf32>
    %273 = arith.addf %271, %272 : vector<1x128xf32>
    %274 = arith.index_cast %c7_i32 : i32 to index
    %c0_62 = arith.constant 0 : index
    %275 = vector.load %arg8[%274, %c0_62] : memref<8x128xf32, #tpu.memory_space<vmem>>, vector<1x128xf32>
    tpu.vector_store %arg8[%274, %c0_62], %273 {strides = array<i32>} : memref<8x128xf32, #tpu.memory_space<vmem>>, vector<1x128xf32>,
    %c8_i32 = arith.constant 8 : i32
    %c0_63 = arith.constant 0 : index
    %c0_64 = arith.constant 0 : index
    %276 = vector.load %arg7[%c0_63, %c0_64] : memref<2x128xf32, #tpu.memory_space<vmem>>, vector<1x128xf32>
    tpu.vector_store %arg7[%c0_63, %c0_64], %273 {strides = array<i32>} : memref<2x128xf32, #tpu.memory_space<vmem>>, vector<1x128xf32>,
    %c1 = arith.constant 1 : index
    %c0_65 = arith.constant 0 : index
    %c0_66 = arith.constant 0 : index
    %277 = vector.load %arg1[%c1, %c0_65, %c0_66] : memref<2x128x384xbf16, #tpu.memory_space<vmem>>, vector<1x128x384xbf16>
    %278 = vector.shape_cast %277 : vector<1x128x384xbf16> to vector<128x384xbf16>
    %c1_67 = arith.constant 1 : index
    %c0_68 = arith.constant 0 : index
    %c0_69 = arith.constant 0 : index
    %279 = vector.load %arg2[%c1_67, %c0_68, %c0_69] : memref<2x128x384xbf16, #tpu.memory_space<vmem>>, vector<1x128x384xbf16>
    %280 = vector.shape_cast %279 : vector<1x128x384xbf16> to vector<128x384xbf16>
    %c1_70 = arith.constant 1 : index
    %c0_71 = arith.constant 0 : index
    %281 = vector.load %arg3[%c1_70, %c0_71] : memref<2x384xf32, #tpu.memory_space<vmem>>, vector<1x384xf32>
    %c1_72 = arith.constant 1 : index
    %c0_73 = arith.constant 0 : index
    %282 = vector.load %arg4[%c1_72, %c0_73] : memref<2x128xf32, #tpu.memory_space<vmem>>, vector<1x128xf32>
    %c0_74 = arith.constant 0 : index
    %c0_75 = arith.constant 0 : index
    %283 = vector.load %arg8[%c0_74, %c0_75] : memref<8x128xf32, #tpu.memory_space<vmem>>, vector<8x128xf32>
    %284 = arith.truncf %283 : vector<8x128xf32> to vector<8x128xbf16>
    %cst_76 = arith.constant dense<0.000000e+00> : vector<8x384xf32>
    %285 = tpu.matmul %284, %278, %cst_76 {dimension_numbers = #tpu.dot_dimension_numbers<[1], [0], [0], [1], [0, 0, 1, 1], [], []>} : vector<8x128xbf16>, vector<128x384xbf16>, vector<8x384xf32> -> vector<8x384xf32>
    %286 = vector.broadcast %281 : vector<1x384xf32> to vector<8x384xf32>
    %287 = arith.addf %285, %286 : vector<8x384xf32>
    %c0_77 = arith.constant 0 : index
    %c0_78 = arith.constant 0 : index
    %288 = vector.load %arg9[%c0_77, %c0_78] : memref<8x384xf32, #tpu.memory_space<vmem>>, vector<8x384xf32>
    tpu.vector_store %arg9[%c0_77, %c0_78], %287 {strides = array<i32>} : memref<8x384xf32, #tpu.memory_space<vmem>>, vector<8x384xf32>,
    %c1_79 = arith.constant 1 : index
    %c0_80 = arith.constant 0 : index
    %289 = vector.load %arg5[%c1_79, %c0_80] : memref<2x128xf32, #tpu.memory_space<vmem>>, vector<1x128xf32>
    %c0_i32_81 = arith.constant 0 : i32
    %290 = arith.truncf %289 : vector<1x128xf32> to vector<1x128xbf16>
    %cst_82 = arith.constant dense<0.000000e+00> : vector<1x384xf32>
    %291 = tpu.matmul %290, %280, %cst_82 {dimension_numbers = #tpu.dot_dimension_numbers<[1], [0], [0], [1], [0, 0, 1, 1], [], []>} : vector<1x128xbf16>, vector<128x384xbf16>, vector<1x384xf32> -> vector<1x384xf32>
    %292 = arith.index_cast %c0_i32_81 : i32 to index
    %c0_83 = arith.constant 0 : index
    %293 = vector.load %arg9[%292, %c0_83] : memref<8x384xf32, #tpu.memory_space<vmem>>, vector<1x384xf32>
    %294 = vector.extract_strided_slice %293 {offsets = [0, 0], sizes = [1, 128], strides = [1, 1]} : vector<1x384xf32> to vector<1x128xf32>
    %295 = vector.extract_strided_slice %291 {offsets = [0, 0], sizes = [1, 128], strides = [1, 1]} : vector<1x384xf32> to vector<1x128xf32>
    %296 = arith.addf %294, %295 : vector<1x128xf32>
    %297 = arith.negf %296 : vector<1x128xf32>
    %298 = math.exp %297 : vector<1x128xf32>
    %cst_84 = arith.constant 1.000000e+00 : f32
    %299 = vector.broadcast %cst_84 : f32 to vector<1x128xf32>
    %300 = arith.addf %299, %298 : vector<1x128xf32>
    %301 = arith.divf %299, %300 : vector<1x128xf32>
    %302 = vector.extract_strided_slice %293 {offsets = [0, 128], sizes = [1, 128], strides = [1, 1]} : vector<1x384xf32> to vector<1x128xf32>
    %303 = vector.extract_strided_slice %291 {offsets = [0, 128], sizes = [1, 128], strides = [1, 1]} : vector<1x384xf32> to vector<1x128xf32>
    %304 = arith.addf %302, %303 : vector<1x128xf32>
    %305 = arith.negf %304 : vector<1x128xf32>
    %306 = math.exp %305 : vector<1x128xf32>
    %cst_85 = arith.constant 1.000000e+00 : f32
    %307 = vector.broadcast %cst_85 : f32 to vector<1x128xf32>
    %308 = arith.addf %307, %306 : vector<1x128xf32>
    %309 = arith.divf %307, %308 : vector<1x128xf32>
    %310 = vector.extract_strided_slice %293 {offsets = [0, 256], sizes = [1, 128], strides = [1, 1]} : vector<1x384xf32> to vector<1x128xf32>
    %311 = vector.extract_strided_slice %291 {offsets = [0, 256], sizes = [1, 128], strides = [1, 1]} : vector<1x384xf32> to vector<1x128xf32>
    %312 = arith.addf %311, %282 : vector<1x128xf32>
    %313 = arith.mulf %301, %312 : vector<1x128xf32>
    %314 = arith.addf %310, %313 : vector<1x128xf32>
    %315 = math.tanh %314 : vector<1x128xf32>
    %cst_86 = arith.constant 1.000000e+00 : f32
    %316 = vector.broadcast %cst_86 : f32 to vector<1x128xf32>
    %317 = arith.subf %316, %309 : vector<1x128xf32>
    %318 = arith.mulf %317, %315 : vector<1x128xf32>
    %319 = arith.mulf %309, %289 : vector<1x128xf32>
    %320 = arith.addf %318, %319 : vector<1x128xf32>
    %321 = arith.index_cast %c0_i32_81 : i32 to index
    %c0_87 = arith.constant 0 : index
    %322 = vector.load %arg6[%321, %c0_87] : memref<8x128xf32, #tpu.memory_space<vmem>>, vector<1x128xf32>
    tpu.vector_store %arg6[%321, %c0_87], %320 {strides = array<i32>} : memref<8x128xf32, #tpu.memory_space<vmem>>, vector<1x128xf32>,
    %c1_i32_88 = arith.constant 1 : i32
    %323 = arith.truncf %320 : vector<1x128xf32> to vector<1x128xbf16>
    %cst_89 = arith.constant dense<0.000000e+00> : vector<1x384xf32>
    %324 = tpu.matmul %323, %280, %cst_89 {dimension_numbers = #tpu.dot_dimension_numbers<[1], [0], [0], [1], [0, 0, 1, 1], [], []>} : vector<1x128xbf16>, vector<128x384xbf16>, vector<1x384xf32> -> vector<1x384xf32>
    %325 = arith.index_cast %c1_i32_88 : i32 to index
    %c0_90 = arith.constant 0 : index
    %326 = vector.load %arg9[%325, %c0_90] : memref<8x384xf32, #tpu.memory_space<vmem>>, vector<1x384xf32>
    %327 = vector.extract_strided_slice %326 {offsets = [0, 0], sizes = [1, 128], strides = [1, 1]} : vector<1x384xf32> to vector<1x128xf32>
    %328 = vector.extract_strided_slice %324 {offsets = [0, 0], sizes = [1, 128], strides = [1, 1]} : vector<1x384xf32> to vector<1x128xf32>
    %329 = arith.addf %327, %328 : vector<1x128xf32>
    %330 = arith.negf %329 : vector<1x128xf32>
    %331 = math.exp %330 : vector<1x128xf32>
    %cst_91 = arith.constant 1.000000e+00 : f32
    %332 = vector.broadcast %cst_91 : f32 to vector<1x128xf32>
    %333 = arith.addf %332, %331 : vector<1x128xf32>
    %334 = arith.divf %332, %333 : vector<1x128xf32>
    %335 = vector.extract_strided_slice %326 {offsets = [0, 128], sizes = [1, 128], strides = [1, 1]} : vector<1x384xf32> to vector<1x128xf32>
    %336 = vector.extract_strided_slice %324 {offsets = [0, 128], sizes = [1, 128], strides = [1, 1]} : vector<1x384xf32> to vector<1x128xf32>
    %337 = arith.addf %335, %336 : vector<1x128xf32>
    %338 = arith.negf %337 : vector<1x128xf32>
    %339 = math.exp %338 : vector<1x128xf32>
    %cst_92 = arith.constant 1.000000e+00 : f32
    %340 = vector.broadcast %cst_92 : f32 to vector<1x128xf32>
    %341 = arith.addf %340, %339 : vector<1x128xf32>
    %342 = arith.divf %340, %341 : vector<1x128xf32>
    %343 = vector.extract_strided_slice %326 {offsets = [0, 256], sizes = [1, 128], strides = [1, 1]} : vector<1x384xf32> to vector<1x128xf32>
    %344 = vector.extract_strided_slice %324 {offsets = [0, 256], sizes = [1, 128], strides = [1, 1]} : vector<1x384xf32> to vector<1x128xf32>
    %345 = arith.addf %344, %282 : vector<1x128xf32>
    %346 = arith.mulf %334, %345 : vector<1x128xf32>
    %347 = arith.addf %343, %346 : vector<1x128xf32>
    %348 = math.tanh %347 : vector<1x128xf32>
    %cst_93 = arith.constant 1.000000e+00 : f32
    %349 = vector.broadcast %cst_93 : f32 to vector<1x128xf32>
    %350 = arith.subf %349, %342 : vector<1x128xf32>
    %351 = arith.mulf %350, %348 : vector<1x128xf32>
    %352 = arith.mulf %342, %320 : vector<1x128xf32>
    %353 = arith.addf %351, %352 : vector<1x128xf32>
    %354 = arith.index_cast %c1_i32_88 : i32 to index
    %c0_94 = arith.constant 0 : index
    %355 = vector.load %arg6[%354, %c0_94] : memref<8x128xf32, #tpu.memory_space<vmem>>, vector<1x128xf32>
    tpu.vector_store %arg6[%354, %c0_94], %353 {strides = array<i32>} : memref<8x128xf32, #tpu.memory_space<vmem>>, vector<1x128xf32>,
    %c2_i32_95 = arith.constant 2 : i32
    %356 = arith.truncf %353 : vector<1x128xf32> to vector<1x128xbf16>
    %cst_96 = arith.constant dense<0.000000e+00> : vector<1x384xf32>
    %357 = tpu.matmul %356, %280, %cst_96 {dimension_numbers = #tpu.dot_dimension_numbers<[1], [0], [0], [1], [0, 0, 1, 1], [], []>} : vector<1x128xbf16>, vector<128x384xbf16>, vector<1x384xf32> -> vector<1x384xf32>
    %358 = arith.index_cast %c2_i32_95 : i32 to index
    %c0_97 = arith.constant 0 : index
    %359 = vector.load %arg9[%358, %c0_97] : memref<8x384xf32, #tpu.memory_space<vmem>>, vector<1x384xf32>
    %360 = vector.extract_strided_slice %359 {offsets = [0, 0], sizes = [1, 128], strides = [1, 1]} : vector<1x384xf32> to vector<1x128xf32>
    %361 = vector.extract_strided_slice %357 {offsets = [0, 0], sizes = [1, 128], strides = [1, 1]} : vector<1x384xf32> to vector<1x128xf32>
    %362 = arith.addf %360, %361 : vector<1x128xf32>
    %363 = arith.negf %362 : vector<1x128xf32>
    %364 = math.exp %363 : vector<1x128xf32>
    %cst_98 = arith.constant 1.000000e+00 : f32
    %365 = vector.broadcast %cst_98 : f32 to vector<1x128xf32>
    %366 = arith.addf %365, %364 : vector<1x128xf32>
    %367 = arith.divf %365, %366 : vector<1x128xf32>
    %368 = vector.extract_strided_slice %359 {offsets = [0, 128], sizes = [1, 128], strides = [1, 1]} : vector<1x384xf32> to vector<1x128xf32>
    %369 = vector.extract_strided_slice %357 {offsets = [0, 128], sizes = [1, 128], strides = [1, 1]} : vector<1x384xf32> to vector<1x128xf32>
    %370 = arith.addf %368, %369 : vector<1x128xf32>
    %371 = arith.negf %370 : vector<1x128xf32>
    %372 = math.exp %371 : vector<1x128xf32>
    %cst_99 = arith.constant 1.000000e+00 : f32
    %373 = vector.broadcast %cst_99 : f32 to vector<1x128xf32>
    %374 = arith.addf %373, %372 : vector<1x128xf32>
    %375 = arith.divf %373, %374 : vector<1x128xf32>
    %376 = vector.extract_strided_slice %359 {offsets = [0, 256], sizes = [1, 128], strides = [1, 1]} : vector<1x384xf32> to vector<1x128xf32>
    %377 = vector.extract_strided_slice %357 {offsets = [0, 256], sizes = [1, 128], strides = [1, 1]} : vector<1x384xf32> to vector<1x128xf32>
    %378 = arith.addf %377, %282 : vector<1x128xf32>
    %379 = arith.mulf %367, %378 : vector<1x128xf32>
    %380 = arith.addf %376, %379 : vector<1x128xf32>
    %381 = math.tanh %380 : vector<1x128xf32>
    %cst_100 = arith.constant 1.000000e+00 : f32
    %382 = vector.broadcast %cst_100 : f32 to vector<1x128xf32>
    %383 = arith.subf %382, %375 : vector<1x128xf32>
    %384 = arith.mulf %383, %381 : vector<1x128xf32>
    %385 = arith.mulf %375, %353 : vector<1x128xf32>
    %386 = arith.addf %384, %385 : vector<1x128xf32>
    %387 = arith.index_cast %c2_i32_95 : i32 to index
    %c0_101 = arith.constant 0 : index
    %388 = vector.load %arg6[%387, %c0_101] : memref<8x128xf32, #tpu.memory_space<vmem>>, vector<1x128xf32>
    tpu.vector_store %arg6[%387, %c0_101], %386 {strides = array<i32>} : memref<8x128xf32, #tpu.memory_space<vmem>>, vector<1x128xf32>,
    %c3_i32_102 = arith.constant 3 : i32
    %389 = arith.truncf %386 : vector<1x128xf32> to vector<1x128xbf16>
    %cst_103 = arith.constant dense<0.000000e+00> : vector<1x384xf32>
    %390 = tpu.matmul %389, %280, %cst_103 {dimension_numbers = #tpu.dot_dimension_numbers<[1], [0], [0], [1], [0, 0, 1, 1], [], []>} : vector<1x128xbf16>, vector<128x384xbf16>, vector<1x384xf32> -> vector<1x384xf32>
    %391 = arith.index_cast %c3_i32_102 : i32 to index
    %c0_104 = arith.constant 0 : index
    %392 = vector.load %arg9[%391, %c0_104] : memref<8x384xf32, #tpu.memory_space<vmem>>, vector<1x384xf32>
    %393 = vector.extract_strided_slice %392 {offsets = [0, 0], sizes = [1, 128], strides = [1, 1]} : vector<1x384xf32> to vector<1x128xf32>
    %394 = vector.extract_strided_slice %390 {offsets = [0, 0], sizes = [1, 128], strides = [1, 1]} : vector<1x384xf32> to vector<1x128xf32>
    %395 = arith.addf %393, %394 : vector<1x128xf32>
    %396 = arith.negf %395 : vector<1x128xf32>
    %397 = math.exp %396 : vector<1x128xf32>
    %cst_105 = arith.constant 1.000000e+00 : f32
    %398 = vector.broadcast %cst_105 : f32 to vector<1x128xf32>
    %399 = arith.addf %398, %397 : vector<1x128xf32>
    %400 = arith.divf %398, %399 : vector<1x128xf32>
    %401 = vector.extract_strided_slice %392 {offsets = [0, 128], sizes = [1, 128], strides = [1, 1]} : vector<1x384xf32> to vector<1x128xf32>
    %402 = vector.extract_strided_slice %390 {offsets = [0, 128], sizes = [1, 128], strides = [1, 1]} : vector<1x384xf32> to vector<1x128xf32>
    %403 = arith.addf %401, %402 : vector<1x128xf32>
    %404 = arith.negf %403 : vector<1x128xf32>
    %405 = math.exp %404 : vector<1x128xf32>
    %cst_106 = arith.constant 1.000000e+00 : f32
    %406 = vector.broadcast %cst_106 : f32 to vector<1x128xf32>
    %407 = arith.addf %406, %405 : vector<1x128xf32>
    %408 = arith.divf %406, %407 : vector<1x128xf32>
    %409 = vector.extract_strided_slice %392 {offsets = [0, 256], sizes = [1, 128], strides = [1, 1]} : vector<1x384xf32> to vector<1x128xf32>
    %410 = vector.extract_strided_slice %390 {offsets = [0, 256], sizes = [1, 128], strides = [1, 1]} : vector<1x384xf32> to vector<1x128xf32>
    %411 = arith.addf %410, %282 : vector<1x128xf32>
    %412 = arith.mulf %400, %411 : vector<1x128xf32>
    %413 = arith.addf %409, %412 : vector<1x128xf32>
    %414 = math.tanh %413 : vector<1x128xf32>
    %cst_107 = arith.constant 1.000000e+00 : f32
    %415 = vector.broadcast %cst_107 : f32 to vector<1x128xf32>
    %416 = arith.subf %415, %408 : vector<1x128xf32>
    %417 = arith.mulf %416, %414 : vector<1x128xf32>
    %418 = arith.mulf %408, %386 : vector<1x128xf32>
    %419 = arith.addf %417, %418 : vector<1x128xf32>
    %420 = arith.index_cast %c3_i32_102 : i32 to index
    %c0_108 = arith.constant 0 : index
    %421 = vector.load %arg6[%420, %c0_108] : memref<8x128xf32, #tpu.memory_space<vmem>>, vector<1x128xf32>
    tpu.vector_store %arg6[%420, %c0_108], %419 {strides = array<i32>} : memref<8x128xf32, #tpu.memory_space<vmem>>, vector<1x128xf32>,
    %c4_i32_109 = arith.constant 4 : i32
    %422 = arith.truncf %419 : vector<1x128xf32> to vector<1x128xbf16>
    %cst_110 = arith.constant dense<0.000000e+00> : vector<1x384xf32>
    %423 = tpu.matmul %422, %280, %cst_110 {dimension_numbers = #tpu.dot_dimension_numbers<[1], [0], [0], [1], [0, 0, 1, 1], [], []>} : vector<1x128xbf16>, vector<128x384xbf16>, vector<1x384xf32> -> vector<1x384xf32>
    %424 = arith.index_cast %c4_i32_109 : i32 to index
    %c0_111 = arith.constant 0 : index
    %425 = vector.load %arg9[%424, %c0_111] : memref<8x384xf32, #tpu.memory_space<vmem>>, vector<1x384xf32>
    %426 = vector.extract_strided_slice %425 {offsets = [0, 0], sizes = [1, 128], strides = [1, 1]} : vector<1x384xf32> to vector<1x128xf32>
    %427 = vector.extract_strided_slice %423 {offsets = [0, 0], sizes = [1, 128], strides = [1, 1]} : vector<1x384xf32> to vector<1x128xf32>
    %428 = arith.addf %426, %427 : vector<1x128xf32>
    %429 = arith.negf %428 : vector<1x128xf32>
    %430 = math.exp %429 : vector<1x128xf32>
    %cst_112 = arith.constant 1.000000e+00 : f32
    %431 = vector.broadcast %cst_112 : f32 to vector<1x128xf32>
    %432 = arith.addf %431, %430 : vector<1x128xf32>
    %433 = arith.divf %431, %432 : vector<1x128xf32>
    %434 = vector.extract_strided_slice %425 {offsets = [0, 128], sizes = [1, 128], strides = [1, 1]} : vector<1x384xf32> to vector<1x128xf32>
    %435 = vector.extract_strided_slice %423 {offsets = [0, 128], sizes = [1, 128], strides = [1, 1]} : vector<1x384xf32> to vector<1x128xf32>
    %436 = arith.addf %434, %435 : vector<1x128xf32>
    %437 = arith.negf %436 : vector<1x128xf32>
    %438 = math.exp %437 : vector<1x128xf32>
    %cst_113 = arith.constant 1.000000e+00 : f32
    %439 = vector.broadcast %cst_113 : f32 to vector<1x128xf32>
    %440 = arith.addf %439, %438 : vector<1x128xf32>
    %441 = arith.divf %439, %440 : vector<1x128xf32>
    %442 = vector.extract_strided_slice %425 {offsets = [0, 256], sizes = [1, 128], strides = [1, 1]} : vector<1x384xf32> to vector<1x128xf32>
    %443 = vector.extract_strided_slice %423 {offsets = [0, 256], sizes = [1, 128], strides = [1, 1]} : vector<1x384xf32> to vector<1x128xf32>
    %444 = arith.addf %443, %282 : vector<1x128xf32>
    %445 = arith.mulf %433, %444 : vector<1x128xf32>
    %446 = arith.addf %442, %445 : vector<1x128xf32>
    %447 = math.tanh %446 : vector<1x128xf32>
    %cst_114 = arith.constant 1.000000e+00 : f32
    %448 = vector.broadcast %cst_114 : f32 to vector<1x128xf32>
    %449 = arith.subf %448, %441 : vector<1x128xf32>
    %450 = arith.mulf %449, %447 : vector<1x128xf32>
    %451 = arith.mulf %441, %419 : vector<1x128xf32>
    %452 = arith.addf %450, %451 : vector<1x128xf32>
    %453 = arith.index_cast %c4_i32_109 : i32 to index
    %c0_115 = arith.constant 0 : index
    %454 = vector.load %arg6[%453, %c0_115] : memref<8x128xf32, #tpu.memory_space<vmem>>, vector<1x128xf32>
    tpu.vector_store %arg6[%453, %c0_115], %452 {strides = array<i32>} : memref<8x128xf32, #tpu.memory_space<vmem>>, vector<1x128xf32>,
    %c5_i32_116 = arith.constant 5 : i32
    %455 = arith.truncf %452 : vector<1x128xf32> to vector<1x128xbf16>
    %cst_117 = arith.constant dense<0.000000e+00> : vector<1x384xf32>
    %456 = tpu.matmul %455, %280, %cst_117 {dimension_numbers = #tpu.dot_dimension_numbers<[1], [0], [0], [1], [0, 0, 1, 1], [], []>} : vector<1x128xbf16>, vector<128x384xbf16>, vector<1x384xf32> -> vector<1x384xf32>
    %457 = arith.index_cast %c5_i32_116 : i32 to index
    %c0_118 = arith.constant 0 : index
    %458 = vector.load %arg9[%457, %c0_118] : memref<8x384xf32, #tpu.memory_space<vmem>>, vector<1x384xf32>
    %459 = vector.extract_strided_slice %458 {offsets = [0, 0], sizes = [1, 128], strides = [1, 1]} : vector<1x384xf32> to vector<1x128xf32>
    %460 = vector.extract_strided_slice %456 {offsets = [0, 0], sizes = [1, 128], strides = [1, 1]} : vector<1x384xf32> to vector<1x128xf32>
    %461 = arith.addf %459, %460 : vector<1x128xf32>
    %462 = arith.negf %461 : vector<1x128xf32>
    %463 = math.exp %462 : vector<1x128xf32>
    %cst_119 = arith.constant 1.000000e+00 : f32
    %464 = vector.broadcast %cst_119 : f32 to vector<1x128xf32>
    %465 = arith.addf %464, %463 : vector<1x128xf32>
    %466 = arith.divf %464, %465 : vector<1x128xf32>
    %467 = vector.extract_strided_slice %458 {offsets = [0, 128], sizes = [1, 128], strides = [1, 1]} : vector<1x384xf32> to vector<1x128xf32>
    %468 = vector.extract_strided_slice %456 {offsets = [0, 128], sizes = [1, 128], strides = [1, 1]} : vector<1x384xf32> to vector<1x128xf32>
    %469 = arith.addf %467, %468 : vector<1x128xf32>
    %470 = arith.negf %469 : vector<1x128xf32>
    %471 = math.exp %470 : vector<1x128xf32>
    %cst_120 = arith.constant 1.000000e+00 : f32
    %472 = vector.broadcast %cst_120 : f32 to vector<1x128xf32>
    %473 = arith.addf %472, %471 : vector<1x128xf32>
    %474 = arith.divf %472, %473 : vector<1x128xf32>
    %475 = vector.extract_strided_slice %458 {offsets = [0, 256], sizes = [1, 128], strides = [1, 1]} : vector<1x384xf32> to vector<1x128xf32>
    %476 = vector.extract_strided_slice %456 {offsets = [0, 256], sizes = [1, 128], strides = [1, 1]} : vector<1x384xf32> to vector<1x128xf32>
    %477 = arith.addf %476, %282 : vector<1x128xf32>
    %478 = arith.mulf %466, %477 : vector<1x128xf32>
    %479 = arith.addf %475, %478 : vector<1x128xf32>
    %480 = math.tanh %479 : vector<1x128xf32>
    %cst_121 = arith.constant 1.000000e+00 : f32
    %481 = vector.broadcast %cst_121 : f32 to vector<1x128xf32>
    %482 = arith.subf %481, %474 : vector<1x128xf32>
    %483 = arith.mulf %482, %480 : vector<1x128xf32>
    %484 = arith.mulf %474, %452 : vector<1x128xf32>
    %485 = arith.addf %483, %484 : vector<1x128xf32>
    %486 = arith.index_cast %c5_i32_116 : i32 to index
    %c0_122 = arith.constant 0 : index
    %487 = vector.load %arg6[%486, %c0_122] : memref<8x128xf32, #tpu.memory_space<vmem>>, vector<1x128xf32>
    tpu.vector_store %arg6[%486, %c0_122], %485 {strides = array<i32>} : memref<8x128xf32, #tpu.memory_space<vmem>>, vector<1x128xf32>,
    %c6_i32_123 = arith.constant 6 : i32
    %488 = arith.truncf %485 : vector<1x128xf32> to vector<1x128xbf16>
    %cst_124 = arith.constant dense<0.000000e+00> : vector<1x384xf32>
    %489 = tpu.matmul %488, %280, %cst_124 {dimension_numbers = #tpu.dot_dimension_numbers<[1], [0], [0], [1], [0, 0, 1, 1], [], []>} : vector<1x128xbf16>, vector<128x384xbf16>, vector<1x384xf32> -> vector<1x384xf32>
    %490 = arith.index_cast %c6_i32_123 : i32 to index
    %c0_125 = arith.constant 0 : index
    %491 = vector.load %arg9[%490, %c0_125] : memref<8x384xf32, #tpu.memory_space<vmem>>, vector<1x384xf32>
    %492 = vector.extract_strided_slice %491 {offsets = [0, 0], sizes = [1, 128], strides = [1, 1]} : vector<1x384xf32> to vector<1x128xf32>
    %493 = vector.extract_strided_slice %489 {offsets = [0, 0], sizes = [1, 128], strides = [1, 1]} : vector<1x384xf32> to vector<1x128xf32>
    %494 = arith.addf %492, %493 : vector<1x128xf32>
    %495 = arith.negf %494 : vector<1x128xf32>
    %496 = math.exp %495 : vector<1x128xf32>
    %cst_126 = arith.constant 1.000000e+00 : f32
    %497 = vector.broadcast %cst_126 : f32 to vector<1x128xf32>
    %498 = arith.addf %497, %496 : vector<1x128xf32>
    %499 = arith.divf %497, %498 : vector<1x128xf32>
    %500 = vector.extract_strided_slice %491 {offsets = [0, 128], sizes = [1, 128], strides = [1, 1]} : vector<1x384xf32> to vector<1x128xf32>
    %501 = vector.extract_strided_slice %489 {offsets = [0, 128], sizes = [1, 128], strides = [1, 1]} : vector<1x384xf32> to vector<1x128xf32>
    %502 = arith.addf %500, %501 : vector<1x128xf32>
    %503 = arith.negf %502 : vector<1x128xf32>
    %504 = math.exp %503 : vector<1x128xf32>
    %cst_127 = arith.constant 1.000000e+00 : f32
    %505 = vector.broadcast %cst_127 : f32 to vector<1x128xf32>
    %506 = arith.addf %505, %504 : vector<1x128xf32>
    %507 = arith.divf %505, %506 : vector<1x128xf32>
    %508 = vector.extract_strided_slice %491 {offsets = [0, 256], sizes = [1, 128], strides = [1, 1]} : vector<1x384xf32> to vector<1x128xf32>
    %509 = vector.extract_strided_slice %489 {offsets = [0, 256], sizes = [1, 128], strides = [1, 1]} : vector<1x384xf32> to vector<1x128xf32>
    %510 = arith.addf %509, %282 : vector<1x128xf32>
    %511 = arith.mulf %499, %510 : vector<1x128xf32>
    %512 = arith.addf %508, %511 : vector<1x128xf32>
    %513 = math.tanh %512 : vector<1x128xf32>
    %cst_128 = arith.constant 1.000000e+00 : f32
    %514 = vector.broadcast %cst_128 : f32 to vector<1x128xf32>
    %515 = arith.subf %514, %507 : vector<1x128xf32>
    %516 = arith.mulf %515, %513 : vector<1x128xf32>
    %517 = arith.mulf %507, %485 : vector<1x128xf32>
    %518 = arith.addf %516, %517 : vector<1x128xf32>
    %519 = arith.index_cast %c6_i32_123 : i32 to index
    %c0_129 = arith.constant 0 : index
    %520 = vector.load %arg6[%519, %c0_129] : memref<8x128xf32, #tpu.memory_space<vmem>>, vector<1x128xf32>
    tpu.vector_store %arg6[%519, %c0_129], %518 {strides = array<i32>} : memref<8x128xf32, #tpu.memory_space<vmem>>, vector<1x128xf32>,
    %c7_i32_130 = arith.constant 7 : i32
    %521 = arith.truncf %518 : vector<1x128xf32> to vector<1x128xbf16>
    %cst_131 = arith.constant dense<0.000000e+00> : vector<1x384xf32>
    %522 = tpu.matmul %521, %280, %cst_131 {dimension_numbers = #tpu.dot_dimension_numbers<[1], [0], [0], [1], [0, 0, 1, 1], [], []>} : vector<1x128xbf16>, vector<128x384xbf16>, vector<1x384xf32> -> vector<1x384xf32>
    %523 = arith.index_cast %c7_i32_130 : i32 to index
    %c0_132 = arith.constant 0 : index
    %524 = vector.load %arg9[%523, %c0_132] : memref<8x384xf32, #tpu.memory_space<vmem>>, vector<1x384xf32>
    %525 = vector.extract_strided_slice %524 {offsets = [0, 0], sizes = [1, 128], strides = [1, 1]} : vector<1x384xf32> to vector<1x128xf32>
    %526 = vector.extract_strided_slice %522 {offsets = [0, 0], sizes = [1, 128], strides = [1, 1]} : vector<1x384xf32> to vector<1x128xf32>
    %527 = arith.addf %525, %526 : vector<1x128xf32>
    %528 = arith.negf %527 : vector<1x128xf32>
    %529 = math.exp %528 : vector<1x128xf32>
    %cst_133 = arith.constant 1.000000e+00 : f32
    %530 = vector.broadcast %cst_133 : f32 to vector<1x128xf32>
    %531 = arith.addf %530, %529 : vector<1x128xf32>
    %532 = arith.divf %530, %531 : vector<1x128xf32>
    %533 = vector.extract_strided_slice %524 {offsets = [0, 128], sizes = [1, 128], strides = [1, 1]} : vector<1x384xf32> to vector<1x128xf32>
    %534 = vector.extract_strided_slice %522 {offsets = [0, 128], sizes = [1, 128], strides = [1, 1]} : vector<1x384xf32> to vector<1x128xf32>
    %535 = arith.addf %533, %534 : vector<1x128xf32>
    %536 = arith.negf %535 : vector<1x128xf32>
    %537 = math.exp %536 : vector<1x128xf32>
    %cst_134 = arith.constant 1.000000e+00 : f32
    %538 = vector.broadcast %cst_134 : f32 to vector<1x128xf32>
    %539 = arith.addf %538, %537 : vector<1x128xf32>
    %540 = arith.divf %538, %539 : vector<1x128xf32>
    %541 = vector.extract_strided_slice %524 {offsets = [0, 256], sizes = [1, 128], strides = [1, 1]} : vector<1x384xf32> to vector<1x128xf32>
    %542 = vector.extract_strided_slice %522 {offsets = [0, 256], sizes = [1, 128], strides = [1, 1]} : vector<1x384xf32> to vector<1x128xf32>
    %543 = arith.addf %542, %282 : vector<1x128xf32>
    %544 = arith.mulf %532, %543 : vector<1x128xf32>
    %545 = arith.addf %541, %544 : vector<1x128xf32>
    %546 = math.tanh %545 : vector<1x128xf32>
    %cst_135 = arith.constant 1.000000e+00 : f32
    %547 = vector.broadcast %cst_135 : f32 to vector<1x128xf32>
    %548 = arith.subf %547, %540 : vector<1x128xf32>
    %549 = arith.mulf %548, %546 : vector<1x128xf32>
    %550 = arith.mulf %540, %518 : vector<1x128xf32>
    %551 = arith.addf %549, %550 : vector<1x128xf32>
    %552 = arith.index_cast %c7_i32_130 : i32 to index
    %c0_136 = arith.constant 0 : index
    %553 = vector.load %arg6[%552, %c0_136] : memref<8x128xf32, #tpu.memory_space<vmem>>, vector<1x128xf32>
    tpu.vector_store %arg6[%552, %c0_136], %551 {strides = array<i32>} : memref<8x128xf32, #tpu.memory_space<vmem>>, vector<1x128xf32>,
    %c8_i32_137 = arith.constant 8 : i32
    %c1_138 = arith.constant 1 : index
    %c0_139 = arith.constant 0 : index
    %554 = vector.load %arg7[%c1_138, %c0_139] : memref<2x128xf32, #tpu.memory_space<vmem>>, vector<1x128xf32>
    tpu.vector_store %arg7[%c1_138, %c0_139], %551 {strides = array<i32>} : memref<2x128xf32, #tpu.memory_space<vmem>>, vector<1x128xf32>,
    return
  }
}

</mosaic_0001>

<llo_original>
// kernel: tpu_custom_call.1
$region0: #{tpu_custom_call.1}
  #allocation0 [shape = 'u32[]', space=smem, size = 0x4, offset = 0x4, fixed_abs, tag = 'smem constant byte address 0x4 - core index']
  #allocation1 [shape = 'u32[144,128]{1,0:T(1,128)}', space=vmem, size = 0x12000, scoped, tag = 'internal scratch']
  #allocation2 [shape = 'f32[8,128]{1,0:T(8,128)}', space=vmem, size = 0x1000, scoped, tag = 'scratch operand']
  #allocation3 [shape = 'f32[8,384]{1,0:T(8,128)}', space=vmem, size = 0x3000, scoped, tag = 'scratch operand']
  %s0 = inlined_call_operand.hbm [shape: bf16[8,128], index: 0, kind: input, shape index: {}]
  %s1 = inlined_call_operand.hbm [shape: bf16[2,128,384], index: 1, kind: input, shape index: {}]
  %s2 = inlined_call_operand.hbm [shape: bf16[2,128,384], index: 2, kind: input, shape index: {}]
  %s3 = inlined_call_operand.hbm [shape: f32[2,384], index: 3, kind: input, shape index: {}]
  %s4 = inlined_call_operand.vmem [shape: f32[2,128], index: 4, kind: input, shape index: {}]
  %s5 = inlined_call_operand.vmem [shape: f32[2,128], index: 5, kind: input, shape index: {}]
  %s6 = inlined_call_operand.hbm [shape: f32[8,128], index: 6, kind: output, shape index: {0}]
  %s7 = inlined_call_operand.hbm [shape: f32[2,128], index: 7, kind: output, shape index: {1}]
  %8 = xla_tuple %s6, %s7
  %s9 = sld [smem:[#allocation0]]
  $region58: #{tpu_custom_call.1} parent=0
    _
  %s11 = ssub.s32 1, %s9
  %s12 = scalar_select 0, %s11, %s9
  $region1: #{tpu_custom_call.1} parent=0
    #allocation4 [shape = 'u8[2048]{0}', space=vmem, size = 0x800, scoped, tag = 'input window, operand 0, single buffered']
    #allocation5 [shape = 's32[1]{0}', space=sflag, size = 0x4, scoped, tag = 'scoped memory for tpu_custom_call.1']
    #allocation6 [shape = 's32[1]{0}', space=sflag, size = 0x4, scoped, tag = 'scoped memory for tpu_custom_call.1']
    #allocation7 [shape = 'u8[196608]{0}', space=vmem, size = 0x30000, scoped, tag = 'input window, operand 1, single buffered']
    #allocation8 [shape = 's32[1]{0}', space=sflag, size = 0x4, scoped, tag = 'scoped memory for tpu_custom_call.1']
    #allocation9 [shape = 'u8[196608]{0}', space=vmem, size = 0x30000, scoped, tag = 'input window, operand 2, single buffered']
    #allocation10 [shape = 'u8[3072]{0}', space=vmem, size = 0xc00, scoped, tag = 'input window, operand 3, single buffered']
    #allocation11 [shape = 's32[1]{0}', space=sflag, size = 0x4, scoped, tag = 'scoped memory for tpu_custom_call.1']
    #allocation12 [shape = 'u8[4096]{0}', space=vmem, size = 0x1000, scoped, tag = 'output window, operand 0, single buffered']
    #allocation13 [shape = 'u8[1024]{0}', space=vmem, size = 0x400, scoped, tag = 'output window, operand 1, single buffered']
    #allocation14 [shape = 's32[1]{0}', space=sflag, size = 0x4, scoped, tag = 'scoped memory for tpu_custom_call.1']
    %13 = vsyncpa [#allocation5], 0
    %14 = vsyncpa [#allocation8], 0
    %15 = vsyncpa [#allocation11], 0
    %16 = vsyncpa [#allocation6], 0
    %17 = vsyncpa [#allocation14], 0
    // Predicated region
    $region2: #{tpu_custom_call.1} parent=1 // pred_check
      _
    $region3: #{tpu_custom_call.1} parent=1 // pred_check_branch
      %19 = sbr.rel (0) target = $region5
    $region4: #{tpu_custom_call.1} parent=1 // pred_region
      %s21 = ssub.s32 64, 64
      %22 = vsyncadd [#allocation5], %s21
      %s24 = sshll.u32 [#allocation4], 4
      %s25 = int_to_ptr.vmem [resolvable:$true] %s24
      %27 = dma.hbm_to_vmem [thread:$0]  %s0, 64, %s25, [#allocation5]
    $region5: #{tpu_custom_call.1} parent=1 // pred_fallthru
      _
    // Predicated region
    $region6: #{tpu_custom_call.1} parent=1 // pred_check
      _
    $region7: #{tpu_custom_call.1} parent=1 // pred_check_branch
      %29 = sbr.rel (0) target = $region9
    $region8: #{tpu_custom_call.1} parent=1 // pred_region
      %s31 = ssub.s32 6144, 6144
      %32 = vsyncadd [#allocation8], %s31
      %s33 = sshll.u32 [#allocation7], 4
      %s34 = int_to_ptr.vmem [resolvable:$true] %s33
      %39 = dma.hbm_to_vmem [thread:$0]  %s1, 6144, %s34, [#allocation8], 192, 192, 12
    $region9: #{tpu_custom_call.1} parent=1 // pred_fallthru
      _
    // Predicated region
    $region10: #{tpu_custom_call.1} parent=1 // pred_check
      _
    $region11: #{tpu_custom_call.1} parent=1 // pred_check_branch
      %41 = sbr.rel (0) target = $region13
    $region12: #{tpu_custom_call.1} parent=1 // pred_region
      %s43 = ssub.s32 6144, 6144
      %44 = vsyncadd [#allocation8], %s43
      %s45 = sshll.u32 [#allocation9], 4
      %s46 = int_to_ptr.vmem [resolvable:$true] %s45
      %51 = dma.hbm_to_vmem [thread:$0]  %s2, 6144, %s46, [#allocation8], 192, 192, 12
    $region13: #{tpu_custom_call.1} parent=1 // pred_fallthru
      _
    // Predicated region
    $region14: #{tpu_custom_call.1} parent=1 // pred_check
      _
    $region15: #{tpu_custom_call.1} parent=1 // pred_check_branch
      %53 = sbr.rel (0) target = $region17
    $region16: #{tpu_custom_call.1} parent=1 // pred_region
      %s55 = ssub.s32 96, 96
      %56 = vsyncadd [#allocation11], %s55
      %s58 = sshll.u32 [#allocation10], 4
      %s59 = int_to_ptr.vmem [resolvable:$true] %s58
      %61 = dma.hbm_to_vmem [thread:$0]  %s3, 96, %s59, [#allocation11]
    $region17: #{tpu_custom_call.1} parent=1 // pred_fallthru
      _
    // Predicated region
    $region18: #{tpu_custom_call.1} parent=1 // pred_check
      _
    $region19: #{tpu_custom_call.1} parent=1 // pred_check_branch
      %63 = sbr.rel (0) target = $region21
    $region20: #{tpu_custom_call.1} parent=1 // pred_region
      _
    $region21: #{tpu_custom_call.1} parent=1 // pred_fallthru
      _
    // Predicated region
    $region22: #{tpu_custom_call.1} parent=1 // pred_check
      _
    $region23: #{tpu_custom_call.1} parent=1 // pred_check_branch
      %65 = sbr.rel (0) target = $region25
    $region24: #{tpu_custom_call.1} parent=1 // pred_region
      _
    $region25: #{tpu_custom_call.1} parent=1 // pred_fallthru
      _
    // Predicated region
    $region26: #{tpu_custom_call.1} parent=1 // pred_check
      _
    $region27: #{tpu_custom_call.1} parent=1 // pred_check_branch
      %67 = sbr.rel (0) target = $region29
    $region28: #{tpu_custom_call.1} parent=1 // pred_region
      %68 = dma.done [#allocation5], 64
    $region29: #{tpu_custom_call.1} parent=1 // pred_fallthru
      _
    // Predicated region
    $region30: #{tpu_custom_call.1} parent=1 // pred_check
      _
    $region31: #{tpu_custom_call.1} parent=1 // pred_check_branch
      %70 = sbr.rel (0) target = $region33
    $region32: #{tpu_custom_call.1} parent=1 // pred_region
      %71 = dma.done [#allocation8], 6144
    $region33: #{tpu_custom_call.1} parent=1 // pred_fallthru
      _
    // Predicated region
    $region34: #{tpu_custom_call.1} parent=1 // pred_check
      _
    $region35: #{tpu_custom_call.1} parent=1 // pred_check_branch
      %73 = sbr.rel (0) target = $region37
    $region36: #{tpu_custom_call.1} parent=1 // pred_region
      %74 = dma.done [#allocation8], 6144
    $region37: #{tpu_custom_call.1} parent=1 // pred_fallthru
      _
    // Predicated region
    $region38: #{tpu_custom_call.1} parent=1 // pred_check
      _
    $region39: #{tpu_custom_call.1} parent=1 // pred_check_branch
      %76 = sbr.rel (0) target = $region41
    $region40: #{tpu_custom_call.1} parent=1 // pred_region
      %77 = dma.done [#allocation11], 96
    $region41: #{tpu_custom_call.1} parent=1 // pred_fallthru
      _
    %v79 = vld [vmem:[#allocation7] sm:$0xff]
    %v80 = vld [vmem:[#allocation7 + $0x8] sm:$0xf]
    %v81 = vld [vmem:[#allocation7 + $0xc] sm:$0xff]
    %v82 = vld [vmem:[#allocation7 + $0x14] sm:$0xf]
    %v83 = vld [vmem:[#allocation7 + $0x18] sm:$0xff]
    %v84 = vld [vmem:[#allocation7 + $0x20] sm:$0xf]
    %v85 = vld [vmem:[#allocation7 + $0x24] sm:$0xff]
    %v86 = vld [vmem:[#allocation7 + $0x2c] sm:$0xf]
    %v87 = vld [vmem:[#allocation7 + $0x30] sm:$0xff]
    %v88 = vld [vmem:[#allocation7 + $0x38] sm:$0xf]
    %v89 = vld [vmem:[#allocation7 + $0x3c] sm:$0xff]
    %v90 = vld [vmem:[#allocation7 + $0x44] sm:$0xf]
    %v91 = vld [vmem:[#allocation7 + $0x48] sm:$0xff]
    %v92 = vld [vmem:[#allocation7 + $0x50] sm:$0xf]
    %v93 = vld [vmem:[#allocation7 + $0x54] sm:$0xff]
    %v94 = vld [vmem:[#allocation7 + $0x5c] sm:$0xf]
    %v95 = vld [vmem:[#allocation7 + $0x60] sm:$0xff]
    %v96 = vld [vmem:[#allocation7 + $0x68] sm:$0xf]
    %v97 = vld [vmem:[#allocation7 + $0x6c] sm:$0xff]
    %v98 = vld [vmem:[#allocation7 + $0x74] sm:$0xf]
    %v99 = vld [vmem:[#allocation7 + $0x78] sm:$0xff]
    %v100 = vld [vmem:[#allocation7 + $0x80] sm:$0xf]
    %v101 = vld [vmem:[#allocation7 + $0x84] sm:$0xff]
    %v102 = vld [vmem:[#allocation7 + $0x8c] sm:$0xf]
    %v103 = vld [vmem:[#allocation7 + $0x90] sm:$0xff]
    %v104 = vld [vmem:[#allocation7 + $0x98] sm:$0xf]
    %v105 = vld [vmem:[#allocation7 + $0x9c] sm:$0xff]
    %v106 = vld [vmem:[#allocation7 + $0xa4] sm:$0xf]
    %v107 = vld [vmem:[#allocation7 + $0xa8] sm:$0xff]
    %v108 = vld [vmem:[#allocation7 + $0xb0] sm:$0xf]
    %v109 = vld [vmem:[#allocation7 + $0xb4] sm:$0xff]
    %v110 = vld [vmem:[#allocation7 + $0xbc] sm:$0xf]
    %v111 = vld [vmem:[#allocation9] sm:$0xff]
    %v112 = vld [vmem:[#allocation9 + $0x8] sm:$0xf]
    %v113 = vld [vmem:[#allocation9 + $0xc] sm:$0xff]
    %v114 = vld [vmem:[#allocation9 + $0x14] sm:$0xf]
    %v115 = vld [vmem:[#allocation9 + $0x18] sm:$0xff]
    %v116 = vld [vmem:[#allocation9 + $0x20] sm:$0xf]
    %v117 = vld [vmem:[#allocation9 + $0x24] sm:$0xff]
    %v118 = vld [vmem:[#allocation9 + $0x2c] sm:$0xf]
    %v119 = vld [vmem:[#allocation9 + $0x30] sm:$0xff]
    %v120 = vld [vmem:[#allocation9 + $0x38] sm:$0xf]
    %v121 = vld [vmem:[#allocation9 + $0x3c] sm:$0xff]
    %v122 = vld [vmem:[#allocation9 + $0x44] sm:$0xf]
    %v123 = vld [vmem:[#allocation9 + $0x48] sm:$0xff]
    %v124 = vld [vmem:[#allocation9 + $0x50] sm:$0xf]
    %v125 = vld [vmem:[#allocation9 + $0x54] sm:$0xff]
    %v126 = vld [vmem:[#allocation9 + $0x5c] sm:$0xf]
    %v127 = vld [vmem:[#allocation9 + $0x60] sm:$0xff]
    %v128 = vld [vmem:[#allocation9 + $0x68] sm:$0xf]
    %v129 = vld [vmem:[#allocation9 + $0x6c] sm:$0xff]
    %v130 = vld [vmem:[#allocation9 + $0x74] sm:$0xf]
    %v131 = vld [vmem:[#allocation9 + $0x78] sm:$0xff]
    %v132 = vld [vmem:[#allocation9 + $0x80] sm:$0xf]
    %v133 = vld [vmem:[#allocation9 + $0x84] sm:$0xff]
    %v134 = vld [vmem:[#allocation9 + $0x8c] sm:$0xf]
    %v135 = vld [vmem:[#allocation9 + $0x90] sm:$0xff]
    %v136 = vld [vmem:[#allocation9 + $0x98] sm:$0xf]
    %v137 = vld [vmem:[#allocation9 + $0x9c] sm:$0xff]
    %v138 = vld [vmem:[#allocation9 + $0xa4] sm:$0xf]
    %v139 = vld [vmem:[#allocation9 + $0xa8] sm:$0xff]
    %v140 = vld [vmem:[#allocation9 + $0xb0] sm:$0xf]
    %v141 = vld [vmem:[#allocation9 + $0xb4] sm:$0xff]
    %v142 = vld [vmem:[#allocation9 + $0xbc] sm:$0xf]
    %v143 = vld [vmem:[#allocation10] ss:$2 sm:$0x7]
    %v144 = vld [vmem:[%s4] sm:$0x1]
    %v145 = vld [vmem:[#allocation4] sm:$0xf]
    %v147 = vlaneseq
    %v148 = vshrl.u32 %v147, 7
    %v149 = vsub.s32 0, %v148
    %v150 = vrot.slane %v143, %v149
    %v151 = vlaneseq
    %v152 = vshrl.u32 %v151, 7
    %v153 = vsub.s32 1, %v152
    %v154 = vrot.slane %v143, %v153
    %v155 = vlaneseq
    %v156 = vshrl.u32 %v155, 7
    %v157 = vsub.s32 2, %v156
    %v158 = vrot.slane %v143, %v157
    %v194 = vunpack.c.l.b16 %v79
    %v195 = vunpack.c.h.b16 %v79
    %v196 = vunpack.c.l.b16 %v80
    %v197 = vunpack.c.l.b16 %v81
    %v198 = vunpack.c.h.b16 %v81
    %v199 = vunpack.c.l.b16 %v82
    %v200 = vunpack.c.l.b16 %v83
    %v201 = vunpack.c.h.b16 %v83
    %v202 = vunpack.c.l.b16 %v84
    %v203 = vunpack.c.l.b16 %v85
    %v204 = vunpack.c.h.b16 %v85
    %v205 = vunpack.c.l.b16 %v86
    %v206 = vunpack.c.l.b16 %v87
    %v207 = vunpack.c.h.b16 %v87
    %v208 = vunpack.c.l.b16 %v88
    %v209 = vunpack.c.l.b16 %v89
    %v210 = vunpack.c.h.b16 %v89
    %v211 = vunpack.c.l.b16 %v90
    %v212 = vunpack.c.l.b16 %v91
    %v213 = vunpack.c.h.b16 %v91
    %v214 = vunpack.c.l.b16 %v92
    %v215 = vunpack.c.l.b16 %v93
    %v216 = vunpack.c.h.b16 %v93
    %v217 = vunpack.c.l.b16 %v94
    %v218 = vunpack.c.l.b16 %v95
    %v219 = vunpack.c.h.b16 %v95
    %v220 = vunpack.c.l.b16 %v96
    %v221 = vunpack.c.l.b16 %v97
    %v222 = vunpack.c.h.b16 %v97
    %v223 = vunpack.c.l.b16 %v98
    %v224 = vunpack.c.l.b16 %v99
    %v225 = vunpack.c.h.b16 %v99
    %v226 = vunpack.c.l.b16 %v100
    %v227 = vunpack.c.l.b16 %v101
    %v228 = vunpack.c.h.b16 %v101
    %v229 = vunpack.c.l.b16 %v102
    %v230 = vunpack.c.l.b16 %v103
    %v231 = vunpack.c.h.b16 %v103
    %v232 = vunpack.c.l.b16 %v104
    %v233 = vunpack.c.l.b16 %v105
    %v234 = vunpack.c.h.b16 %v105
    %v235 = vunpack.c.l.b16 %v106
    %v236 = vunpack.c.l.b16 %v107
    %v237 = vunpack.c.h.b16 %v107
    %v238 = vunpack.c.l.b16 %v108
    %v239 = vunpack.c.l.b16 %v109
    %v240 = vunpack.c.h.b16 %v109
    %v241 = vunpack.c.l.b16 %v110
    %v242 = vpack.c.b16 %v197, %v194
    %v243 = vpack.c.b16 %v198, %v195
    %v244 = vpack.c.b16 %v199, %v196
    %v245 = vpack.c.b16 %v203, %v200
    %v246 = vpack.c.b16 %v204, %v201
    %v247 = vpack.c.b16 %v205, %v202
    %v248 = vpack.c.b16 %v209, %v206
    %v249 = vpack.c.b16 %v210, %v207
    %v250 = vpack.c.b16 %v211, %v208
    %v251 = vpack.c.b16 %v215, %v212
    %v252 = vpack.c.b16 %v216, %v213
    %v253 = vpack.c.b16 %v217, %v214
    %v254 = vpack.c.b16 %v221, %v218
    %v255 = vpack.c.b16 %v222, %v219
    %v256 = vpack.c.b16 %v223, %v220
    %v257 = vpack.c.b16 %v227, %v224
    %v258 = vpack.c.b16 %v228, %v225
    %v259 = vpack.c.b16 %v229, %v226
    %v260 = vpack.c.b16 %v233, %v230
    %v261 = vpack.c.b16 %v234, %v231
    %v262 = vpack.c.b16 %v235, %v232
    %v263 = vpack.c.b16 %v239, %v236
    %v264 = vpack.c.b16 %v240, %v237
    %v265 = vpack.c.b16 %v241, %v238
    %290 = vmatprep.subr.bf16.mxu0 %v264
    %291 = vmatpush1.bf16.msra.mxu0 %v263
    %292 = vmatprep.subr.bf16.mxu0 %v261
    %293 = vmatpush1.bf16.msra.mxu0 %v260
    %294 = vmatprep.subr.bf16.mxu0 %v258
    %295 = vmatpush1.bf16.msra.mxu0 %v257
    %296 = vmatprep.subr.bf16.mxu0 %v255
    %297 = vmatpush1.bf16.msra.mxu0 %v254
    %298 = vmatprep.subr.bf16.mxu0 %v252
    %299 = vmatpush1.bf16.msra.mxu0 %v251
    %300 = vmatprep.subr.bf16.mxu0 %v249
    %301 = vmatpush1.bf16.msra.mxu0 %v248
    %302 = vmatprep.subr.bf16.mxu0 %v246
    %303 = vmatpush1.bf16.msra.mxu0 %v245
    %304 = vmatprep.subr.bf16.mxu0 %v243
    %305 = vmatpush1.bf16.msra.mxu0 %v242
    %306 = vmatprep.subr.bf16.mxu0 0
    %307 = vmatpush2.bf16.msra.mxu0 0
    %308 = vmatprep.subr.bf16.mxu0 0
    %309 = vmatpush2.bf16.msra.mxu0 0
    %310 = vmatprep.subr.bf16.mxu0 0
    %311 = vmatpush2.bf16.msra.mxu0 0
    %312 = vmatprep.subr.bf16.mxu0 0
    %313 = vmatpush2.bf16.msra.mxu0 0
    %314 = vmatprep.subr.bf16.mxu0 0
    %315 = vmatpush2.bf16.msra.mxu0 0
    %316 = vmatprep.subr.bf16.mxu0 0
    %317 = vmatpush2.bf16.msra.mxu0 0
    %318 = vmatprep.subr.bf16.mxu0 0
    %319 = vmatpush2.bf16.msra.mxu0 0
    %320 = vmatprep.subr.bf16.mxu0 0
    %321 = vmatpush2.bf16.msra.mxu0 0
    %322 = vmatprep.mubr.bf16.mxu0 0
    %323 = vmatmul.mubr.bf16.gmra.mxu0 %v145
    %v324 = vpop.f32.mrf.mxu0
    %v325 = vadd.f32 %v150, %v324
    %v326 = vpop.f32.mrf.mxu0
    %v327 = vadd.f32 %v154, %v326
    %v328 = vpop.f32.mrf.mxu0
    %v329 = vpop.f32.mrf.mxu0
    %330 = vdwg.mxu0
    %331 = vmatprep.subr.bf16.mxu0 0
    %332 = vmatpush1.bf16.msra.mxu0 %v265
    %333 = vmatprep.subr.bf16.mxu0 0
    %334 = vmatpush1.bf16.msra.mxu0 %v262
    %335 = vmatprep.subr.bf16.mxu0 0
    %336 = vmatpush1.bf16.msra.mxu0 %v259
    %337 = vmatprep.subr.bf16.mxu0 0
    %338 = vmatpush1.bf16.msra.mxu0 %v256
    %339 = vmatprep.subr.bf16.mxu0 0
    %340 = vmatpush1.bf16.msra.mxu0 %v253
    %341 = vmatprep.subr.bf16.mxu0 0
    %342 = vmatpush1.bf16.msra.mxu0 %v250
    %343 = vmatprep.subr.bf16.mxu0 0
    %344 = vmatpush1.bf16.msra.mxu0 %v247
    %345 = vmatprep.subr.bf16.mxu0 0
    %346 = vmatpush1.bf16.msra.mxu0 %v244
    %347 = vmatprep.subr.bf16.mxu0 0
    %348 = vmatpush2.bf16.msra.mxu0 0
    %349 = vmatprep.subr.bf16.mxu0 0
    %350 = vmatpush2.bf16.msra.mxu0 0
    %351 = vmatprep.subr.bf16.mxu0 0
    %352 = vmatpush2.bf16.msra.mxu0 0
    %353 = vmatprep.subr.bf16.mxu0 0
    %354 = vmatpush2.bf16.msra.mxu0 0
    %355 = vmatprep.subr.bf16.mxu0 0
    %356 = vmatpush2.bf16.msra.mxu0 0
    %357 = vmatprep.subr.bf16.mxu0 0
    %358 = vmatpush2.bf16.msra.mxu0 0
    %359 = vmatprep.subr.bf16.mxu0 0
    %360 = vmatpush2.bf16.msra.mxu0 0
    %361 = vmatprep.subr.bf16.mxu0 0
    %362 = vmatpush2.bf16.msra.mxu0 0
    %363 = vmatprep.mubr.bf16.mxu0 0
    %364 = vmatmul.mubr.bf16.gmra.mxu0 %v145
    %v365 = vpop.f32.mrf.mxu0
    %v366 = vadd.f32 %v158, %v365
    %v367 = vpop.f32.mrf.mxu0
    %v368 = vpop.f32.mrf.mxu0
    %v369 = vpop.f32.mrf.mxu0
    %370 = vdwg.mxu0
    %371 = vst [vmem:[#allocation3] sm:$0xff] %v325
    %372 = vst [vmem:[#allocation3 + $0x8] sm:$0xff] %v327
    %373 = vst [vmem:[#allocation3 + $0x10] sm:$0xff] %v366
    %v374 = vld [vmem:[%s5] sm:$0x1]
    %v375 = vpack.c.bf16 %v374, %v374
    %v408 = vunpack.c.l.b16 %v111
    %v409 = vunpack.c.h.b16 %v111
    %v410 = vunpack.c.l.b16 %v112
    %v411 = vunpack.c.l.b16 %v113
    %v412 = vunpack.c.h.b16 %v113
    %v413 = vunpack.c.l.b16 %v114
    %v414 = vunpack.c.l.b16 %v115
    %v415 = vunpack.c.h.b16 %v115
    %v416 = vunpack.c.l.b16 %v116
    %v417 = vunpack.c.l.b16 %v117
    %v418 = vunpack.c.h.b16 %v117
    %v419 = vunpack.c.l.b16 %v118
    %v420 = vunpack.c.l.b16 %v119
    %v421 = vunpack.c.h.b16 %v119
    %v422 = vunpack.c.l.b16 %v120
    %v423 = vunpack.c.l.b16 %v121
    %v424 = vunpack.c.h.b16 %v121
    %v425 = vunpack.c.l.b16 %v122
    %v426 = vunpack.c.l.b16 %v123
    %v427 = vunpack.c.h.b16 %v123
    %v428 = vunpack.c.l.b16 %v124
    %v429 = vunpack.c.l.b16 %v125
    %v430 = vunpack.c.h.b16 %v125
    %v431 = vunpack.c.l.b16 %v126
    %v432 = vunpack.c.l.b16 %v127
    %v433 = vunpack.c.h.b16 %v127
    %v434 = vunpack.c.l.b16 %v128
    %v435 = vunpack.c.l.b16 %v129
    %v436 = vunpack.c.h.b16 %v129
    %v437 = vunpack.c.l.b16 %v130
    %v438 = vunpack.c.l.b16 %v131
    %v439 = vunpack.c.h.b16 %v131
    %v440 = vunpack.c.l.b16 %v132
    %v441 = vunpack.c.l.b16 %v133
    %v442 = vunpack.c.h.b16 %v133
    %v443 = vunpack.c.l.b16 %v134
    %v444 = vunpack.c.l.b16 %v135
    %v445 = vunpack.c.h.b16 %v135
    %v446 = vunpack.c.l.b16 %v136
    %v447 = vunpack.c.l.b16 %v137
    %v448 = vunpack.c.h.b16 %v137
    %v449 = vunpack.c.l.b16 %v138
    %v450 = vunpack.c.l.b16 %v139
    %v451 = vunpack.c.h.b16 %v139
    %v452 = vunpack.c.l.b16 %v140
    %v453 = vunpack.c.l.b16 %v141
    %v454 = vunpack.c.h.b16 %v141
    %v455 = vunpack.c.l.b16 %v142
    %v456 = vpack.c.b16 %v411, %v408
    %v457 = vpack.c.b16 %v412, %v409
    %v458 = vpack.c.b16 %v413, %v410
    %v459 = vpack.c.b16 %v417, %v414
    %v460 = vpack.c.b16 %v418, %v415
    %v461 = vpack.c.b16 %v419, %v416
    %v462 = vpack.c.b16 %v423, %v420
    %v463 = vpack.c.b16 %v424, %v421
    %v464 = vpack.c.b16 %v425, %v422
    %v465 = vpack.c.b16 %v429, %v426
    %v466 = vpack.c.b16 %v430, %v427
    %v467 = vpack.c.b16 %v431, %v428
    %v468 = vpack.c.b16 %v435, %v432
    %v469 = vpack.c.b16 %v436, %v433
    %v470 = vpack.c.b16 %v437, %v434
    %v471 = vpack.c.b16 %v441, %v438
    %v472 = vpack.c.b16 %v442, %v439
    %v473 = vpack.c.b16 %v443, %v440
    %v474 = vpack.c.b16 %v447, %v444
    %v475 = vpack.c.b16 %v448, %v445
    %v476 = vpack.c.b16 %v449, %v446
    %v477 = vpack.c.b16 %v453, %v450
    %v478 = vpack.c.b16 %v454, %v451
    %v479 = vpack.c.b16 %v455, %v452
    %504 = vmatprep.subr.bf16.mxu0 %v478
    %505 = vmatpush1.bf16.msra.mxu0 %v477
    %506 = vmatprep.subr.bf16.mxu0 %v475
    %507 = vmatpush1.bf16.msra.mxu0 %v474
    %508 = vmatprep.subr.bf16.mxu0 %v472
    %509 = vmatpush1.bf16.msra.mxu0 %v471
    %510 = vmatprep.subr.bf16.mxu0 %v469
    %511 = vmatpush1.bf16.msra.mxu0 %v468
    %512 = vmatprep.subr.bf16.mxu0 %v466
    %513 = vmatpush1.bf16.msra.mxu0 %v465
    %514 = vmatprep.subr.bf16.mxu0 %v463
    %515 = vmatpush1.bf16.msra.mxu0 %v462
    %516 = vmatprep.subr.bf16.mxu0 %v460
    %517 = vmatpush1.bf16.msra.mxu0 %v459
    %518 = vmatprep.subr.bf16.mxu0 %v457
    %519 = vmatpush1.bf16.msra.mxu0 %v456
    %520 = vmatprep.subr.bf16.mxu0 0
    %521 = vmatpush2.bf16.msra.mxu0 0
    %522 = vmatprep.subr.bf16.mxu0 0
    %523 = vmatpush2.bf16.msra.mxu0 0
    %524 = vmatprep.subr.bf16.mxu0 0
    %525 = vmatpush2.bf16.msra.mxu0 0
    %526 = vmatprep.subr.bf16.mxu0 0
    %527 = vmatpush2.bf16.msra.mxu0 0
    %528 = vmatprep.subr.bf16.mxu0 0
    %529 = vmatpush2.bf16.msra.mxu0 0
    %530 = vmatprep.subr.bf16.mxu0 0
    %531 = vmatpush2.bf16.msra.mxu0 0
    %532 = vmatprep.subr.bf16.mxu0 0
    %533 = vmatpush2.bf16.msra.mxu0 0
    %534 = vmatprep.subr.bf16.mxu0 0
    %535 = vmatpush2.bf16.msra.mxu0 0
    %536 = vmatprep.mubr.bf16.mxu0 0
    %537 = vmatmul.mubr.bf16.gmra.mxu0 %v375
    %v538 = vpop.f32.mrf.mxu0
    %v539 = vadd.f32 0.0, %v538
    %v540 = vpop.f32.mrf.mxu0
    %v541 = vadd.f32 0.0, %v540
    %v542 = vpop.f32.mrf.mxu0
    %v543 = vpop.f32.mrf.mxu0
    %544 = vdwg.mxu0
    %545 = vmatprep.subr.bf16.mxu0 0
    %546 = vmatpush1.bf16.msra.mxu0 %v479
    %547 = vmatprep.subr.bf16.mxu0 0
    %548 = vmatpush1.bf16.msra.mxu0 %v476
    %549 = vmatprep.subr.bf16.mxu0 0
    %550 = vmatpush1.bf16.msra.mxu0 %v473
    %551 = vmatprep.subr.bf16.mxu0 0
    %552 = vmatpush1.bf16.msra.mxu0 %v470
    %553 = vmatprep.subr.bf16.mxu0 0
    %554 = vmatpush1.bf16.msra.mxu0 %v467
    %555 = vmatprep.subr.bf16.mxu0 0
    %556 = vmatpush1.bf16.msra.mxu0 %v464
    %557 = vmatprep.subr.bf16.mxu0 0
    %558 = vmatpush1.bf16.msra.mxu0 %v461
    %559 = vmatprep.subr.bf16.mxu0 0
    %560 = vmatpush1.bf16.msra.mxu0 %v458
    %561 = vmatprep.subr.bf16.mxu0 0
    %562 = vmatpush2.bf16.msra.mxu0 0
    %563 = vmatprep.subr.bf16.mxu0 0
    %564 = vmatpush2.bf16.msra.mxu0 0
    %565 = vmatprep.subr.bf16.mxu0 0
    %566 = vmatpush2.bf16.msra.mxu0 0
    %567 = vmatprep.subr.bf16.mxu0 0
    %568 = vmatpush2.bf16.msra.mxu0 0
    %569 = vmatprep.subr.bf16.mxu0 0
    %570 = vmatpush2.bf16.msra.mxu0 0
    %571 = vmatprep.subr.bf16.mxu0 0
    %572 = vmatpush2.bf16.msra.mxu0 0
    %573 = vmatprep.subr.bf16.mxu0 0
    %574 = vmatpush2.bf16.msra.mxu0 0
    %575 = vmatprep.subr.bf16.mxu0 0
    %576 = vmatpush2.bf16.msra.mxu0 0
    %577 = vmatprep.mubr.bf16.mxu0 0
    %578 = vmatmul.mubr.bf16.gmra.mxu0 %v375
    %v579 = vpop.f32.mrf.mxu0
    %v580 = vadd.f32 0.0, %v579
    %v581 = vpop.f32.mrf.mxu0
    %v582 = vpop.f32.mrf.mxu0
    %v583 = vpop.f32.mrf.mxu0
    %584 = vdwg.mxu0
    %v585 = vld [vmem:[#allocation3] ss:$8 sm:$0x7]
    %v586 = vadd.f32 %v585, %v539
    %v587 = vxor.u32 %v586, 2147483648
    %v588 = vmul.f32 %v587, 1.442695
    %v589 = vpow.pop %v588
    %v590 = vadd.f32 %v589, 1.0
    %v591 = vrcp.pop %v590
    %v592 = vmul.f32 1.0, %v591
    %v594 = vrot.slane %v585, 1
    %v596 = vadd.f32 %v594, %v541
    %v597 = vxor.u32 %v596, 2147483648
    %v598 = vmul.f32 %v597, 1.442695
    %v599 = vpow.pop %v598
    %v600 = vadd.f32 %v599, 1.0
    %v601 = vrcp.pop %v600
    %v602 = vmul.f32 1.0, %v601
    %v603 = vadd.f32 %v580, %v144
    %v604 = vmul.f32 %v592, %v603
    %v605 = vrot.slane %v585, 2
    %v607 = vadd.f32 %v605, %v604
    %v608 = vtanh.pop %v607
    %v609 = vsub.f32 1.0, %v602
    %v610 = vmul.f32 %v609, %v608
    %v611 = vmul.f32 %v602, %v374
    %v612 = vadd.f32 %v610, %v611
    %613 = vst [vmem:[#allocation2] sm:$0x1] %v612
    %v614 = vpack.c.bf16 %v612, %v612
    %615 = vmatprep.subr.bf16.mxu0 %v478
    %616 = vmatpush1.bf16.msra.mxu0 %v477
    %617 = vmatprep.subr.bf16.mxu0 %v475
    %618 = vmatpush1.bf16.msra.mxu0 %v474
    %619 = vmatprep.subr.bf16.mxu0 %v472
    %620 = vmatpush1.bf16.msra.mxu0 %v471
    %621 = vmatprep.subr.bf16.mxu0 %v469
    %622 = vmatpush1.bf16.msra.mxu0 %v468
    %623 = vmatprep.subr.bf16.mxu0 %v466
    %624 = vmatpush1.bf16.msra.mxu0 %v465
    %625 = vmatprep.subr.bf16.mxu0 %v463
    %626 = vmatpush1.bf16.msra.mxu0 %v462
    %627 = vmatprep.subr.bf16.mxu0 %v460
    %628 = vmatpush1.bf16.msra.mxu0 %v459
    %629 = vmatprep.subr.bf16.mxu0 %v457
    %630 = vmatpush1.bf16.msra.mxu0 %v456
    %631 = vmatprep.subr.bf16.mxu0 0
    %632 = vmatpush2.bf16.msra.mxu0 0
    %633 = vmatprep.subr.bf16.mxu0 0
    %634 = vmatpush2.bf16.msra.mxu0 0
    %635 = vmatprep.subr.bf16.mxu0 0
    %636 = vmatpush2.bf16.msra.mxu0 0
    %637 = vmatprep.subr.bf16.mxu0 0
    %638 = vmatpush2.bf16.msra.mxu0 0
    %639 = vmatprep.subr.bf16.mxu0 0
    %640 = vmatpush2.bf16.msra.mxu0 0
    %641 = vmatprep.subr.bf16.mxu0 0
    %642 = vmatpush2.bf16.msra.mxu0 0
    %643 = vmatprep.subr.bf16.mxu0 0
    %644 = vmatpush2.bf16.msra.mxu0 0
    %645 = vmatprep.subr.bf16.mxu0 0
    %646 = vmatpush2.bf16.msra.mxu0 0
    %647 = vmatprep.mubr.bf16.mxu0 0
    %648 = vmatmul.mubr.bf16.gmra.mxu0 %v614
    %v649 = vpop.f32.mrf.mxu0
    %v650 = vadd.f32 0.0, %v649
    %v651 = vpop.f32.mrf.mxu0
    %v652 = vadd.f32 0.0, %v651
    %v653 = vpop.f32.mrf.mxu0
    %v654 = vpop.f32.mrf.mxu0
    %655 = vdwg.mxu0
    %656 = vmatprep.subr.bf16.mxu0 0
    %657 = vmatpush1.bf16.msra.mxu0 %v479
    %658 = vmatprep.subr.bf16.mxu0 0
    %659 = vmatpush1.bf16.msra.mxu0 %v476
    %660 = vmatprep.subr.bf16.mxu0 0
    %661 = vmatpush1.bf16.msra.mxu0 %v473
    %662 = vmatprep.subr.bf16.mxu0 0
    %663 = vmatpush1.bf16.msra.mxu0 %v470
    %664 = vmatprep.subr.bf16.mxu0 0
    %665 = vmatpush1.bf16.msra.mxu0 %v467
    %666 = vmatprep.subr.bf16.mxu0 0
    %667 = vmatpush1.bf16.msra.mxu0 %v464
    %668 = vmatprep.subr.bf16.mxu0 0
    %669 = vmatpush1.bf16.msra.mxu0 %v461
    %670 = vmatprep.subr.bf16.mxu0 0
    %671 = vmatpush1.bf16.msra.mxu0 %v458
    %672 = vmatprep.subr.bf16.mxu0 0
    %673 = vmatpush2.bf16.msra.mxu0 0
    %674 = vmatprep.subr.bf16.mxu0 0
    %675 = vmatpush2.bf16.msra.mxu0 0
    %676 = vmatprep.subr.bf16.mxu0 0
    %677 = vmatpush2.bf16.msra.mxu0 0
    %678 = vmatprep.subr.bf16.mxu0 0
    %679 = vmatpush2.bf16.msra.mxu0 0
    %680 = vmatprep.subr.bf16.mxu0 0
    %681 = vmatpush2.bf16.msra.mxu0 0
    %682 = vmatprep.subr.bf16.mxu0 0
    %683 = vmatpush2.bf16.msra.mxu0 0
    %684 = vmatprep.subr.bf16.mxu0 0
    %685 = vmatpush2.bf16.msra.mxu0 0
    %686 = vmatprep.subr.bf16.mxu0 0
    %687 = vmatpush2.bf16.msra.mxu0 0
    %688 = vmatprep.mubr.bf16.mxu0 0
    %689 = vmatmul.mubr.bf16.gmra.mxu0 %v614
    %v690 = vpop.f32.mrf.mxu0
    %v691 = vadd.f32 0.0, %v690
    %v692 = vpop.f32.mrf.mxu0
    %v693 = vpop.f32.mrf.mxu0
    %v694 = vpop.f32.mrf.mxu0
    %695 = vdwg.mxu0
    %s696 = scalar_lea.vmem [#allocation3], 1
    %v697 = vld [vmem:[%s696] ss:$8 sm:$0x7]
    %v698 = vadd.f32 %v697, %v650
    %v699 = vxor.u32 %v698, 2147483648
    %v700 = vmul.f32 %v699, 1.442695
    %v701 = vpow.pop %v700
    %v702 = vadd.f32 %v701, 1.0
    %v703 = vrcp.pop %v702
    %v704 = vmul.f32 1.0, %v703
    %v706 = vrot.slane %v697, 1
    %v708 = vadd.f32 %v706, %v652
    %v709 = vxor.u32 %v708, 2147483648
    %v710 = vmul.f32 %v709, 1.442695
    %v711 = vpow.pop %v710
    %v712 = vadd.f32 %v711, 1.0
    %v713 = vrcp.pop %v712
    %v714 = vmul.f32 1.0, %v713
    %v715 = vadd.f32 %v691, %v144
    %v716 = vmul.f32 %v704, %v715
    %v717 = vrot.slane %v697, 2
    %v719 = vadd.f32 %v717, %v716
    %v720 = vtanh.pop %v719
    %v721 = vsub.f32 1.0, %v714
    %v722 = vmul.f32 %v721, %v720
    %v723 = vmul.f32 %v714, %v612
    %v724 = vadd.f32 %v722, %v723
    %725 = vst [vmem:[#allocation2 + $0x1] sm:$0x1] %v724
    %v726 = vpack.c.bf16 %v724, %v724
    %727 = vmatprep.subr.bf16.mxu0 %v478
    %728 = vmatpush1.bf16.msra.mxu0 %v477
    %729 = vmatprep.subr.bf16.mxu0 %v475
    %730 = vmatpush1.bf16.msra.mxu0 %v474
    %731 = vmatprep.subr.bf16.mxu0 %v472
    %732 = vmatpush1.bf16.msra.mxu0 %v471
    %733 = vmatprep.subr.bf16.mxu0 %v469
    %734 = vmatpush1.bf16.msra.mxu0 %v468
    %735 = vmatprep.subr.bf16.mxu0 %v466
    %736 = vmatpush1.bf16.msra.mxu0 %v465
    %737 = vmatprep.subr.bf16.mxu0 %v463
    %738 = vmatpush1.bf16.msra.mxu0 %v462
    %739 = vmatprep.subr.bf16.mxu0 %v460
    %740 = vmatpush1.bf16.msra.mxu0 %v459
    %741 = vmatprep.subr.bf16.mxu0 %v457
    %742 = vmatpush1.bf16.msra.mxu0 %v456
    %743 = vmatprep.subr.bf16.mxu0 0
    %744 = vmatpush2.bf16.msra.mxu0 0
    %745 = vmatprep.subr.bf16.mxu0 0
    %746 = vmatpush2.bf16.msra.mxu0 0
    %747 = vmatprep.subr.bf16.mxu0 0
    %748 = vmatpush2.bf16.msra.mxu0 0
    %749 = vmatprep.subr.bf16.mxu0 0
    %750 = vmatpush2.bf16.msra.mxu0 0
    %751 = vmatprep.subr.bf16.mxu0 0
    %752 = vmatpush2.bf16.msra.mxu0 0
    %753 = vmatprep.subr.bf16.mxu0 0
    %754 = vmatpush2.bf16.msra.mxu0 0
    %755 = vmatprep.subr.bf16.mxu0 0
    %756 = vmatpush2.bf16.msra.mxu0 0
    %757 = vmatprep.subr.bf16.mxu0 0
    %758 = vmatpush2.bf16.msra.mxu0 0
    %759 = vmatprep.mubr.bf16.mxu0 0
    %760 = vmatmul.mubr.bf16.gmra.mxu0 %v726
    %v761 = vpop.f32.mrf.mxu0
    %v762 = vadd.f32 0.0, %v761
    %v763 = vpop.f32.mrf.mxu0
    %v764 = vadd.f32 0.0, %v763
    %v765 = vpop.f32.mrf.mxu0
    %v766 = vpop.f32.mrf.mxu0
    %767 = vdwg.mxu0
    %768 = vmatprep.subr.bf16.mxu0 0
    %769 = vmatpush1.bf16.msra.mxu0 %v479
    %770 = vmatprep.subr.bf16.mxu0 0
    %771 = vmatpush1.bf16.msra.mxu0 %v476
    %772 = vmatprep.subr.bf16.mxu0 0
    %773 = vmatpush1.bf16.msra.mxu0 %v473
    %774 = vmatprep.subr.bf16.mxu0 0
    %775 = vmatpush1.bf16.msra.mxu0 %v470
    %776 = vmatprep.subr.bf16.mxu0 0
    %777 = vmatpush1.bf16.msra.mxu0 %v467
    %778 = vmatprep.subr.bf16.mxu0 0
    %779 = vmatpush1.bf16.msra.mxu0 %v464
    %780 = vmatprep.subr.bf16.mxu0 0
    %781 = vmatpush1.bf16.msra.mxu0 %v461
    %782 = vmatprep.subr.bf16.mxu0 0
    %783 = vmatpush1.bf16.msra.mxu0 %v458
    %784 = vmatprep.subr.bf16.mxu0 0
    %785 = vmatpush2.bf16.msra.mxu0 0
    %786 = vmatprep.subr.bf16.mxu0 0
    %787 = vmatpush2.bf16.msra.mxu0 0
    %788 = vmatprep.subr.bf16.mxu0 0
    %789 = vmatpush2.bf16.msra.mxu0 0
    %790 = vmatprep.subr.bf16.mxu0 0
    %791 = vmatpush2.bf16.msra.mxu0 0
    %792 = vmatprep.subr.bf16.mxu0 0
    %793 = vmatpush2.bf16.msra.mxu0 0
    %794 = vmatprep.subr.bf16.mxu0 0
    %795 = vmatpush2.bf16.msra.mxu0 0
    %796 = vmatprep.subr.bf16.mxu0 0
    %797 = vmatpush2.bf16.msra.mxu0 0
    %798 = vmatprep.subr.bf16.mxu0 0
    %799 = vmatpush2.bf16.msra.mxu0 0
    %800 = vmatprep.mubr.bf16.mxu0 0
    %801 = vmatmul.mubr.bf16.gmra.mxu0 %v726
    %v802 = vpop.f32.mrf.mxu0
    %v803 = vadd.f32 0.0, %v802
    %v804 = vpop.f32.mrf.mxu0
    %v805 = vpop.f32.mrf.mxu0
    %v806 = vpop.f32.mrf.mxu0
    %807 = vdwg.mxu0
    %s808 = scalar_lea.vmem [#allocation3], 2
    %v809 = vld [vmem:[%s808] ss:$8 sm:$0x7]
    %v810 = vadd.f32 %v809, %v762
    %v811 = vxor.u32 %v810, 2147483648
    %v812 = vmul.f32 %v811, 1.442695
    %v813 = vpow.pop %v812
    %v814 = vadd.f32 %v813, 1.0
    %v815 = vrcp.pop %v814
    %v816 = vmul.f32 1.0, %v815
    %v818 = vrot.slane %v809, 1
    %v820 = vadd.f32 %v818, %v764
    %v821 = vxor.u32 %v820, 2147483648
    %v822 = vmul.f32 %v821, 1.442695
    %v823 = vpow.pop %v822
    %v824 = vadd.f32 %v823, 1.0
    %v825 = vrcp.pop %v824
    %v826 = vmul.f32 1.0, %v825
    %v827 = vadd.f32 %v803, %v144
    %v828 = vmul.f32 %v816, %v827
    %v829 = vrot.slane %v809, 2
    %v831 = vadd.f32 %v829, %v828
    %v832 = vtanh.pop %v831
    %v833 = vsub.f32 1.0, %v826
    %v834 = vmul.f32 %v833, %v832
    %v835 = vmul.f32 %v826, %v724
    %v836 = vadd.f32 %v834, %v835
    %837 = vst [vmem:[#allocation2 + $0x2] sm:$0x1] %v836
    %v838 = vpack.c.bf16 %v836, %v836
    %839 = vmatprep.subr.bf16.mxu0 %v478
    %840 = vmatpush1.bf16.msra.mxu0 %v477
    %841 = vmatprep.subr.bf16.mxu0 %v475
    %842 = vmatpush1.bf16.msra.mxu0 %v474
    %843 = vmatprep.subr.bf16.mxu0 %v472
    %844 = vmatpush1.bf16.msra.mxu0 %v471
    %845 = vmatprep.subr.bf16.mxu0 %v469
    %846 = vmatpush1.bf16.msra.mxu0 %v468
    %847 = vmatprep.subr.bf16.mxu0 %v466
    %848 = vmatpush1.bf16.msra.mxu0 %v465
    %849 = vmatprep.subr.bf16.mxu0 %v463
    %850 = vmatpush1.bf16.msra.mxu0 %v462
    %851 = vmatprep.subr.bf16.mxu0 %v460
    %852 = vmatpush1.bf16.msra.mxu0 %v459
    %853 = vmatprep.subr.bf16.mxu0 %v457
    %854 = vmatpush1.bf16.msra.mxu0 %v456
    %855 = vmatprep.subr.bf16.mxu0 0
    %856 = vmatpush2.bf16.msra.mxu0 0
    %857 = vmatprep.subr.bf16.mxu0 0
    %858 = vmatpush2.bf16.msra.mxu0 0
    %859 = vmatprep.subr.bf16.mxu0 0
    %860 = vmatpush2.bf16.msra.mxu0 0
    %861 = vmatprep.subr.bf16.mxu0 0
    %862 = vmatpush2.bf16.msra.mxu0 0
    %863 = vmatprep.subr.bf16.mxu0 0
    %864 = vmatpush2.bf16.msra.mxu0 0
    %865 = vmatprep.subr.bf16.mxu0 0
    %866 = vmatpush2.bf16.msra.mxu0 0
    %867 = vmatprep.subr.bf16.mxu0 0
    %868 = vmatpush2.bf16.msra.mxu0 0
    %869 = vmatprep.subr.bf16.mxu0 0
    %870 = vmatpush2.bf16.msra.mxu0 0
    %871 = vmatprep.mubr.bf16.mxu0 0
    %872 = vmatmul.mubr.bf16.gmra.mxu0 %v838
    %v873 = vpop.f32.mrf.mxu0
    %v874 = vadd.f32 0.0, %v873
    %v875 = vpop.f32.mrf.mxu0
    %v876 = vadd.f32 0.0, %v875
    %v877 = vpop.f32.mrf.mxu0
    %v878 = vpop.f32.mrf.mxu0
    %879 = vdwg.mxu0
    %880 = vmatprep.subr.bf16.mxu0 0
    %881 = vmatpush1.bf16.msra.mxu0 %v479
    %882 = vmatprep.subr.bf16.mxu0 0
    %883 = vmatpush1.bf16.msra.mxu0 %v476
    %884 = vmatprep.subr.bf16.mxu0 0
    %885 = vmatpush1.bf16.msra.mxu0 %v473
    %886 = vmatprep.subr.bf16.mxu0 0
    %887 = vmatpush1.bf16.msra.mxu0 %v470
    %888 = vmatprep.subr.bf16.mxu0 0
    %889 = vmatpush1.bf16.msra.mxu0 %v467
    %890 = vmatprep.subr.bf16.mxu0 0
    %891 = vmatpush1.bf16.msra.mxu0 %v464
    %892 = vmatprep.subr.bf16.mxu0 0
    %893 = vmatpush1.bf16.msra.mxu0 %v461
    %894 = vmatprep.subr.bf16.mxu0 0
    %895 = vmatpush1.bf16.msra.mxu0 %v458
    %896 = vmatprep.subr.bf16.mxu0 0
    %897 = vmatpush2.bf16.msra.mxu0 0
    %898 = vmatprep.subr.bf16.mxu0 0
    %899 = vmatpush2.bf16.msra.mxu0 0
    %900 = vmatprep.subr.bf16.mxu0 0
    %901 = vmatpush2.bf16.msra.mxu0 0
    %902 = vmatprep.subr.bf16.mxu0 0
    %903 = vmatpush2.bf16.msra.mxu0 0
    %904 = vmatprep.subr.bf16.mxu0 0
    %905 = vmatpush2.bf16.msra.mxu0 0
    %906 = vmatprep.subr.bf16.mxu0 0
    %907 = vmatpush2.bf16.msra.mxu0 0
    %908 = vmatprep.subr.bf16.mxu0 0
    %909 = vmatpush2.bf16.msra.mxu0 0
    %910 = vmatprep.subr.bf16.mxu0 0
    %911 = vmatpush2.bf16.msra.mxu0 0
    %912 = vmatprep.mubr.bf16.mxu0 0
    %913 = vmatmul.mubr.bf16.gmra.mxu0 %v838
    %v914 = vpop.f32.mrf.mxu0
    %v915 = vadd.f32 0.0, %v914
    %v916 = vpop.f32.mrf.mxu0
    %v917 = vpop.f32.mrf.mxu0
    %v918 = vpop.f32.mrf.mxu0
    %919 = vdwg.mxu0
    %s920 = scalar_lea.vmem [#allocation3], 3
    %v921 = vld [vmem:[%s920] ss:$8 sm:$0x7]
    %v922 = vadd.f32 %v921, %v874
    %v923 = vxor.u32 %v922, 2147483648
    %v924 = vmul.f32 %v923, 1.442695
    %v925 = vpow.pop %v924
    %v926 = vadd.f32 %v925, 1.0
    %v927 = vrcp.pop %v926
    %v928 = vmul.f32 1.0, %v927
    %v930 = vrot.slane %v921, 1
    %v932 = vadd.f32 %v930, %v876
    %v933 = vxor.u32 %v932, 2147483648
    %v934 = vmul.f32 %v933, 1.442695
    %v935 = vpow.pop %v934
    %v936 = vadd.f32 %v935, 1.0
    %v937 = vrcp.pop %v936
    %v938 = vmul.f32 1.0, %v937
    %v939 = vadd.f32 %v915, %v144
    %v940 = vmul.f32 %v928, %v939
    %v941 = vrot.slane %v921, 2
    %v943 = vadd.f32 %v941, %v940
    %v944 = vtanh.pop %v943
    %v945 = vsub.f32 1.0, %v938
    %v946 = vmul.f32 %v945, %v944
    %v947 = vmul.f32 %v938, %v836
    %v948 = vadd.f32 %v946, %v947
    %949 = vst [vmem:[#allocation2 + $0x3] sm:$0x1] %v948
    %v950 = vpack.c.bf16 %v948, %v948
    %951 = vmatprep.subr.bf16.mxu0 %v478
    %952 = vmatpush1.bf16.msra.mxu0 %v477
    %953 = vmatprep.subr.bf16.mxu0 %v475
    %954 = vmatpush1.bf16.msra.mxu0 %v474
    %955 = vmatprep.subr.bf16.mxu0 %v472
    %956 = vmatpush1.bf16.msra.mxu0 %v471
    %957 = vmatprep.subr.bf16.mxu0 %v469
    %958 = vmatpush1.bf16.msra.mxu0 %v468
    %959 = vmatprep.subr.bf16.mxu0 %v466
    %960 = vmatpush1.bf16.msra.mxu0 %v465
    %961 = vmatprep.subr.bf16.mxu0 %v463
    %962 = vmatpush1.bf16.msra.mxu0 %v462
    %963 = vmatprep.subr.bf16.mxu0 %v460
    %964 = vmatpush1.bf16.msra.mxu0 %v459
    %965 = vmatprep.subr.bf16.mxu0 %v457
    %966 = vmatpush1.bf16.msra.mxu0 %v456
    %967 = vmatprep.subr.bf16.mxu0 0
    %968 = vmatpush2.bf16.msra.mxu0 0
    %969 = vmatprep.subr.bf16.mxu0 0
    %970 = vmatpush2.bf16.msra.mxu0 0
    %971 = vmatprep.subr.bf16.mxu0 0
    %972 = vmatpush2.bf16.msra.mxu0 0
    %973 = vmatprep.subr.bf16.mxu0 0
    %974 = vmatpush2.bf16.msra.mxu0 0
    %975 = vmatprep.subr.bf16.mxu0 0
    %976 = vmatpush2.bf16.msra.mxu0 0
    %977 = vmatprep.subr.bf16.mxu0 0
    %978 = vmatpush2.bf16.msra.mxu0 0
    %979 = vmatprep.subr.bf16.mxu0 0
    %980 = vmatpush2.bf16.msra.mxu0 0
    %981 = vmatprep.subr.bf16.mxu0 0
    %982 = vmatpush2.bf16.msra.mxu0 0
    %983 = vmatprep.mubr.bf16.mxu0 0
    %984 = vmatmul.mubr.bf16.gmra.mxu0 %v950
    %v985 = vpop.f32.mrf.mxu0
    %v986 = vadd.f32 0.0, %v985
    %v987 = vpop.f32.mrf.mxu0
    %v988 = vadd.f32 0.0, %v987
    %v989 = vpop.f32.mrf.mxu0
    %v990 = vpop.f32.mrf.mxu0
    %991 = vdwg.mxu0
    %992 = vmatprep.subr.bf16.mxu0 0
    %993 = vmatpush1.bf16.msra.mxu0 %v479
    %994 = vmatprep.subr.bf16.mxu0 0
    %995 = vmatpush1.bf16.msra.mxu0 %v476
    %996 = vmatprep.subr.bf16.mxu0 0
    %997 = vmatpush1.bf16.msra.mxu0 %v473
    %998 = vmatprep.subr.bf16.mxu0 0
    %999 = vmatpush1.bf16.msra.mxu0 %v470
    %1000 = vmatprep.subr.bf16.mxu0 0
    %1001 = vmatpush1.bf16.msra.mxu0 %v467
    %1002 = vmatprep.subr.bf16.mxu0 0
    %1003 = vmatpush1.bf16.msra.mxu0 %v464
    %1004 = vmatprep.subr.bf16.mxu0 0
    %1005 = vmatpush1.bf16.msra.mxu0 %v461
    %1006 = vmatprep.subr.bf16.mxu0 0
    %1007 = vmatpush1.bf16.msra.mxu0 %v458
    %1008 = vmatprep.subr.bf16.mxu0 0
    %1009 = vmatpush2.bf16.msra.mxu0 0
    %1010 = vmatprep.subr.bf16.mxu0 0
    %1011 = vmatpush2.bf16.msra.mxu0 0
    %1012 = vmatprep.subr.bf16.mxu0 0
    %1013 = vmatpush2.bf16.msra.mxu0 0
    %1014 = vmatprep.subr.bf16.mxu0 0
    %1015 = vmatpush2.bf16.msra.mxu0 0
    %1016 = vmatprep.subr.bf16.mxu0 0
    %1017 = vmatpush2.bf16.msra.mxu0 0
    %1018 = vmatprep.subr.bf16.mxu0 0
    %1019 = vmatpush2.bf16.msra.mxu0 0
    %1020 = vmatprep.subr.bf16.mxu0 0
    %1021 = vmatpush2.bf16.msra.mxu0 0
    %1022 = vmatprep.subr.bf16.mxu0 0
    %1023 = vmatpush2.bf16.msra.mxu0 0
    %1024 = vmatprep.mubr.bf16.mxu0 0
    %1025 = vmatmul.mubr.bf16.gmra.mxu0 %v950
    %v1026 = vpop.f32.mrf.mxu0
    %v1027 = vadd.f32 0.0, %v1026
    %v1028 = vpop.f32.mrf.mxu0
    %v1029 = vpop.f32.mrf.mxu0
    %v1030 = vpop.f32.mrf.mxu0
    %1031 = vdwg.mxu0
    %s1032 = scalar_lea.vmem [#allocation3], 4
    %v1033 = vld [vmem:[%s1032] ss:$8 sm:$0x7]
    %v1034 = vadd.f32 %v1033, %v986
    %v1035 = vxor.u32 %v1034, 2147483648
    %v1036 = vmul.f32 %v1035, 1.442695
    %v1037 = vpow.pop %v1036
    %v1038 = vadd.f32 %v1037, 1.0
    %v1039 = vrcp.pop %v1038
    %v1040 = vmul.f32 1.0, %v1039
    %v1042 = vrot.slane %v1033, 1
    %v1044 = vadd.f32 %v1042, %v988
    %v1045 = vxor.u32 %v1044, 2147483648
    %v1046 = vmul.f32 %v1045, 1.442695
    %v1047 = vpow.pop %v1046
    %v1048 = vadd.f32 %v1047, 1.0
    %v1049 = vrcp.pop %v1048
    %v1050 = vmul.f32 1.0, %v1049
    %v1051 = vadd.f32 %v1027, %v144
    %v1052 = vmul.f32 %v1040, %v1051
    %v1053 = vrot.slane %v1033, 2
    %v1055 = vadd.f32 %v1053, %v1052
    %v1056 = vtanh.pop %v1055
    %v1057 = vsub.f32 1.0, %v1050
    %v1058 = vmul.f32 %v1057, %v1056
    %v1059 = vmul.f32 %v1050, %v948
    %v1060 = vadd.f32 %v1058, %v1059
    %1061 = vst [vmem:[#allocation2 + $0x4] sm:$0x1] %v1060
    %v1062 = vpack.c.bf16 %v1060, %v1060
    %1063 = vmatprep.subr.bf16.mxu0 %v478
    %1064 = vmatpush1.bf16.msra.mxu0 %v477
    %1065 = vmatprep.subr.bf16.mxu0 %v475
    %1066 = vmatpush1.bf16.msra.mxu0 %v474
    %1067 = vmatprep.subr.bf16.mxu0 %v472
    %1068 = vmatpush1.bf16.msra.mxu0 %v471
    %1069 = vmatprep.subr.bf16.mxu0 %v469
    %1070 = vmatpush1.bf16.msra.mxu0 %v468
    %1071 = vmatprep.subr.bf16.mxu0 %v466
    %1072 = vmatpush1.bf16.msra.mxu0 %v465
    %1073 = vmatprep.subr.bf16.mxu0 %v463
    %1074 = vmatpush1.bf16.msra.mxu0 %v462
    %1075 = vmatprep.subr.bf16.mxu0 %v460
    %1076 = vmatpush1.bf16.msra.mxu0 %v459
    %1077 = vmatprep.subr.bf16.mxu0 %v457
    %1078 = vmatpush1.bf16.msra.mxu0 %v456
    %1079 = vmatprep.subr.bf16.mxu0 0
    %1080 = vmatpush2.bf16.msra.mxu0 0
    %1081 = vmatprep.subr.bf16.mxu0 0
    %1082 = vmatpush2.bf16.msra.mxu0 0
    %1083 = vmatprep.subr.bf16.mxu0 0
    %1084 = vmatpush2.bf16.msra.mxu0 0
    %1085 = vmatprep.subr.bf16.mxu0 0
    %1086 = vmatpush2.bf16.msra.mxu0 0
    %1087 = vmatprep.subr.bf16.mxu0 0
    %1088 = vmatpush2.bf16.msra.mxu0 0
    %1089 = vmatprep.subr.bf16.mxu0 0
    %1090 = vmatpush2.bf16.msra.mxu0 0
    %1091 = vmatprep.subr.bf16.mxu0 0
    %1092 = vmatpush2.bf16.msra.mxu0 0
    %1093 = vmatprep.subr.bf16.mxu0 0
    %1094 = vmatpush2.bf16.msra.mxu0 0
    %1095 = vmatprep.mubr.bf16.mxu0 0
    %1096 = vmatmul.mubr.bf16.gmra.mxu0 %v1062
    %v1097 = vpop.f32.mrf.mxu0
    %v1098 = vadd.f32 0.0, %v1097
    %v1099 = vpop.f32.mrf.mxu0
    %v1100 = vadd.f32 0.0, %v1099
    %v1101 = vpop.f32.mrf.mxu0
    %v1102 = vpop.f32.mrf.mxu0
    %1103 = vdwg.mxu0
    %1104 = vmatprep.subr.bf16.mxu0 0
    %1105 = vmatpush1.bf16.msra.mxu0 %v479
    %1106 = vmatprep.subr.bf16.mxu0 0
    %1107 = vmatpush1.bf16.msra.mxu0 %v476
    %1108 = vmatprep.subr.bf16.mxu0 0
    %1109 = vmatpush1.bf16.msra.mxu0 %v473
    %1110 = vmatprep.subr.bf16.mxu0 0
    %1111 = vmatpush1.bf16.msra.mxu0 %v470
    %1112 = vmatprep.subr.bf16.mxu0 0
    %1113 = vmatpush1.bf16.msra.mxu0 %v467
    %1114 = vmatprep.subr.bf16.mxu0 0
    %1115 = vmatpush1.bf16.msra.mxu0 %v464
    %1116 = vmatprep.subr.bf16.mxu0 0
    %1117 = vmatpush1.bf16.msra.mxu0 %v461
    %1118 = vmatprep.subr.bf16.mxu0 0
    %1119 = vmatpush1.bf16.msra.mxu0 %v458
    %1120 = vmatprep.subr.bf16.mxu0 0
    %1121 = vmatpush2.bf16.msra.mxu0 0
    %1122 = vmatprep.subr.bf16.mxu0 0
    %1123 = vmatpush2.bf16.msra.mxu0 0
    %1124 = vmatprep.subr.bf16.mxu0 0
    %1125 = vmatpush2.bf16.msra.mxu0 0
    %1126 = vmatprep.subr.bf16.mxu0 0
    %1127 = vmatpush2.bf16.msra.mxu0 0
    %1128 = vmatprep.subr.bf16.mxu0 0
    %1129 = vmatpush2.bf16.msra.mxu0 0
    %1130 = vmatprep.subr.bf16.mxu0 0
    %1131 = vmatpush2.bf16.msra.mxu0 0
    %1132 = vmatprep.subr.bf16.mxu0 0
    %1133 = vmatpush2.bf16.msra.mxu0 0
    %1134 = vmatprep.subr.bf16.mxu0 0
    %1135 = vmatpush2.bf16.msra.mxu0 0
    %1136 = vmatprep.mubr.bf16.mxu0 0
    %1137 = vmatmul.mubr.bf16.gmra.mxu0 %v1062
    %v1138 = vpop.f32.mrf.mxu0
    %v1139 = vadd.f32 0.0, %v1138
    %v1140 = vpop.f32.mrf.mxu0
    %v1141 = vpop.f32.mrf.mxu0
    %v1142 = vpop.f32.mrf.mxu0
    %1143 = vdwg.mxu0
    %s1144 = scalar_lea.vmem [#allocation3], 5
    %v1145 = vld [vmem:[%s1144] ss:$8 sm:$0x7]
    %v1146 = vadd.f32 %v1145, %v1098
    %v1147 = vxor.u32 %v1146, 2147483648
    %v1148 = vmul.f32 %v1147, 1.442695
    %v1149 = vpow.pop %v1148
    %v1150 = vadd.f32 %v1149, 1.0
    %v1151 = vrcp.pop %v1150
    %v1152 = vmul.f32 1.0, %v1151
    %v1154 = vrot.slane %v1145, 1
    %v1156 = vadd.f32 %v1154, %v1100
    %v1157 = vxor.u32 %v1156, 2147483648
    %v1158 = vmul.f32 %v1157, 1.442695
    %v1159 = vpow.pop %v1158
    %v1160 = vadd.f32 %v1159, 1.0
    %v1161 = vrcp.pop %v1160
    %v1162 = vmul.f32 1.0, %v1161
    %v1163 = vadd.f32 %v1139, %v144
    %v1164 = vmul.f32 %v1152, %v1163
    %v1165 = vrot.slane %v1145, 2
    %v1167 = vadd.f32 %v1165, %v1164
    %v1168 = vtanh.pop %v1167
    %v1169 = vsub.f32 1.0, %v1162
    %v1170 = vmul.f32 %v1169, %v1168
    %v1171 = vmul.f32 %v1162, %v1060
    %v1172 = vadd.f32 %v1170, %v1171
    %1173 = vst [vmem:[#allocation2 + $0x5] sm:$0x1] %v1172
    %v1174 = vpack.c.bf16 %v1172, %v1172
    %1175 = vmatprep.subr.bf16.mxu0 %v478
    %1176 = vmatpush1.bf16.msra.mxu0 %v477
    %1177 = vmatprep.subr.bf16.mxu0 %v475
    %1178 = vmatpush1.bf16.msra.mxu0 %v474
    %1179 = vmatprep.subr.bf16.mxu0 %v472
    %1180 = vmatpush1.bf16.msra.mxu0 %v471
    %1181 = vmatprep.subr.bf16.mxu0 %v469
    %1182 = vmatpush1.bf16.msra.mxu0 %v468
    %1183 = vmatprep.subr.bf16.mxu0 %v466
    %1184 = vmatpush1.bf16.msra.mxu0 %v465
    %1185 = vmatprep.subr.bf16.mxu0 %v463
    %1186 = vmatpush1.bf16.msra.mxu0 %v462
    %1187 = vmatprep.subr.bf16.mxu0 %v460
    %1188 = vmatpush1.bf16.msra.mxu0 %v459
    %1189 = vmatprep.subr.bf16.mxu0 %v457
    %1190 = vmatpush1.bf16.msra.mxu0 %v456
    %1191 = vmatprep.subr.bf16.mxu0 0
    %1192 = vmatpush2.bf16.msra.mxu0 0
    %1193 = vmatprep.subr.bf16.mxu0 0
    %1194 = vmatpush2.bf16.msra.mxu0 0
    %1195 = vmatprep.subr.bf16.mxu0 0
    %1196 = vmatpush2.bf16.msra.mxu0 0
    %1197 = vmatprep.subr.bf16.mxu0 0
    %1198 = vmatpush2.bf16.msra.mxu0 0
    %1199 = vmatprep.subr.bf16.mxu0 0
    %1200 = vmatpush2.bf16.msra.mxu0 0
    %1201 = vmatprep.subr.bf16.mxu0 0
    %1202 = vmatpush2.bf16.msra.mxu0 0
    %1203 = vmatprep.subr.bf16.mxu0 0
    %1204 = vmatpush2.bf16.msra.mxu0 0
    %1205 = vmatprep.subr.bf16.mxu0 0
    %1206 = vmatpush2.bf16.msra.mxu0 0
    %1207 = vmatprep.mubr.bf16.mxu0 0
    %1208 = vmatmul.mubr.bf16.gmra.mxu0 %v1174
    %v1209 = vpop.f32.mrf.mxu0
    %v1210 = vadd.f32 0.0, %v1209
    %v1211 = vpop.f32.mrf.mxu0
    %v1212 = vadd.f32 0.0, %v1211
    %v1213 = vpop.f32.mrf.mxu0
    %v1214 = vpop.f32.mrf.mxu0
    %1215 = vdwg.mxu0
    %1216 = vmatprep.subr.bf16.mxu0 0
    %1217 = vmatpush1.bf16.msra.mxu0 %v479
    %1218 = vmatprep.subr.bf16.mxu0 0
    %1219 = vmatpush1.bf16.msra.mxu0 %v476
    %1220 = vmatprep.subr.bf16.mxu0 0
    %1221 = vmatpush1.bf16.msra.mxu0 %v473
    %1222 = vmatprep.subr.bf16.mxu0 0
    %1223 = vmatpush1.bf16.msra.mxu0 %v470
    %1224 = vmatprep.subr.bf16.mxu0 0
    %1225 = vmatpush1.bf16.msra.mxu0 %v467
    %1226 = vmatprep.subr.bf16.mxu0 0
    %1227 = vmatpush1.bf16.msra.mxu0 %v464
    %1228 = vmatprep.subr.bf16.mxu0 0
    %1229 = vmatpush1.bf16.msra.mxu0 %v461
    %1230 = vmatprep.subr.bf16.mxu0 0
    %1231 = vmatpush1.bf16.msra.mxu0 %v458
    %1232 = vmatprep.subr.bf16.mxu0 0
    %1233 = vmatpush2.bf16.msra.mxu0 0
    %1234 = vmatprep.subr.bf16.mxu0 0
    %1235 = vmatpush2.bf16.msra.mxu0 0
    %1236 = vmatprep.subr.bf16.mxu0 0
    %1237 = vmatpush2.bf16.msra.mxu0 0
    %1238 = vmatprep.subr.bf16.mxu0 0
    %1239 = vmatpush2.bf16.msra.mxu0 0
    %1240 = vmatprep.subr.bf16.mxu0 0
    %1241 = vmatpush2.bf16.msra.mxu0 0
    %1242 = vmatprep.subr.bf16.mxu0 0
    %1243 = vmatpush2.bf16.msra.mxu0 0
    %1244 = vmatprep.subr.bf16.mxu0 0
    %1245 = vmatpush2.bf16.msra.mxu0 0
    %1246 = vmatprep.subr.bf16.mxu0 0
    %1247 = vmatpush2.bf16.msra.mxu0 0
    %1248 = vmatprep.mubr.bf16.mxu0 0
    %1249 = vmatmul.mubr.bf16.gmra.mxu0 %v1174
    %v1250 = vpop.f32.mrf.mxu0
    %v1251 = vadd.f32 0.0, %v1250
    %v1252 = vpop.f32.mrf.mxu0
    %v1253 = vpop.f32.mrf.mxu0
    %v1254 = vpop.f32.mrf.mxu0
    %1255 = vdwg.mxu0
    %s1256 = scalar_lea.vmem [#allocation3], 6
    %v1257 = vld [vmem:[%s1256] ss:$8 sm:$0x7]
    %v1258 = vadd.f32 %v1257, %v1210
    %v1259 = vxor.u32 %v1258, 2147483648
    %v1260 = vmul.f32 %v1259, 1.442695
    %v1261 = vpow.pop %v1260
    %v1262 = vadd.f32 %v1261, 1.0
    %v1263 = vrcp.pop %v1262
    %v1264 = vmul.f32 1.0, %v1263
    %v1266 = vrot.slane %v1257, 1
    %v1268 = vadd.f32 %v1266, %v1212
    %v1269 = vxor.u32 %v1268, 2147483648
    %v1270 = vmul.f32 %v1269, 1.442695
    %v1271 = vpow.pop %v1270
    %v1272 = vadd.f32 %v1271, 1.0
    %v1273 = vrcp.pop %v1272
    %v1274 = vmul.f32 1.0, %v1273
    %v1275 = vadd.f32 %v1251, %v144
    %v1276 = vmul.f32 %v1264, %v1275
    %v1277 = vrot.slane %v1257, 2
    %v1279 = vadd.f32 %v1277, %v1276
    %v1280 = vtanh.pop %v1279
    %v1281 = vsub.f32 1.0, %v1274
    %v1282 = vmul.f32 %v1281, %v1280
    %v1283 = vmul.f32 %v1274, %v1172
    %v1284 = vadd.f32 %v1282, %v1283
    %1285 = vst [vmem:[#allocation2 + $0x6] sm:$0x1] %v1284
    %v1286 = vpack.c.bf16 %v1284, %v1284
    %1287 = vmatprep.subr.bf16.mxu0 %v478
    %1288 = vmatpush1.bf16.msra.mxu0 %v477
    %1289 = vmatprep.subr.bf16.mxu0 %v475
    %1290 = vmatpush1.bf16.msra.mxu0 %v474
    %1291 = vmatprep.subr.bf16.mxu0 %v472
    %1292 = vmatpush1.bf16.msra.mxu0 %v471
    %1293 = vmatprep.subr.bf16.mxu0 %v469
    %1294 = vmatpush1.bf16.msra.mxu0 %v468
    %1295 = vmatprep.subr.bf16.mxu0 %v466
    %1296 = vmatpush1.bf16.msra.mxu0 %v465
    %1297 = vmatprep.subr.bf16.mxu0 %v463
    %1298 = vmatpush1.bf16.msra.mxu0 %v462
    %1299 = vmatprep.subr.bf16.mxu0 %v460
    %1300 = vmatpush1.bf16.msra.mxu0 %v459
    %1301 = vmatprep.subr.bf16.mxu0 %v457
    %1302 = vmatpush1.bf16.msra.mxu0 %v456
    %1303 = vmatprep.subr.bf16.mxu0 0
    %1304 = vmatpush2.bf16.msra.mxu0 0
    %1305 = vmatprep.subr.bf16.mxu0 0
    %1306 = vmatpush2.bf16.msra.mxu0 0
    %1307 = vmatprep.subr.bf16.mxu0 0
    %1308 = vmatpush2.bf16.msra.mxu0 0
    %1309 = vmatprep.subr.bf16.mxu0 0
    %1310 = vmatpush2.bf16.msra.mxu0 0
    %1311 = vmatprep.subr.bf16.mxu0 0
    %1312 = vmatpush2.bf16.msra.mxu0 0
    %1313 = vmatprep.subr.bf16.mxu0 0
    %1314 = vmatpush2.bf16.msra.mxu0 0
    %1315 = vmatprep.subr.bf16.mxu0 0
    %1316 = vmatpush2.bf16.msra.mxu0 0
    %1317 = vmatprep.subr.bf16.mxu0 0
    %1318 = vmatpush2.bf16.msra.mxu0 0
    %1319 = vmatprep.mubr.bf16.mxu0 0
    %1320 = vmatmul.mubr.bf16.gmra.mxu0 %v1286
    %v1321 = vpop.f32.mrf.mxu0
    %v1322 = vadd.f32 0.0, %v1321
    %v1323 = vpop.f32.mrf.mxu0
    %v1324 = vadd.f32 0.0, %v1323
    %v1325 = vpop.f32.mrf.mxu0
    %v1326 = vpop.f32.mrf.mxu0
    %1327 = vdwg.mxu0
    %1328 = vmatprep.subr.bf16.mxu0 0
    %1329 = vmatpush1.bf16.msra.mxu0 %v479
    %1330 = vmatprep.subr.bf16.mxu0 0
    %1331 = vmatpush1.bf16.msra.mxu0 %v476
    %1332 = vmatprep.subr.bf16.mxu0 0
    %1333 = vmatpush1.bf16.msra.mxu0 %v473
    %1334 = vmatprep.subr.bf16.mxu0 0
    %1335 = vmatpush1.bf16.msra.mxu0 %v470
    %1336 = vmatprep.subr.bf16.mxu0 0
    %1337 = vmatpush1.bf16.msra.mxu0 %v467
    %1338 = vmatprep.subr.bf16.mxu0 0
    %1339 = vmatpush1.bf16.msra.mxu0 %v464
    %1340 = vmatprep.subr.bf16.mxu0 0
    %1341 = vmatpush1.bf16.msra.mxu0 %v461
    %1342 = vmatprep.subr.bf16.mxu0 0
    %1343 = vmatpush1.bf16.msra.mxu0 %v458
    %1344 = vmatprep.subr.bf16.mxu0 0
    %1345 = vmatpush2.bf16.msra.mxu0 0
    %1346 = vmatprep.subr.bf16.mxu0 0
    %1347 = vmatpush2.bf16.msra.mxu0 0
    %1348 = vmatprep.subr.bf16.mxu0 0
    %1349 = vmatpush2.bf16.msra.mxu0 0
    %1350 = vmatprep.subr.bf16.mxu0 0
    %1351 = vmatpush2.bf16.msra.mxu0 0
    %1352 = vmatprep.subr.bf16.mxu0 0
    %1353 = vmatpush2.bf16.msra.mxu0 0
    %1354 = vmatprep.subr.bf16.mxu0 0
    %1355 = vmatpush2.bf16.msra.mxu0 0
    %1356 = vmatprep.subr.bf16.mxu0 0
    %1357 = vmatpush2.bf16.msra.mxu0 0
    %1358 = vmatprep.subr.bf16.mxu0 0
    %1359 = vmatpush2.bf16.msra.mxu0 0
    %1360 = vmatprep.mubr.bf16.mxu0 0
    %1361 = vmatmul.mubr.bf16.gmra.mxu0 %v1286
    %v1362 = vpop.f32.mrf.mxu0
    %v1363 = vadd.f32 0.0, %v1362
    %v1364 = vpop.f32.mrf.mxu0
    %v1365 = vpop.f32.mrf.mxu0
    %v1366 = vpop.f32.mrf.mxu0
    %1367 = vdwg.mxu0
    %s1368 = scalar_lea.vmem [#allocation3], 7
    %v1369 = vld [vmem:[%s1368] ss:$8 sm:$0x7]
    %v1370 = vadd.f32 %v1369, %v1322
    %v1371 = vxor.u32 %v1370, 2147483648
    %v1372 = vmul.f32 %v1371, 1.442695
    %v1373 = vpow.pop %v1372
    %v1374 = vadd.f32 %v1373, 1.0
    %v1375 = vrcp.pop %v1374
    %v1376 = vmul.f32 1.0, %v1375
    %v1378 = vrot.slane %v1369, 1
    %v1380 = vadd.f32 %v1378, %v1324
    %v1381 = vxor.u32 %v1380, 2147483648
    %v1382 = vmul.f32 %v1381, 1.442695
    %v1383 = vpow.pop %v1382
    %v1384 = vadd.f32 %v1383, 1.0
    %v1385 = vrcp.pop %v1384
    %v1386 = vmul.f32 1.0, %v1385
    %v1387 = vadd.f32 %v1363, %v144
    %v1388 = vmul.f32 %v1376, %v1387
    %v1389 = vrot.slane %v1369, 2
    %v1391 = vadd.f32 %v1389, %v1388
    %v1392 = vtanh.pop %v1391
    %v1393 = vsub.f32 1.0, %v1386
    %v1394 = vmul.f32 %v1393, %v1392
    %v1395 = vmul.f32 %v1386, %v1284
    %v1396 = vadd.f32 %v1394, %v1395
    %1397 = vst [vmem:[#allocation2 + $0x7] sm:$0x1] %v1396
    %1398 = vst [vmem:[#allocation13] sm:$0x1] %v1396
    %s1399 = scalar_lea.vmem [#allocation7], 192
    %v1400 = vld [vmem:[%s1399] sm:$0xff]
    %v1401 = vld [vmem:[%s1399 + $0x8] sm:$0xf]
    %v1402 = vld [vmem:[%s1399 + $0xc] sm:$0xff]
    %v1403 = vld [vmem:[%s1399 + $0x14] sm:$0xf]
    %v1404 = vld [vmem:[%s1399 + $0x18] sm:$0xff]
    %v1405 = vld [vmem:[%s1399 + $0x20] sm:$0xf]
    %v1406 = vld [vmem:[%s1399 + $0x24] sm:$0xff]
    %v1407 = vld [vmem:[%s1399 + $0x2c] sm:$0xf]
    %v1408 = vld [vmem:[%s1399 + $0x30] sm:$0xff]
    %v1409 = vld [vmem:[%s1399 + $0x38] sm:$0xf]
    %v1410 = vld [vmem:[%s1399 + $0x3c] sm:$0xff]
    %v1411 = vld [vmem:[%s1399 + $0x44] sm:$0xf]
    %v1412 = vld [vmem:[%s1399 + $0x48] sm:$0xff]
    %v1413 = vld [vmem:[%s1399 + $0x50] sm:$0xf]
    %v1414 = vld [vmem:[%s1399 + $0x54] sm:$0xff]
    %v1415 = vld [vmem:[%s1399 + $0x5c] sm:$0xf]
    %v1416 = vld [vmem:[%s1399 + $0x60] sm:$0xff]
    %v1417 = vld [vmem:[%s1399 + $0x68] sm:$0xf]
    %v1418 = vld [vmem:[%s1399 + $0x6c] sm:$0xff]
    %v1419 = vld [vmem:[%s1399 + $0x74] sm:$0xf]
    %v1420 = vld [vmem:[%s1399 + $0x78] sm:$0xff]
    %v1421 = vld [vmem:[%s1399 + $0x80] sm:$0xf]
    %v1422 = vld [vmem:[%s1399 + $0x84] sm:$0xff]
    %v1423 = vld [vmem:[%s1399 + $0x8c] sm:$0xf]
    %v1424 = vld [vmem:[%s1399 + $0x90] sm:$0xff]
    %v1425 = vld [vmem:[%s1399 + $0x98] sm:$0xf]
    %v1426 = vld [vmem:[%s1399 + $0x9c] sm:$0xff]
    %v1427 = vld [vmem:[%s1399 + $0xa4] sm:$0xf]
    %v1428 = vld [vmem:[%s1399 + $0xa8] sm:$0xff]
    %v1429 = vld [vmem:[%s1399 + $0xb0] sm:$0xf]
    %v1430 = vld [vmem:[%s1399 + $0xb4] sm:$0xff]
    %v1431 = vld [vmem:[%s1399 + $0xbc] sm:$0xf]
    %s1432 = scalar_lea.vmem [#allocation9], 192
    %v1433 = vld [vmem:[%s1432] sm:$0xff]
    %v1434 = vld [vmem:[%s1432 + $0x8] sm:$0xf]
    %v1435 = vld [vmem:[%s1432 + $0xc] sm:$0xff]
    %v1436 = vld [vmem:[%s1432 + $0x14] sm:$0xf]
    %v1437 = vld [vmem:[%s1432 + $0x18] sm:$0xff]
    %v1438 = vld [vmem:[%s1432 + $0x20] sm:$0xf]
    %v1439 = vld [vmem:[%s1432 + $0x24] sm:$0xff]
    %v1440 = vld [vmem:[%s1432 + $0x2c] sm:$0xf]
    %v1441 = vld [vmem:[%s1432 + $0x30] sm:$0xff]
    %v1442 = vld [vmem:[%s1432 + $0x38] sm:$0xf]
    %v1443 = vld [vmem:[%s1432 + $0x3c] sm:$0xff]
    %v1444 = vld [vmem:[%s1432 + $0x44] sm:$0xf]
    %v1445 = vld [vmem:[%s1432 + $0x48] sm:$0xff]
    %v1446 = vld [vmem:[%s1432 + $0x50] sm:$0xf]
    %v1447 = vld [vmem:[%s1432 + $0x54] sm:$0xff]
    %v1448 = vld [vmem:[%s1432 + $0x5c] sm:$0xf]
    %v1449 = vld [vmem:[%s1432 + $0x60] sm:$0xff]
    %v1450 = vld [vmem:[%s1432 + $0x68] sm:$0xf]
    %v1451 = vld [vmem:[%s1432 + $0x6c] sm:$0xff]
    %v1452 = vld [vmem:[%s1432 + $0x74] sm:$0xf]
    %v1453 = vld [vmem:[%s1432 + $0x78] sm:$0xff]
    %v1454 = vld [vmem:[%s1432 + $0x80] sm:$0xf]
    %v1455 = vld [vmem:[%s1432 + $0x84] sm:$0xff]
    %v1456 = vld [vmem:[%s1432 + $0x8c] sm:$0xf]
    %v1457 = vld [vmem:[%s1432 + $0x90] sm:$0xff]
    %v1458 = vld [vmem:[%s1432 + $0x98] sm:$0xf]
    %v1459 = vld [vmem:[%s1432 + $0x9c] sm:$0xff]
    %v1460 = vld [vmem:[%s1432 + $0xa4] sm:$0xf]
    %v1461 = vld [vmem:[%s1432 + $0xa8] sm:$0xff]
    %v1462 = vld [vmem:[%s1432 + $0xb0] sm:$0xf]
    %v1463 = vld [vmem:[%s1432 + $0xb4] sm:$0xff]
    %v1464 = vld [vmem:[%s1432 + $0xbc] sm:$0xf]
    %s1465 = scalar_lea.vmem [#allocation10], 1
    %v1466 = vld [vmem:[%s1465] ss:$2 sm:$0x7]
    %v1467 = vld [vmem:[%s4 + $0x1] sm:$0x1]
    %v1468 = vld [vmem:[#allocation2] sm:$0xff]
    %v1469 = vpack.c.bf16 %v1468, %v1468
    %v1471 = vlaneseq
    %v1472 = vshrl.u32 %v1471, 7
    %v1473 = vsub.s32 0, %v1472
    %v1474 = vrot.slane %v1466, %v1473
    %v1475 = vlaneseq
    %v1476 = vshrl.u32 %v1475, 7
    %v1477 = vsub.s32 1, %v1476
    %v1478 = vrot.slane %v1466, %v1477
    %v1479 = vlaneseq
    %v1480 = vshrl.u32 %v1479, 7
    %v1481 = vsub.s32 2, %v1480
    %v1482 = vrot.slane %v1466, %v1481
    %v1518 = vunpack.c.l.b16 %v1400
    %v1519 = vunpack.c.h.b16 %v1400
    %v1520 = vunpack.c.l.b16 %v1401
    %v1521 = vunpack.c.l.b16 %v1402
    %v1522 = vunpack.c.h.b16 %v1402
    %v1523 = vunpack.c.l.b16 %v1403
    %v1524 = vunpack.c.l.b16 %v1404
    %v1525 = vunpack.c.h.b16 %v1404
    %v1526 = vunpack.c.l.b16 %v1405
    %v1527 = vunpack.c.l.b16 %v1406
    %v1528 = vunpack.c.h.b16 %v1406
    %v1529 = vunpack.c.l.b16 %v1407
    %v1530 = vunpack.c.l.b16 %v1408
    %v1531 = vunpack.c.h.b16 %v1408
    %v1532 = vunpack.c.l.b16 %v1409
    %v1533 = vunpack.c.l.b16 %v1410
    %v1534 = vunpack.c.h.b16 %v1410
    %v1535 = vunpack.c.l.b16 %v1411
    %v1536 = vunpack.c.l.b16 %v1412
    %v1537 = vunpack.c.h.b16 %v1412
    %v1538 = vunpack.c.l.b16 %v1413
    %v1539 = vunpack.c.l.b16 %v1414
    %v1540 = vunpack.c.h.b16 %v1414
    %v1541 = vunpack.c.l.b16 %v1415
    %v1542 = vunpack.c.l.b16 %v1416
    %v1543 = vunpack.c.h.b16 %v1416
    %v1544 = vunpack.c.l.b16 %v1417
    %v1545 = vunpack.c.l.b16 %v1418
    %v1546 = vunpack.c.h.b16 %v1418
    %v1547 = vunpack.c.l.b16 %v1419
    %v1548 = vunpack.c.l.b16 %v1420
    %v1549 = vunpack.c.h.b16 %v1420
    %v1550 = vunpack.c.l.b16 %v1421
    %v1551 = vunpack.c.l.b16 %v1422
    %v1552 = vunpack.c.h.b16 %v1422
    %v1553 = vunpack.c.l.b16 %v1423
    %v1554 = vunpack.c.l.b16 %v1424
    %v1555 = vunpack.c.h.b16 %v1424
    %v1556 = vunpack.c.l.b16 %v1425
    %v1557 = vunpack.c.l.b16 %v1426
    %v1558 = vunpack.c.h.b16 %v1426
    %v1559 = vunpack.c.l.b16 %v1427
    %v1560 = vunpack.c.l.b16 %v1428
    %v1561 = vunpack.c.h.b16 %v1428
    %v1562 = vunpack.c.l.b16 %v1429
    %v1563 = vunpack.c.l.b16 %v1430
    %v1564 = vunpack.c.h.b16 %v1430
    %v1565 = vunpack.c.l.b16 %v1431
    %v1566 = vpack.c.b16 %v1521, %v1518
    %v1567 = vpack.c.b16 %v1522, %v1519
    %v1568 = vpack.c.b16 %v1523, %v1520
    %v1569 = vpack.c.b16 %v1527, %v1524
    %v1570 = vpack.c.b16 %v1528, %v1525
    %v1571 = vpack.c.b16 %v1529, %v1526
    %v1572 = vpack.c.b16 %v1533, %v1530
    %v1573 = vpack.c.b16 %v1534, %v1531
    %v1574 = vpack.c.b16 %v1535, %v1532
    %v1575 = vpack.c.b16 %v1539, %v1536
    %v1576 = vpack.c.b16 %v1540, %v1537
    %v1577 = vpack.c.b16 %v1541, %v1538
    %v1578 = vpack.c.b16 %v1545, %v1542
    %v1579 = vpack.c.b16 %v1546, %v1543
    %v1580 = vpack.c.b16 %v1547, %v1544
    %v1581 = vpack.c.b16 %v1551, %v1548
    %v1582 = vpack.c.b16 %v1552, %v1549
    %v1583 = vpack.c.b16 %v1553, %v1550
    %v1584 = vpack.c.b16 %v1557, %v1554
    %v1585 = vpack.c.b16 %v1558, %v1555
    %v1586 = vpack.c.b16 %v1559, %v1556
    %v1587 = vpack.c.b16 %v1563, %v1560
    %v1588 = vpack.c.b16 %v1564, %v1561
    %v1589 = vpack.c.b16 %v1565, %v1562
    %1614 = vmatprep.subr.bf16.mxu0 %v1588
    %1615 = vmatpush1.bf16.msra.mxu0 %v1587
    %1616 = vmatprep.subr.bf16.mxu0 %v1585
    %1617 = vmatpush1.bf16.msra.mxu0 %v1584
    %1618 = vmatprep.subr.bf16.mxu0 %v1582
    %1619 = vmatpush1.bf16.msra.mxu0 %v1581
    %1620 = vmatprep.subr.bf16.mxu0 %v1579
    %1621 = vmatpush1.bf16.msra.mxu0 %v1578
    %1622 = vmatprep.subr.bf16.mxu0 %v1576
    %1623 = vmatpush1.bf16.msra.mxu0 %v1575
    %1624 = vmatprep.subr.bf16.mxu0 %v1573
    %1625 = vmatpush1.bf16.msra.mxu0 %v1572
    %1626 = vmatprep.subr.bf16.mxu0 %v1570
    %1627 = vmatpush1.bf16.msra.mxu0 %v1569
    %1628 = vmatprep.subr.bf16.mxu0 %v1567
    %1629 = vmatpush1.bf16.msra.mxu0 %v1566
    %1630 = vmatprep.subr.bf16.mxu0 0
    %1631 = vmatpush2.bf16.msra.mxu0 0
    %1632 = vmatprep.subr.bf16.mxu0 0
    %1633 = vmatpush2.bf16.msra.mxu0 0
    %1634 = vmatprep.subr.bf16.mxu0 0
    %1635 = vmatpush2.bf16.msra.mxu0 0
    %1636 = vmatprep.subr.bf16.mxu0 0
    %1637 = vmatpush2.bf16.msra.mxu0 0
    %1638 = vmatprep.subr.bf16.mxu0 0
    %1639 = vmatpush2.bf16.msra.mxu0 0
    %1640 = vmatprep.subr.bf16.mxu0 0
    %1641 = vmatpush2.bf16.msra.mxu0 0
    %1642 = vmatprep.subr.bf16.mxu0 0
    %1643 = vmatpush2.bf16.msra.mxu0 0
    %1644 = vmatprep.subr.bf16.mxu0 0
    %1645 = vmatpush2.bf16.msra.mxu0 0
    %1646 = vmatprep.mubr.bf16.mxu0 0
    %1647 = vmatmul.mubr.bf16.gmra.mxu0 %v1469
    %v1648 = vpop.f32.mrf.mxu0
    %v1649 = vadd.f32 %v1474, %v1648
    %v1650 = vpop.f32.mrf.mxu0
    %v1651 = vadd.f32 %v1478, %v1650
    %v1652 = vpop.f32.mrf.mxu0
    %v1653 = vpop.f32.mrf.mxu0
    %1654 = vdwg.mxu0
    %1655 = vmatprep.subr.bf16.mxu0 0
    %1656 = vmatpush1.bf16.msra.mxu0 %v1589
    %1657 = vmatprep.subr.bf16.mxu0 0
    %1658 = vmatpush1.bf16.msra.mxu0 %v1586
    %1659 = vmatprep.subr.bf16.mxu0 0
    %1660 = vmatpush1.bf16.msra.mxu0 %v1583
    %1661 = vmatprep.subr.bf16.mxu0 0
    %1662 = vmatpush1.bf16.msra.mxu0 %v1580
    %1663 = vmatprep.subr.bf16.mxu0 0
    %1664 = vmatpush1.bf16.msra.mxu0 %v1577
    %1665 = vmatprep.subr.bf16.mxu0 0
    %1666 = vmatpush1.bf16.msra.mxu0 %v1574
    %1667 = vmatprep.subr.bf16.mxu0 0
    %1668 = vmatpush1.bf16.msra.mxu0 %v1571
    %1669 = vmatprep.subr.bf16.mxu0 0
    %1670 = vmatpush1.bf16.msra.mxu0 %v1568
    %1671 = vmatprep.subr.bf16.mxu0 0
    %1672 = vmatpush2.bf16.msra.mxu0 0
    %1673 = vmatprep.subr.bf16.mxu0 0
    %1674 = vmatpush2.bf16.msra.mxu0 0
    %1675 = vmatprep.subr.bf16.mxu0 0
    %1676 = vmatpush2.bf16.msra.mxu0 0
    %1677 = vmatprep.subr.bf16.mxu0 0
    %1678 = vmatpush2.bf16.msra.mxu0 0
    %1679 = vmatprep.subr.bf16.mxu0 0
    %1680 = vmatpush2.bf16.msra.mxu0 0
    %1681 = vmatprep.subr.bf16.mxu0 0
    %1682 = vmatpush2.bf16.msra.mxu0 0
    %1683 = vmatprep.subr.bf16.mxu0 0
    %1684 = vmatpush2.bf16.msra.mxu0 0
    %1685 = vmatprep.subr.bf16.mxu0 0
    %1686 = vmatpush2.bf16.msra.mxu0 0
    %1687 = vmatprep.mubr.bf16.mxu0 0
    %1688 = vmatmul.mubr.bf16.gmra.mxu0 %v1469
    %v1689 = vpop.f32.mrf.mxu0
    %v1690 = vadd.f32 %v1482, %v1689
    %v1691 = vpop.f32.mrf.mxu0
    %v1692 = vpop.f32.mrf.mxu0
    %v1693 = vpop.f32.mrf.mxu0
    %1694 = vdwg.mxu0
    %1695 = vst [vmem:[#allocation3] sm:$0xff] %v1649
    %1696 = vst [vmem:[#allocation3 + $0x8] sm:$0xff] %v1651
    %1697 = vst [vmem:[#allocation3 + $0x10] sm:$0xff] %v1690
    %v1698 = vld [vmem:[%s5 + $0x1] sm:$0x1]
    %v1699 = vpack.c.bf16 %v1698, %v1698
    %v1732 = vunpack.c.l.b16 %v1433
    %v1733 = vunpack.c.h.b16 %v1433
    %v1734 = vunpack.c.l.b16 %v1434
    %v1735 = vunpack.c.l.b16 %v1435
    %v1736 = vunpack.c.h.b16 %v1435
    %v1737 = vunpack.c.l.b16 %v1436
    %v1738 = vunpack.c.l.b16 %v1437
    %v1739 = vunpack.c.h.b16 %v1437
    %v1740 = vunpack.c.l.b16 %v1438
    %v1741 = vunpack.c.l.b16 %v1439
    %v1742 = vunpack.c.h.b16 %v1439
    %v1743 = vunpack.c.l.b16 %v1440
    %v1744 = vunpack.c.l.b16 %v1441
    %v1745 = vunpack.c.h.b16 %v1441
    %v1746 = vunpack.c.l.b16 %v1442
    %v1747 = vunpack.c.l.b16 %v1443
    %v1748 = vunpack.c.h.b16 %v1443
    %v1749 = vunpack.c.l.b16 %v1444
    %v1750 = vunpack.c.l.b16 %v1445
    %v1751 = vunpack.c.h.b16 %v1445
    %v1752 = vunpack.c.l.b16 %v1446
    %v1753 = vunpack.c.l.b16 %v1447
    %v1754 = vunpack.c.h.b16 %v1447
    %v1755 = vunpack.c.l.b16 %v1448
    %v1756 = vunpack.c.l.b16 %v1449
    %v1757 = vunpack.c.h.b16 %v1449
    %v1758 = vunpack.c.l.b16 %v1450
    %v1759 = vunpack.c.l.b16 %v1451
    %v1760 = vunpack.c.h.b16 %v1451
    %v1761 = vunpack.c.l.b16 %v1452
    %v1762 = vunpack.c.l.b16 %v1453
    %v1763 = vunpack.c.h.b16 %v1453
    %v1764 = vunpack.c.l.b16 %v1454
    %v1765 = vunpack.c.l.b16 %v1455
    %v1766 = vunpack.c.h.b16 %v1455
    %v1767 = vunpack.c.l.b16 %v1456
    %v1768 = vunpack.c.l.b16 %v1457
    %v1769 = vunpack.c.h.b16 %v1457
    %v1770 = vunpack.c.l.b16 %v1458
    %v1771 = vunpack.c.l.b16 %v1459
    %v1772 = vunpack.c.h.b16 %v1459
    %v1773 = vunpack.c.l.b16 %v1460
    %v1774 = vunpack.c.l.b16 %v1461
    %v1775 = vunpack.c.h.b16 %v1461
    %v1776 = vunpack.c.l.b16 %v1462
    %v1777 = vunpack.c.l.b16 %v1463
    %v1778 = vunpack.c.h.b16 %v1463
    %v1779 = vunpack.c.l.b16 %v1464
    %v1780 = vpack.c.b16 %v1735, %v1732
    %v1781 = vpack.c.b16 %v1736, %v1733
    %v1782 = vpack.c.b16 %v1737, %v1734
    %v1783 = vpack.c.b16 %v1741, %v1738
    %v1784 = vpack.c.b16 %v1742, %v1739
    %v1785 = vpack.c.b16 %v1743, %v1740
    %v1786 = vpack.c.b16 %v1747, %v1744
    %v1787 = vpack.c.b16 %v1748, %v1745
    %v1788 = vpack.c.b16 %v1749, %v1746
    %v1789 = vpack.c.b16 %v1753, %v1750
    %v1790 = vpack.c.b16 %v1754, %v1751
    %v1791 = vpack.c.b16 %v1755, %v1752
    %v1792 = vpack.c.b16 %v1759, %v1756
    %v1793 = vpack.c.b16 %v1760, %v1757
    %v1794 = vpack.c.b16 %v1761, %v1758
    %v1795 = vpack.c.b16 %v1765, %v1762
    %v1796 = vpack.c.b16 %v1766, %v1763
    %v1797 = vpack.c.b16 %v1767, %v1764
    %v1798 = vpack.c.b16 %v1771, %v1768
    %v1799 = vpack.c.b16 %v1772, %v1769
    %v1800 = vpack.c.b16 %v1773, %v1770
    %v1801 = vpack.c.b16 %v1777, %v1774
    %v1802 = vpack.c.b16 %v1778, %v1775
    %v1803 = vpack.c.b16 %v1779, %v1776
    %1828 = vmatprep.subr.bf16.mxu0 %v1802
    %1829 = vmatpush1.bf16.msra.mxu0 %v1801
    %1830 = vmatprep.subr.bf16.mxu0 %v1799
    %1831 = vmatpush1.bf16.msra.mxu0 %v1798
    %1832 = vmatprep.subr.bf16.mxu0 %v1796
    %1833 = vmatpush1.bf16.msra.mxu0 %v1795
    %1834 = vmatprep.subr.bf16.mxu0 %v1793
    %1835 = vmatpush1.bf16.msra.mxu0 %v1792
    %1836 = vmatprep.subr.bf16.mxu0 %v1790
    %1837 = vmatpush1.bf16.msra.mxu0 %v1789
    %1838 = vmatprep.subr.bf16.mxu0 %v1787
    %1839 = vmatpush1.bf16.msra.mxu0 %v1786
    %1840 = vmatprep.subr.bf16.mxu0 %v1784
    %1841 = vmatpush1.bf16.msra.mxu0 %v1783
    %1842 = vmatprep.subr.bf16.mxu0 %v1781
    %1843 = vmatpush1.bf16.msra.mxu0 %v1780
    %1844 = vmatprep.subr.bf16.mxu0 0
    %1845 = vmatpush2.bf16.msra.mxu0 0
    %1846 = vmatprep.subr.bf16.mxu0 0
    %1847 = vmatpush2.bf16.msra.mxu0 0
    %1848 = vmatprep.subr.bf16.mxu0 0
    %1849 = vmatpush2.bf16.msra.mxu0 0
    %1850 = vmatprep.subr.bf16.mxu0 0
    %1851 = vmatpush2.bf16.msra.mxu0 0
    %1852 = vmatprep.subr.bf16.mxu0 0
    %1853 = vmatpush2.bf16.msra.mxu0 0
    %1854 = vmatprep.subr.bf16.mxu0 0
    %1855 = vmatpush2.bf16.msra.mxu0 0
    %1856 = vmatprep.subr.bf16.mxu0 0
    %1857 = vmatpush2.bf16.msra.mxu0 0
    %1858 = vmatprep.subr.bf16.mxu0 0
    %1859 = vmatpush2.bf16.msra.mxu0 0
    %1860 = vmatprep.mubr.bf16.mxu0 0
    %1861 = vmatmul.mubr.bf16.gmra.mxu0 %v1699
    %v1862 = vpop.f32.mrf.mxu0
    %v1863 = vadd.f32 0.0, %v1862
    %v1864 = vpop.f32.mrf.mxu0
    %v1865 = vadd.f32 0.0, %v1864
    %v1866 = vpop.f32.mrf.mxu0
    %v1867 = vpop.f32.mrf.mxu0
    %1868 = vdwg.mxu0
    %1869 = vmatprep.subr.bf16.mxu0 0
    %1870 = vmatpush1.bf16.msra.mxu0 %v1803
    %1871 = vmatprep.subr.bf16.mxu0 0
    %1872 = vmatpush1.bf16.msra.mxu0 %v1800
    %1873 = vmatprep.subr.bf16.mxu0 0
    %1874 = vmatpush1.bf16.msra.mxu0 %v1797
    %1875 = vmatprep.subr.bf16.mxu0 0
    %1876 = vmatpush1.bf16.msra.mxu0 %v1794
    %1877 = vmatprep.subr.bf16.mxu0 0
    %1878 = vmatpush1.bf16.msra.mxu0 %v1791
    %1879 = vmatprep.subr.bf16.mxu0 0
    %1880 = vmatpush1.bf16.msra.mxu0 %v1788
    %1881 = vmatprep.subr.bf16.mxu0 0
    %1882 = vmatpush1.bf16.msra.mxu0 %v1785
    %1883 = vmatprep.subr.bf16.mxu0 0
    %1884 = vmatpush1.bf16.msra.mxu0 %v1782
    %1885 = vmatprep.subr.bf16.mxu0 0
    %1886 = vmatpush2.bf16.msra.mxu0 0
    %1887 = vmatprep.subr.bf16.mxu0 0
    %1888 = vmatpush2.bf16.msra.mxu0 0
    %1889 = vmatprep.subr.bf16.mxu0 0
    %1890 = vmatpush2.bf16.msra.mxu0 0
    %1891 = vmatprep.subr.bf16.mxu0 0
    %1892 = vmatpush2.bf16.msra.mxu0 0
    %1893 = vmatprep.subr.bf16.mxu0 0
    %1894 = vmatpush2.bf16.msra.mxu0 0
    %1895 = vmatprep.subr.bf16.mxu0 0
    %1896 = vmatpush2.bf16.msra.mxu0 0
    %1897 = vmatprep.subr.bf16.mxu0 0
    %1898 = vmatpush2.bf16.msra.mxu0 0
    %1899 = vmatprep.subr.bf16.mxu0 0
    %1900 = vmatpush2.bf16.msra.mxu0 0
    %1901 = vmatprep.mubr.bf16.mxu0 0
    %1902 = vmatmul.mubr.bf16.gmra.mxu0 %v1699
    %v1903 = vpop.f32.mrf.mxu0
    %v1904 = vadd.f32 0.0, %v1903
    %v1905 = vpop.f32.mrf.mxu0
    %v1906 = vpop.f32.mrf.mxu0
    %v1907 = vpop.f32.mrf.mxu0
    %1908 = vdwg.mxu0
    %v1909 = vld [vmem:[#allocation3] ss:$8 sm:$0x7]
    %v1910 = vadd.f32 %v1909, %v1863
    %v1911 = vxor.u32 %v1910, 2147483648
    %v1912 = vmul.f32 %v1911, 1.442695
    %v1913 = vpow.pop %v1912
    %v1914 = vadd.f32 %v1913, 1.0
    %v1915 = vrcp.pop %v1914
    %v1916 = vmul.f32 1.0, %v1915
    %v1918 = vrot.slane %v1909, 1
    %v1920 = vadd.f32 %v1918, %v1865
    %v1921 = vxor.u32 %v1920, 2147483648
    %v1922 = vmul.f32 %v1921, 1.442695
    %v1923 = vpow.pop %v1922
    %v1924 = vadd.f32 %v1923, 1.0
    %v1925 = vrcp.pop %v1924
    %v1926 = vmul.f32 1.0, %v1925
    %v1927 = vadd.f32 %v1904, %v1467
    %v1928 = vmul.f32 %v1916, %v1927
    %v1929 = vrot.slane %v1909, 2
    %v1931 = vadd.f32 %v1929, %v1928
    %v1932 = vtanh.pop %v1931
    %v1933 = vsub.f32 1.0, %v1926
    %v1934 = vmul.f32 %v1933, %v1932
    %v1935 = vmul.f32 %v1926, %v1698
    %v1936 = vadd.f32 %v1934, %v1935
    %1937 = vst [vmem:[#allocation12] sm:$0x1] %v1936
    %v1938 = vpack.c.bf16 %v1936, %v1936
    %1939 = vmatprep.subr.bf16.mxu0 %v1802
    %1940 = vmatpush1.bf16.msra.mxu0 %v1801
    %1941 = vmatprep.subr.bf16.mxu0 %v1799
    %1942 = vmatpush1.bf16.msra.mxu0 %v1798
    %1943 = vmatprep.subr.bf16.mxu0 %v1796
    %1944 = vmatpush1.bf16.msra.mxu0 %v1795
    %1945 = vmatprep.subr.bf16.mxu0 %v1793
    %1946 = vmatpush1.bf16.msra.mxu0 %v1792
    %1947 = vmatprep.subr.bf16.mxu0 %v1790
    %1948 = vmatpush1.bf16.msra.mxu0 %v1789
    %1949 = vmatprep.subr.bf16.mxu0 %v1787
    %1950 = vmatpush1.bf16.msra.mxu0 %v1786
    %1951 = vmatprep.subr.bf16.mxu0 %v1784
    %1952 = vmatpush1.bf16.msra.mxu0 %v1783
    %1953 = vmatprep.subr.bf16.mxu0 %v1781
    %1954 = vmatpush1.bf16.msra.mxu0 %v1780
    %1955 = vmatprep.subr.bf16.mxu0 0
    %1956 = vmatpush2.bf16.msra.mxu0 0
    %1957 = vmatprep.subr.bf16.mxu0 0
    %1958 = vmatpush2.bf16.msra.mxu0 0
    %1959 = vmatprep.subr.bf16.mxu0 0
    %1960 = vmatpush2.bf16.msra.mxu0 0
    %1961 = vmatprep.subr.bf16.mxu0 0
    %1962 = vmatpush2.bf16.msra.mxu0 0
    %1963 = vmatprep.subr.bf16.mxu0 0
    %1964 = vmatpush2.bf16.msra.mxu0 0
    %1965 = vmatprep.subr.bf16.mxu0 0
    %1966 = vmatpush2.bf16.msra.mxu0 0
    %1967 = vmatprep.subr.bf16.mxu0 0
    %1968 = vmatpush2.bf16.msra.mxu0 0
    %1969 = vmatprep.subr.bf16.mxu0 0
    %1970 = vmatpush2.bf16.msra.mxu0 0
    %1971 = vmatprep.mubr.bf16.mxu0 0
    %1972 = vmatmul.mubr.bf16.gmra.mxu0 %v1938
    %v1973 = vpop.f32.mrf.mxu0
    %v1974 = vadd.f32 0.0, %v1973
    %v1975 = vpop.f32.mrf.mxu0
    %v1976 = vadd.f32 0.0, %v1975
    %v1977 = vpop.f32.mrf.mxu0
    %v1978 = vpop.f32.mrf.mxu0
    %1979 = vdwg.mxu0
    %1980 = vmatprep.subr.bf16.mxu0 0
    %1981 = vmatpush1.bf16.msra.mxu0 %v1803
    %1982 = vmatprep.subr.bf16.mxu0 0
    %1983 = vmatpush1.bf16.msra.mxu0 %v1800
    %1984 = vmatprep.subr.bf16.mxu0 0
    %1985 = vmatpush1.bf16.msra.mxu0 %v1797
    %1986 = vmatprep.subr.bf16.mxu0 0
    %1987 = vmatpush1.bf16.msra.mxu0 %v1794
    %1988 = vmatprep.subr.bf16.mxu0 0
    %1989 = vmatpush1.bf16.msra.mxu0 %v1791
    %1990 = vmatprep.subr.bf16.mxu0 0
    %1991 = vmatpush1.bf16.msra.mxu0 %v1788
    %1992 = vmatprep.subr.bf16.mxu0 0
    %1993 = vmatpush1.bf16.msra.mxu0 %v1785
    %1994 = vmatprep.subr.bf16.mxu0 0
    %1995 = vmatpush1.bf16.msra.mxu0 %v1782
    %1996 = vmatprep.subr.bf16.mxu0 0
    %1997 = vmatpush2.bf16.msra.mxu0 0
    %1998 = vmatprep.subr.bf16.mxu0 0
    %1999 = vmatpush2.bf16.msra.mxu0 0
    %2000 = vmatprep.subr.bf16.mxu0 0
    %2001 = vmatpush2.bf16.msra.mxu0 0
    %2002 = vmatprep.subr.bf16.mxu0 0
    %2003 = vmatpush2.bf16.msra.mxu0 0
    %2004 = vmatprep.subr.bf16.mxu0 0
    %2005 = vmatpush2.bf16.msra.mxu0 0
    %2006 = vmatprep.subr.bf16.mxu0 0
    %2007 = vmatpush2.bf16.msra.mxu0 0
    %2008 = vmatprep.subr.bf16.mxu0 0
    %2009 = vmatpush2.bf16.msra.mxu0 0
    %2010 = vmatprep.subr.bf16.mxu0 0
    %2011 = vmatpush2.bf16.msra.mxu0 0
    %2012 = vmatprep.mubr.bf16.mxu0 0
    %2013 = vmatmul.mubr.bf16.gmra.mxu0 %v1938
    %v2014 = vpop.f32.mrf.mxu0
    %v2015 = vadd.f32 0.0, %v2014
    %v2016 = vpop.f32.mrf.mxu0
    %v2017 = vpop.f32.mrf.mxu0
    %v2018 = vpop.f32.mrf.mxu0
    %2019 = vdwg.mxu0
    %v2020 = vld [vmem:[%s696] ss:$8 sm:$0x7]
    %v2021 = vadd.f32 %v2020, %v1974
    %v2022 = vxor.u32 %v2021, 2147483648
    %v2023 = vmul.f32 %v2022, 1.442695
    %v2024 = vpow.pop %v2023
    %v2025 = vadd.f32 %v2024, 1.0
    %v2026 = vrcp.pop %v2025
    %v2027 = vmul.f32 1.0, %v2026
    %v2029 = vrot.slane %v2020, 1
    %v2031 = vadd.f32 %v2029, %v1976
    %v2032 = vxor.u32 %v2031, 2147483648
    %v2033 = vmul.f32 %v2032, 1.442695
    %v2034 = vpow.pop %v2033
    %v2035 = vadd.f32 %v2034, 1.0
    %v2036 = vrcp.pop %v2035
    %v2037 = vmul.f32 1.0, %v2036
    %v2038 = vadd.f32 %v2015, %v1467
    %v2039 = vmul.f32 %v2027, %v2038
    %v2040 = vrot.slane %v2020, 2
    %v2042 = vadd.f32 %v2040, %v2039
    %v2043 = vtanh.pop %v2042
    %v2044 = vsub.f32 1.0, %v2037
    %v2045 = vmul.f32 %v2044, %v2043
    %v2046 = vmul.f32 %v2037, %v1936
    %v2047 = vadd.f32 %v2045, %v2046
    %2048 = vst [vmem:[#allocation12 + $0x1] sm:$0x1] %v2047
    %v2049 = vpack.c.bf16 %v2047, %v2047
    %2050 = vmatprep.subr.bf16.mxu0 %v1802
    %2051 = vmatpush1.bf16.msra.mxu0 %v1801
    %2052 = vmatprep.subr.bf16.mxu0 %v1799
    %2053 = vmatpush1.bf16.msra.mxu0 %v1798
    %2054 = vmatprep.subr.bf16.mxu0 %v1796
    %2055 = vmatpush1.bf16.msra.mxu0 %v1795
    %2056 = vmatprep.subr.bf16.mxu0 %v1793
    %2057 = vmatpush1.bf16.msra.mxu0 %v1792
    %2058 = vmatprep.subr.bf16.mxu0 %v1790
    %2059 = vmatpush1.bf16.msra.mxu0 %v1789
    %2060 = vmatprep.subr.bf16.mxu0 %v1787
    %2061 = vmatpush1.bf16.msra.mxu0 %v1786
    %2062 = vmatprep.subr.bf16.mxu0 %v1784
    %2063 = vmatpush1.bf16.msra.mxu0 %v1783
    %2064 = vmatprep.subr.bf16.mxu0 %v1781
    %2065 = vmatpush1.bf16.msra.mxu0 %v1780
    %2066 = vmatprep.subr.bf16.mxu0 0
    %2067 = vmatpush2.bf16.msra.mxu0 0
    %2068 = vmatprep.subr.bf16.mxu0 0
    %2069 = vmatpush2.bf16.msra.mxu0 0
    %2070 = vmatprep.subr.bf16.mxu0 0
    %2071 = vmatpush2.bf16.msra.mxu0 0
    %2072 = vmatprep.subr.bf16.mxu0 0
    %2073 = vmatpush2.bf16.msra.mxu0 0
    %2074 = vmatprep.subr.bf16.mxu0 0
    %2075 = vmatpush2.bf16.msra.mxu0 0
    %2076 = vmatprep.subr.bf16.mxu0 0
    %2077 = vmatpush2.bf16.msra.mxu0 0
    %2078 = vmatprep.subr.bf16.mxu0 0
    %2079 = vmatpush2.bf16.msra.mxu0 0
    %2080 = vmatprep.subr.bf16.mxu0 0
    %2081 = vmatpush2.bf16.msra.mxu0 0
    %2082 = vmatprep.mubr.bf16.mxu0 0
    %2083 = vmatmul.mubr.bf16.gmra.mxu0 %v2049
    %v2084 = vpop.f32.mrf.mxu0
    %v2085 = vadd.f32 0.0, %v2084
    %v2086 = vpop.f32.mrf.mxu0
    %v2087 = vadd.f32 0.0, %v2086
    %v2088 = vpop.f32.mrf.mxu0
    %v2089 = vpop.f32.mrf.mxu0
    %2090 = vdwg.mxu0
    %2091 = vmatprep.subr.bf16.mxu0 0
    %2092 = vmatpush1.bf16.msra.mxu0 %v1803
    %2093 = vmatprep.subr.bf16.mxu0 0
    %2094 = vmatpush1.bf16.msra.mxu0 %v1800
    %2095 = vmatprep.subr.bf16.mxu0 0
    %2096 = vmatpush1.bf16.msra.mxu0 %v1797
    %2097 = vmatprep.subr.bf16.mxu0 0
    %2098 = vmatpush1.bf16.msra.mxu0 %v1794
    %2099 = vmatprep.subr.bf16.mxu0 0
    %2100 = vmatpush1.bf16.msra.mxu0 %v1791
    %2101 = vmatprep.subr.bf16.mxu0 0
    %2102 = vmatpush1.bf16.msra.mxu0 %v1788
    %2103 = vmatprep.subr.bf16.mxu0 0
    %2104 = vmatpush1.bf16.msra.mxu0 %v1785
    %2105 = vmatprep.subr.bf16.mxu0 0
    %2106 = vmatpush1.bf16.msra.mxu0 %v1782
    %2107 = vmatprep.subr.bf16.mxu0 0
    %2108 = vmatpush2.bf16.msra.mxu0 0
    %2109 = vmatprep.subr.bf16.mxu0 0
    %2110 = vmatpush2.bf16.msra.mxu0 0
    %2111 = vmatprep.subr.bf16.mxu0 0
    %2112 = vmatpush2.bf16.msra.mxu0 0
    %2113 = vmatprep.subr.bf16.mxu0 0
    %2114 = vmatpush2.bf16.msra.mxu0 0
    %2115 = vmatprep.subr.bf16.mxu0 0
    %2116 = vmatpush2.bf16.msra.mxu0 0
    %2117 = vmatprep.subr.bf16.mxu0 0
    %2118 = vmatpush2.bf16.msra.mxu0 0
    %2119 = vmatprep.subr.bf16.mxu0 0
    %2120 = vmatpush2.bf16.msra.mxu0 0
    %2121 = vmatprep.subr.bf16.mxu0 0
    %2122 = vmatpush2.bf16.msra.mxu0 0
    %2123 = vmatprep.mubr.bf16.mxu0 0
    %2124 = vmatmul.mubr.bf16.gmra.mxu0 %v2049
    %v2125 = vpop.f32.mrf.mxu0
    %v2126 = vadd.f32 0.0, %v2125
    %v2127 = vpop.f32.mrf.mxu0
    %v2128 = vpop.f32.mrf.mxu0
    %v2129 = vpop.f32.mrf.mxu0
    %2130 = vdwg.mxu0
    %v2131 = vld [vmem:[%s808] ss:$8 sm:$0x7]
    %v2132 = vadd.f32 %v2131, %v2085
    %v2133 = vxor.u32 %v2132, 2147483648
    %v2134 = vmul.f32 %v2133, 1.442695
    %v2135 = vpow.pop %v2134
    %v2136 = vadd.f32 %v2135, 1.0
    %v2137 = vrcp.pop %v2136
    %v2138 = vmul.f32 1.0, %v2137
    %v2140 = vrot.slane %v2131, 1
    %v2142 = vadd.f32 %v2140, %v2087
    %v2143 = vxor.u32 %v2142, 2147483648
    %v2144 = vmul.f32 %v2143, 1.442695
    %v2145 = vpow.pop %v2144
    %v2146 = vadd.f32 %v2145, 1.0
    %v2147 = vrcp.pop %v2146
    %v2148 = vmul.f32 1.0, %v2147
    %v2149 = vadd.f32 %v2126, %v1467
    %v2150 = vmul.f32 %v2138, %v2149
    %v2151 = vrot.slane %v2131, 2
    %v2153 = vadd.f32 %v2151, %v2150
    %v2154 = vtanh.pop %v2153
    %v2155 = vsub.f32 1.0, %v2148
    %v2156 = vmul.f32 %v2155, %v2154
    %v2157 = vmul.f32 %v2148, %v2047
    %v2158 = vadd.f32 %v2156, %v2157
    %2159 = vst [vmem:[#allocation12 + $0x2] sm:$0x1] %v2158
    %v2160 = vpack.c.bf16 %v2158, %v2158
    %2161 = vmatprep.subr.bf16.mxu0 %v1802
    %2162 = vmatpush1.bf16.msra.mxu0 %v1801
    %2163 = vmatprep.subr.bf16.mxu0 %v1799
    %2164 = vmatpush1.bf16.msra.mxu0 %v1798
    %2165 = vmatprep.subr.bf16.mxu0 %v1796
    %2166 = vmatpush1.bf16.msra.mxu0 %v1795
    %2167 = vmatprep.subr.bf16.mxu0 %v1793
    %2168 = vmatpush1.bf16.msra.mxu0 %v1792
    %2169 = vmatprep.subr.bf16.mxu0 %v1790
    %2170 = vmatpush1.bf16.msra.mxu0 %v1789
    %2171 = vmatprep.subr.bf16.mxu0 %v1787
    %2172 = vmatpush1.bf16.msra.mxu0 %v1786
    %2173 = vmatprep.subr.bf16.mxu0 %v1784
    %2174 = vmatpush1.bf16.msra.mxu0 %v1783
    %2175 = vmatprep.subr.bf16.mxu0 %v1781
    %2176 = vmatpush1.bf16.msra.mxu0 %v1780
    %2177 = vmatprep.subr.bf16.mxu0 0
    %2178 = vmatpush2.bf16.msra.mxu0 0
    %2179 = vmatprep.subr.bf16.mxu0 0
    %2180 = vmatpush2.bf16.msra.mxu0 0
    %2181 = vmatprep.subr.bf16.mxu0 0
    %2182 = vmatpush2.bf16.msra.mxu0 0
    %2183 = vmatprep.subr.bf16.mxu0 0
    %2184 = vmatpush2.bf16.msra.mxu0 0
    %2185 = vmatprep.subr.bf16.mxu0 0
    %2186 = vmatpush2.bf16.msra.mxu0 0
    %2187 = vmatprep.subr.bf16.mxu0 0
    %2188 = vmatpush2.bf16.msra.mxu0 0
    %2189 = vmatprep.subr.bf16.mxu0 0
    %2190 = vmatpush2.bf16.msra.mxu0 0
    %2191 = vmatprep.subr.bf16.mxu0 0
    %2192 = vmatpush2.bf16.msra.mxu0 0
    %2193 = vmatprep.mubr.bf16.mxu0 0
    %2194 = vmatmul.mubr.bf16.gmra.mxu0 %v2160
    %v2195 = vpop.f32.mrf.mxu0
    %v2196 = vadd.f32 0.0, %v2195
    %v2197 = vpop.f32.mrf.mxu0
    %v2198 = vadd.f32 0.0, %v2197
    %v2199 = vpop.f32.mrf.mxu0
    %v2200 = vpop.f32.mrf.mxu0
    %2201 = vdwg.mxu0
    %2202 = vmatprep.subr.bf16.mxu0 0
    %2203 = vmatpush1.bf16.msra.mxu0 %v1803
    %2204 = vmatprep.subr.bf16.mxu0 0
    %2205 = vmatpush1.bf16.msra.mxu0 %v1800
    %2206 = vmatprep.subr.bf16.mxu0 0
    %2207 = vmatpush1.bf16.msra.mxu0 %v1797
    %2208 = vmatprep.subr.bf16.mxu0 0
    %2209 = vmatpush1.bf16.msra.mxu0 %v1794
    %2210 = vmatprep.subr.bf16.mxu0 0
    %2211 = vmatpush1.bf16.msra.mxu0 %v1791
    %2212 = vmatprep.subr.bf16.mxu0 0
    %2213 = vmatpush1.bf16.msra.mxu0 %v1788
    %2214 = vmatprep.subr.bf16.mxu0 0
    %2215 = vmatpush1.bf16.msra.mxu0 %v1785
    %2216 = vmatprep.subr.bf16.mxu0 0
    %2217 = vmatpush1.bf16.msra.mxu0 %v1782
    %2218 = vmatprep.subr.bf16.mxu0 0
    %2219 = vmatpush2.bf16.msra.mxu0 0
    %2220 = vmatprep.subr.bf16.mxu0 0
    %2221 = vmatpush2.bf16.msra.mxu0 0
    %2222 = vmatprep.subr.bf16.mxu0 0
    %2223 = vmatpush2.bf16.msra.mxu0 0
    %2224 = vmatprep.subr.bf16.mxu0 0
    %2225 = vmatpush2.bf16.msra.mxu0 0
    %2226 = vmatprep.subr.bf16.mxu0 0
    %2227 = vmatpush2.bf16.msra.mxu0 0
    %2228 = vmatprep.subr.bf16.mxu0 0
    %2229 = vmatpush2.bf16.msra.mxu0 0
    %2230 = vmatprep.subr.bf16.mxu0 0
    %2231 = vmatpush2.bf16.msra.mxu0 0
    %2232 = vmatprep.subr.bf16.mxu0 0
    %2233 = vmatpush2.bf16.msra.mxu0 0
    %2234 = vmatprep.mubr.bf16.mxu0 0
    %2235 = vmatmul.mubr.bf16.gmra.mxu0 %v2160
    %v2236 = vpop.f32.mrf.mxu0
    %v2237 = vadd.f32 0.0, %v2236
    %v2238 = vpop.f32.mrf.mxu0
    %v2239 = vpop.f32.mrf.mxu0
    %v2240 = vpop.f32.mrf.mxu0
    %2241 = vdwg.mxu0
    %v2242 = vld [vmem:[%s920] ss:$8 sm:$0x7]
    %v2243 = vadd.f32 %v2242, %v2196
    %v2244 = vxor.u32 %v2243, 2147483648
    %v2245 = vmul.f32 %v2244, 1.442695
    %v2246 = vpow.pop %v2245
    %v2247 = vadd.f32 %v2246, 1.0
    %v2248 = vrcp.pop %v2247
    %v2249 = vmul.f32 1.0, %v2248
    %v2251 = vrot.slane %v2242, 1
    %v2253 = vadd.f32 %v2251, %v2198
    %v2254 = vxor.u32 %v2253, 2147483648
    %v2255 = vmul.f32 %v2254, 1.442695
    %v2256 = vpow.pop %v2255
    %v2257 = vadd.f32 %v2256, 1.0
    %v2258 = vrcp.pop %v2257
    %v2259 = vmul.f32 1.0, %v2258
    %v2260 = vadd.f32 %v2237, %v1467
    %v2261 = vmul.f32 %v2249, %v2260
    %v2262 = vrot.slane %v2242, 2
    %v2264 = vadd.f32 %v2262, %v2261
    %v2265 = vtanh.pop %v2264
    %v2266 = vsub.f32 1.0, %v2259
    %v2267 = vmul.f32 %v2266, %v2265
    %v2268 = vmul.f32 %v2259, %v2158
    %v2269 = vadd.f32 %v2267, %v2268
    %2270 = vst [vmem:[#allocation12 + $0x3] sm:$0x1] %v2269
    %v2271 = vpack.c.bf16 %v2269, %v2269
    %2272 = vmatprep.subr.bf16.mxu0 %v1802
    %2273 = vmatpush1.bf16.msra.mxu0 %v1801
    %2274 = vmatprep.subr.bf16.mxu0 %v1799
    %2275 = vmatpush1.bf16.msra.mxu0 %v1798
    %2276 = vmatprep.subr.bf16.mxu0 %v1796
    %2277 = vmatpush1.bf16.msra.mxu0 %v1795
    %2278 = vmatprep.subr.bf16.mxu0 %v1793
    %2279 = vmatpush1.bf16.msra.mxu0 %v1792
    %2280 = vmatprep.subr.bf16.mxu0 %v1790
    %2281 = vmatpush1.bf16.msra.mxu0 %v1789
    %2282 = vmatprep.subr.bf16.mxu0 %v1787
    %2283 = vmatpush1.bf16.msra.mxu0 %v1786
    %2284 = vmatprep.subr.bf16.mxu0 %v1784
    %2285 = vmatpush1.bf16.msra.mxu0 %v1783
    %2286 = vmatprep.subr.bf16.mxu0 %v1781
    %2287 = vmatpush1.bf16.msra.mxu0 %v1780
    %2288 = vmatprep.subr.bf16.mxu0 0
    %2289 = vmatpush2.bf16.msra.mxu0 0
    %2290 = vmatprep.subr.bf16.mxu0 0
    %2291 = vmatpush2.bf16.msra.mxu0 0
    %2292 = vmatprep.subr.bf16.mxu0 0
    %2293 = vmatpush2.bf16.msra.mxu0 0
    %2294 = vmatprep.subr.bf16.mxu0 0
    %2295 = vmatpush2.bf16.msra.mxu0 0
    %2296 = vmatprep.subr.bf16.mxu0 0
    %2297 = vmatpush2.bf16.msra.mxu0 0
    %2298 = vmatprep.subr.bf16.mxu0 0
    %2299 = vmatpush2.bf16.msra.mxu0 0
    %2300 = vmatprep.subr.bf16.mxu0 0
    %2301 = vmatpush2.bf16.msra.mxu0 0
    %2302 = vmatprep.subr.bf16.mxu0 0
    %2303 = vmatpush2.bf16.msra.mxu0 0
    %2304 = vmatprep.mubr.bf16.mxu0 0
    %2305 = vmatmul.mubr.bf16.gmra.mxu0 %v2271
    %v2306 = vpop.f32.mrf.mxu0
    %v2307 = vadd.f32 0.0, %v2306
    %v2308 = vpop.f32.mrf.mxu0
    %v2309 = vadd.f32 0.0, %v2308
    %v2310 = vpop.f32.mrf.mxu0
    %v2311 = vpop.f32.mrf.mxu0
    %2312 = vdwg.mxu0
    %2313 = vmatprep.subr.bf16.mxu0 0
    %2314 = vmatpush1.bf16.msra.mxu0 %v1803
    %2315 = vmatprep.subr.bf16.mxu0 0
    %2316 = vmatpush1.bf16.msra.mxu0 %v1800
    %2317 = vmatprep.subr.bf16.mxu0 0
    %2318 = vmatpush1.bf16.msra.mxu0 %v1797
    %2319 = vmatprep.subr.bf16.mxu0 0
    %2320 = vmatpush1.bf16.msra.mxu0 %v1794
    %2321 = vmatprep.subr.bf16.mxu0 0
    %2322 = vmatpush1.bf16.msra.mxu0 %v1791
    %2323 = vmatprep.subr.bf16.mxu0 0
    %2324 = vmatpush1.bf16.msra.mxu0 %v1788
    %2325 = vmatprep.subr.bf16.mxu0 0
    %2326 = vmatpush1.bf16.msra.mxu0 %v1785
    %2327 = vmatprep.subr.bf16.mxu0 0
    %2328 = vmatpush1.bf16.msra.mxu0 %v1782
    %2329 = vmatprep.subr.bf16.mxu0 0
    %2330 = vmatpush2.bf16.msra.mxu0 0
    %2331 = vmatprep.subr.bf16.mxu0 0
    %2332 = vmatpush2.bf16.msra.mxu0 0
    %2333 = vmatprep.subr.bf16.mxu0 0
    %2334 = vmatpush2.bf16.msra.mxu0 0
    %2335 = vmatprep.subr.bf16.mxu0 0
    %2336 = vmatpush2.bf16.msra.mxu0 0
    %2337 = vmatprep.subr.bf16.mxu0 0
    %2338 = vmatpush2.bf16.msra.mxu0 0
    %2339 = vmatprep.subr.bf16.mxu0 0
    %2340 = vmatpush2.bf16.msra.mxu0 0
    %2341 = vmatprep.subr.bf16.mxu0 0
    %2342 = vmatpush2.bf16.msra.mxu0 0
    %2343 = vmatprep.subr.bf16.mxu0 0
    %2344 = vmatpush2.bf16.msra.mxu0 0
    %2345 = vmatprep.mubr.bf16.mxu0 0
    %2346 = vmatmul.mubr.bf16.gmra.mxu0 %v2271
    %v2347 = vpop.f32.mrf.mxu0
    %v2348 = vadd.f32 0.0, %v2347
    %v2349 = vpop.f32.mrf.mxu0
    %v2350 = vpop.f32.mrf.mxu0
    %v2351 = vpop.f32.mrf.mxu0
    %2352 = vdwg.mxu0
    %v2353 = vld [vmem:[%s1032] ss:$8 sm:$0x7]
    %v2354 = vadd.f32 %v2353, %v2307
    %v2355 = vxor.u32 %v2354, 2147483648
    %v2356 = vmul.f32 %v2355, 1.442695
    %v2357 = vpow.pop %v2356
    %v2358 = vadd.f32 %v2357, 1.0
    %v2359 = vrcp.pop %v2358
    %v2360 = vmul.f32 1.0, %v2359
    %v2362 = vrot.slane %v2353, 1
    %v2364 = vadd.f32 %v2362, %v2309
    %v2365 = vxor.u32 %v2364, 2147483648
    %v2366 = vmul.f32 %v2365, 1.442695
    %v2367 = vpow.pop %v2366
    %v2368 = vadd.f32 %v2367, 1.0
    %v2369 = vrcp.pop %v2368
    %v2370 = vmul.f32 1.0, %v2369
    %v2371 = vadd.f32 %v2348, %v1467
    %v2372 = vmul.f32 %v2360, %v2371
    %v2373 = vrot.slane %v2353, 2
    %v2375 = vadd.f32 %v2373, %v2372
    %v2376 = vtanh.pop %v2375
    %v2377 = vsub.f32 1.0, %v2370
    %v2378 = vmul.f32 %v2377, %v2376
    %v2379 = vmul.f32 %v2370, %v2269
    %v2380 = vadd.f32 %v2378, %v2379
    %2381 = vst [vmem:[#allocation12 + $0x4] sm:$0x1] %v2380
    %v2382 = vpack.c.bf16 %v2380, %v2380
    %2383 = vmatprep.subr.bf16.mxu0 %v1802
    %2384 = vmatpush1.bf16.msra.mxu0 %v1801
    %2385 = vmatprep.subr.bf16.mxu0 %v1799
    %2386 = vmatpush1.bf16.msra.mxu0 %v1798
    %2387 = vmatprep.subr.bf16.mxu0 %v1796
    %2388 = vmatpush1.bf16.msra.mxu0 %v1795
    %2389 = vmatprep.subr.bf16.mxu0 %v1793
    %2390 = vmatpush1.bf16.msra.mxu0 %v1792
    %2391 = vmatprep.subr.bf16.mxu0 %v1790
    %2392 = vmatpush1.bf16.msra.mxu0 %v1789
    %2393 = vmatprep.subr.bf16.mxu0 %v1787
    %2394 = vmatpush1.bf16.msra.mxu0 %v1786
    %2395 = vmatprep.subr.bf16.mxu0 %v1784
    %2396 = vmatpush1.bf16.msra.mxu0 %v1783
    %2397 = vmatprep.subr.bf16.mxu0 %v1781
    %2398 = vmatpush1.bf16.msra.mxu0 %v1780
    %2399 = vmatprep.subr.bf16.mxu0 0
    %2400 = vmatpush2.bf16.msra.mxu0 0
    %2401 = vmatprep.subr.bf16.mxu0 0
    %2402 = vmatpush2.bf16.msra.mxu0 0
    %2403 = vmatprep.subr.bf16.mxu0 0
    %2404 = vmatpush2.bf16.msra.mxu0 0
    %2405 = vmatprep.subr.bf16.mxu0 0
    %2406 = vmatpush2.bf16.msra.mxu0 0
    %2407 = vmatprep.subr.bf16.mxu0 0
    %2408 = vmatpush2.bf16.msra.mxu0 0
    %2409 = vmatprep.subr.bf16.mxu0 0
    %2410 = vmatpush2.bf16.msra.mxu0 0
    %2411 = vmatprep.subr.bf16.mxu0 0
    %2412 = vmatpush2.bf16.msra.mxu0 0
    %2413 = vmatprep.subr.bf16.mxu0 0
    %2414 = vmatpush2.bf16.msra.mxu0 0
    %2415 = vmatprep.mubr.bf16.mxu0 0
    %2416 = vmatmul.mubr.bf16.gmra.mxu0 %v2382
    %v2417 = vpop.f32.mrf.mxu0
    %v2418 = vadd.f32 0.0, %v2417
    %v2419 = vpop.f32.mrf.mxu0
    %v2420 = vadd.f32 0.0, %v2419
    %v2421 = vpop.f32.mrf.mxu0
    %v2422 = vpop.f32.mrf.mxu0
    %2423 = vdwg.mxu0
    %2424 = vmatprep.subr.bf16.mxu0 0
    %2425 = vmatpush1.bf16.msra.mxu0 %v1803
    %2426 = vmatprep.subr.bf16.mxu0 0
    %2427 = vmatpush1.bf16.msra.mxu0 %v1800
    %2428 = vmatprep.subr.bf16.mxu0 0
    %2429 = vmatpush1.bf16.msra.mxu0 %v1797
    %2430 = vmatprep.subr.bf16.mxu0 0
    %2431 = vmatpush1.bf16.msra.mxu0 %v1794
    %2432 = vmatprep.subr.bf16.mxu0 0
    %2433 = vmatpush1.bf16.msra.mxu0 %v1791
    %2434 = vmatprep.subr.bf16.mxu0 0
    %2435 = vmatpush1.bf16.msra.mxu0 %v1788
    %2436 = vmatprep.subr.bf16.mxu0 0
    %2437 = vmatpush1.bf16.msra.mxu0 %v1785
    %2438 = vmatprep.subr.bf16.mxu0 0
    %2439 = vmatpush1.bf16.msra.mxu0 %v1782
    %2440 = vmatprep.subr.bf16.mxu0 0
    %2441 = vmatpush2.bf16.msra.mxu0 0
    %2442 = vmatprep.subr.bf16.mxu0 0
    %2443 = vmatpush2.bf16.msra.mxu0 0
    %2444 = vmatprep.subr.bf16.mxu0 0
    %2445 = vmatpush2.bf16.msra.mxu0 0
    %2446 = vmatprep.subr.bf16.mxu0 0
    %2447 = vmatpush2.bf16.msra.mxu0 0
    %2448 = vmatprep.subr.bf16.mxu0 0
    %2449 = vmatpush2.bf16.msra.mxu0 0
    %2450 = vmatprep.subr.bf16.mxu0 0
    %2451 = vmatpush2.bf16.msra.mxu0 0
    %2452 = vmatprep.subr.bf16.mxu0 0
    %2453 = vmatpush2.bf16.msra.mxu0 0
    %2454 = vmatprep.subr.bf16.mxu0 0
    %2455 = vmatpush2.bf16.msra.mxu0 0
    %2456 = vmatprep.mubr.bf16.mxu0 0
    %2457 = vmatmul.mubr.bf16.gmra.mxu0 %v2382
    %v2458 = vpop.f32.mrf.mxu0
    %v2459 = vadd.f32 0.0, %v2458
    %v2460 = vpop.f32.mrf.mxu0
    %v2461 = vpop.f32.mrf.mxu0
    %v2462 = vpop.f32.mrf.mxu0
    %2463 = vdwg.mxu0
    %v2464 = vld [vmem:[%s1144] ss:$8 sm:$0x7]
    %v2465 = vadd.f32 %v2464, %v2418
    %v2466 = vxor.u32 %v2465, 2147483648
    %v2467 = vmul.f32 %v2466, 1.442695
    %v2468 = vpow.pop %v2467
    %v2469 = vadd.f32 %v2468, 1.0
    %v2470 = vrcp.pop %v2469
    %v2471 = vmul.f32 1.0, %v2470
    %v2473 = vrot.slane %v2464, 1
    %v2475 = vadd.f32 %v2473, %v2420
    %v2476 = vxor.u32 %v2475, 2147483648
    %v2477 = vmul.f32 %v2476, 1.442695
    %v2478 = vpow.pop %v2477
    %v2479 = vadd.f32 %v2478, 1.0
    %v2480 = vrcp.pop %v2479
    %v2481 = vmul.f32 1.0, %v2480
    %v2482 = vadd.f32 %v2459, %v1467
    %v2483 = vmul.f32 %v2471, %v2482
    %v2484 = vrot.slane %v2464, 2
    %v2486 = vadd.f32 %v2484, %v2483
    %v2487 = vtanh.pop %v2486
    %v2488 = vsub.f32 1.0, %v2481
    %v2489 = vmul.f32 %v2488, %v2487
    %v2490 = vmul.f32 %v2481, %v2380
    %v2491 = vadd.f32 %v2489, %v2490
    %2492 = vst [vmem:[#allocation12 + $0x5] sm:$0x1] %v2491
    %v2493 = vpack.c.bf16 %v2491, %v2491
    %2494 = vmatprep.subr.bf16.mxu0 %v1802
    %2495 = vmatpush1.bf16.msra.mxu0 %v1801
    %2496 = vmatprep.subr.bf16.mxu0 %v1799
    %2497 = vmatpush1.bf16.msra.mxu0 %v1798
    %2498 = vmatprep.subr.bf16.mxu0 %v1796
    %2499 = vmatpush1.bf16.msra.mxu0 %v1795
    %2500 = vmatprep.subr.bf16.mxu0 %v1793
    %2501 = vmatpush1.bf16.msra.mxu0 %v1792
    %2502 = vmatprep.subr.bf16.mxu0 %v1790
    %2503 = vmatpush1.bf16.msra.mxu0 %v1789
    %2504 = vmatprep.subr.bf16.mxu0 %v1787
    %2505 = vmatpush1.bf16.msra.mxu0 %v1786
    %2506 = vmatprep.subr.bf16.mxu0 %v1784
    %2507 = vmatpush1.bf16.msra.mxu0 %v1783
    %2508 = vmatprep.subr.bf16.mxu0 %v1781
    %2509 = vmatpush1.bf16.msra.mxu0 %v1780
    %2510 = vmatprep.subr.bf16.mxu0 0
    %2511 = vmatpush2.bf16.msra.mxu0 0
    %2512 = vmatprep.subr.bf16.mxu0 0
    %2513 = vmatpush2.bf16.msra.mxu0 0
    %2514 = vmatprep.subr.bf16.mxu0 0
    %2515 = vmatpush2.bf16.msra.mxu0 0
    %2516 = vmatprep.subr.bf16.mxu0 0
    %2517 = vmatpush2.bf16.msra.mxu0 0
    %2518 = vmatprep.subr.bf16.mxu0 0
    %2519 = vmatpush2.bf16.msra.mxu0 0
    %2520 = vmatprep.subr.bf16.mxu0 0
    %2521 = vmatpush2.bf16.msra.mxu0 0
    %2522 = vmatprep.subr.bf16.mxu0 0
    %2523 = vmatpush2.bf16.msra.mxu0 0
    %2524 = vmatprep.subr.bf16.mxu0 0
    %2525 = vmatpush2.bf16.msra.mxu0 0
    %2526 = vmatprep.mubr.bf16.mxu0 0
    %2527 = vmatmul.mubr.bf16.gmra.mxu0 %v2493
    %v2528 = vpop.f32.mrf.mxu0
    %v2529 = vadd.f32 0.0, %v2528
    %v2530 = vpop.f32.mrf.mxu0
    %v2531 = vadd.f32 0.0, %v2530
    %v2532 = vpop.f32.mrf.mxu0
    %v2533 = vpop.f32.mrf.mxu0
    %2534 = vdwg.mxu0
    %2535 = vmatprep.subr.bf16.mxu0 0
    %2536 = vmatpush1.bf16.msra.mxu0 %v1803
    %2537 = vmatprep.subr.bf16.mxu0 0
    %2538 = vmatpush1.bf16.msra.mxu0 %v1800
    %2539 = vmatprep.subr.bf16.mxu0 0
    %2540 = vmatpush1.bf16.msra.mxu0 %v1797
    %2541 = vmatprep.subr.bf16.mxu0 0
    %2542 = vmatpush1.bf16.msra.mxu0 %v1794
    %2543 = vmatprep.subr.bf16.mxu0 0
    %2544 = vmatpush1.bf16.msra.mxu0 %v1791
    %2545 = vmatprep.subr.bf16.mxu0 0
    %2546 = vmatpush1.bf16.msra.mxu0 %v1788
    %2547 = vmatprep.subr.bf16.mxu0 0
    %2548 = vmatpush1.bf16.msra.mxu0 %v1785
    %2549 = vmatprep.subr.bf16.mxu0 0
    %2550 = vmatpush1.bf16.msra.mxu0 %v1782
    %2551 = vmatprep.subr.bf16.mxu0 0
    %2552 = vmatpush2.bf16.msra.mxu0 0
    %2553 = vmatprep.subr.bf16.mxu0 0
    %2554 = vmatpush2.bf16.msra.mxu0 0
    %2555 = vmatprep.subr.bf16.mxu0 0
    %2556 = vmatpush2.bf16.msra.mxu0 0
    %2557 = vmatprep.subr.bf16.mxu0 0
    %2558 = vmatpush2.bf16.msra.mxu0 0
    %2559 = vmatprep.subr.bf16.mxu0 0
    %2560 = vmatpush2.bf16.msra.mxu0 0
    %2561 = vmatprep.subr.bf16.mxu0 0
    %2562 = vmatpush2.bf16.msra.mxu0 0
    %2563 = vmatprep.subr.bf16.mxu0 0
    %2564 = vmatpush2.bf16.msra.mxu0 0
    %2565 = vmatprep.subr.bf16.mxu0 0
    %2566 = vmatpush2.bf16.msra.mxu0 0
    %2567 = vmatprep.mubr.bf16.mxu0 0
    %2568 = vmatmul.mubr.bf16.gmra.mxu0 %v2493
    %v2569 = vpop.f32.mrf.mxu0
    %v2570 = vadd.f32 0.0, %v2569
    %v2571 = vpop.f32.mrf.mxu0
    %v2572 = vpop.f32.mrf.mxu0
    %v2573 = vpop.f32.mrf.mxu0
    %2574 = vdwg.mxu0
    %v2575 = vld [vmem:[%s1256] ss:$8 sm:$0x7]
    %v2576 = vadd.f32 %v2575, %v2529
    %v2577 = vxor.u32 %v2576, 2147483648
    %v2578 = vmul.f32 %v2577, 1.442695
    %v2579 = vpow.pop %v2578
    %v2580 = vadd.f32 %v2579, 1.0
    %v2581 = vrcp.pop %v2580
    %v2582 = vmul.f32 1.0, %v2581
    %v2584 = vrot.slane %v2575, 1
    %v2586 = vadd.f32 %v2584, %v2531
    %v2587 = vxor.u32 %v2586, 2147483648
    %v2588 = vmul.f32 %v2587, 1.442695
    %v2589 = vpow.pop %v2588
    %v2590 = vadd.f32 %v2589, 1.0
    %v2591 = vrcp.pop %v2590
    %v2592 = vmul.f32 1.0, %v2591
    %v2593 = vadd.f32 %v2570, %v1467
    %v2594 = vmul.f32 %v2582, %v2593
    %v2595 = vrot.slane %v2575, 2
    %v2597 = vadd.f32 %v2595, %v2594
    %v2598 = vtanh.pop %v2597
    %v2599 = vsub.f32 1.0, %v2592
    %v2600 = vmul.f32 %v2599, %v2598
    %v2601 = vmul.f32 %v2592, %v2491
    %v2602 = vadd.f32 %v2600, %v2601
    %2603 = vst [vmem:[#allocation12 + $0x6] sm:$0x1] %v2602
    %v2604 = vpack.c.bf16 %v2602, %v2602
    %2605 = vmatprep.subr.bf16.mxu0 %v1802
    %2606 = vmatpush1.bf16.msra.mxu0 %v1801
    %2607 = vmatprep.subr.bf16.mxu0 %v1799
    %2608 = vmatpush1.bf16.msra.mxu0 %v1798
    %2609 = vmatprep.subr.bf16.mxu0 %v1796
    %2610 = vmatpush1.bf16.msra.mxu0 %v1795
    %2611 = vmatprep.subr.bf16.mxu0 %v1793
    %2612 = vmatpush1.bf16.msra.mxu0 %v1792
    %2613 = vmatprep.subr.bf16.mxu0 %v1790
    %2614 = vmatpush1.bf16.msra.mxu0 %v1789
    %2615 = vmatprep.subr.bf16.mxu0 %v1787
    %2616 = vmatpush1.bf16.msra.mxu0 %v1786
    %2617 = vmatprep.subr.bf16.mxu0 %v1784
    %2618 = vmatpush1.bf16.msra.mxu0 %v1783
    %2619 = vmatprep.subr.bf16.mxu0 %v1781
    %2620 = vmatpush1.bf16.msra.mxu0 %v1780
    %2621 = vmatprep.subr.bf16.mxu0 0
    %2622 = vmatpush2.bf16.msra.mxu0 0
    %2623 = vmatprep.subr.bf16.mxu0 0
    %2624 = vmatpush2.bf16.msra.mxu0 0
    %2625 = vmatprep.subr.bf16.mxu0 0
    %2626 = vmatpush2.bf16.msra.mxu0 0
    %2627 = vmatprep.subr.bf16.mxu0 0
    %2628 = vmatpush2.bf16.msra.mxu0 0
    %2629 = vmatprep.subr.bf16.mxu0 0
    %2630 = vmatpush2.bf16.msra.mxu0 0
    %2631 = vmatprep.subr.bf16.mxu0 0
    %2632 = vmatpush2.bf16.msra.mxu0 0
    %2633 = vmatprep.subr.bf16.mxu0 0
    %2634 = vmatpush2.bf16.msra.mxu0 0
    %2635 = vmatprep.subr.bf16.mxu0 0
    %2636 = vmatpush2.bf16.msra.mxu0 0
    %2637 = vmatprep.mubr.bf16.mxu0 0
    %2638 = vmatmul.mubr.bf16.gmra.mxu0 %v2604
    %v2639 = vpop.f32.mrf.mxu0
    %v2640 = vadd.f32 0.0, %v2639
    %v2641 = vpop.f32.mrf.mxu0
    %v2642 = vadd.f32 0.0, %v2641
    %v2643 = vpop.f32.mrf.mxu0
    %v2644 = vpop.f32.mrf.mxu0
    %2645 = vdwg.mxu0
    %2646 = vmatprep.subr.bf16.mxu0 0
    %2647 = vmatpush1.bf16.msra.mxu0 %v1803
    %2648 = vmatprep.subr.bf16.mxu0 0
    %2649 = vmatpush1.bf16.msra.mxu0 %v1800
    %2650 = vmatprep.subr.bf16.mxu0 0
    %2651 = vmatpush1.bf16.msra.mxu0 %v1797
    %2652 = vmatprep.subr.bf16.mxu0 0
    %2653 = vmatpush1.bf16.msra.mxu0 %v1794
    %2654 = vmatprep.subr.bf16.mxu0 0
    %2655 = vmatpush1.bf16.msra.mxu0 %v1791
    %2656 = vmatprep.subr.bf16.mxu0 0
    %2657 = vmatpush1.bf16.msra.mxu0 %v1788
    %2658 = vmatprep.subr.bf16.mxu0 0
    %2659 = vmatpush1.bf16.msra.mxu0 %v1785
    %2660 = vmatprep.subr.bf16.mxu0 0
    %2661 = vmatpush1.bf16.msra.mxu0 %v1782
    %2662 = vmatprep.subr.bf16.mxu0 0
    %2663 = vmatpush2.bf16.msra.mxu0 0
    %2664 = vmatprep.subr.bf16.mxu0 0
    %2665 = vmatpush2.bf16.msra.mxu0 0
    %2666 = vmatprep.subr.bf16.mxu0 0
    %2667 = vmatpush2.bf16.msra.mxu0 0
    %2668 = vmatprep.subr.bf16.mxu0 0
    %2669 = vmatpush2.bf16.msra.mxu0 0
    %2670 = vmatprep.subr.bf16.mxu0 0
    %2671 = vmatpush2.bf16.msra.mxu0 0
    %2672 = vmatprep.subr.bf16.mxu0 0
    %2673 = vmatpush2.bf16.msra.mxu0 0
    %2674 = vmatprep.subr.bf16.mxu0 0
    %2675 = vmatpush2.bf16.msra.mxu0 0
    %2676 = vmatprep.subr.bf16.mxu0 0
    %2677 = vmatpush2.bf16.msra.mxu0 0
    %2678 = vmatprep.mubr.bf16.mxu0 0
    %2679 = vmatmul.mubr.bf16.gmra.mxu0 %v2604
    %v2680 = vpop.f32.mrf.mxu0
    %v2681 = vadd.f32 0.0, %v2680
    %v2682 = vpop.f32.mrf.mxu0
    %v2683 = vpop.f32.mrf.mxu0
    %v2684 = vpop.f32.mrf.mxu0
    %2685 = vdwg.mxu0
    %v2686 = vld [vmem:[%s1368] ss:$8 sm:$0x7]
    %v2687 = vadd.f32 %v2686, %v2640
    %v2688 = vxor.u32 %v2687, 2147483648
    %v2689 = vmul.f32 %v2688, 1.442695
    %v2690 = vpow.pop %v2689
    %v2691 = vadd.f32 %v2690, 1.0
    %v2692 = vrcp.pop %v2691
    %v2693 = vmul.f32 1.0, %v2692
    %v2695 = vrot.slane %v2686, 1
    %v2697 = vadd.f32 %v2695, %v2642
    %v2698 = vxor.u32 %v2697, 2147483648
    %v2699 = vmul.f32 %v2698, 1.442695
    %v2700 = vpow.pop %v2699
    %v2701 = vadd.f32 %v2700, 1.0
    %v2702 = vrcp.pop %v2701
    %v2703 = vmul.f32 1.0, %v2702
    %v2704 = vadd.f32 %v2681, %v1467
    %v2705 = vmul.f32 %v2693, %v2704
    %v2706 = vrot.slane %v2686, 2
    %v2708 = vadd.f32 %v2706, %v2705
    %v2709 = vtanh.pop %v2708
    %v2710 = vsub.f32 1.0, %v2703
    %v2711 = vmul.f32 %v2710, %v2709
    %v2712 = vmul.f32 %v2703, %v2602
    %v2713 = vadd.f32 %v2711, %v2712
    %2714 = vst [vmem:[#allocation12 + $0x7] sm:$0x1] %v2713
    %2715 = vst [vmem:[#allocation13 + $0x1] sm:$0x1] %v2713
    // Predicated region
    $region42: #{tpu_custom_call.1} parent=1 // pred_check
      _
    $region43: #{tpu_custom_call.1} parent=1 // pred_check_branch
      %2717 = sbr.rel (0) target = $region45
    $region44: #{tpu_custom_call.1} parent=1 // pred_region
      %s2719 = ssub.s32 128, 128
      %2720 = vsyncadd [#allocation6], %s2719
      %s2722 = sshll.u32 [#allocation12], 4
      %s2723 = int_to_ptr.vmem [resolvable:$true] %s2722
      %2725 = dma.vmem_to_hbm [thread:$0]  %s2723, 128, %s6, [#allocation6]
    $region45: #{tpu_custom_call.1} parent=1 // pred_fallthru
      _
    // Predicated region
    $region46: #{tpu_custom_call.1} parent=1 // pred_check
      _
    $region47: #{tpu_custom_call.1} parent=1 // pred_check_branch
      %2727 = sbr.rel (0) target = $region49
    $region48: #{tpu_custom_call.1} parent=1 // pred_region
      %s2729 = ssub.s32 32, 32
      %2730 = vsyncadd [#allocation14], %s2729
      %s2732 = sshll.u32 [#allocation13], 4
      %s2733 = int_to_ptr.vmem [resolvable:$true] %s2732
      %2735 = dma.vmem_to_hbm [thread:$0]  %s2733, 32, %s7, [#allocation14]
    $region49: #{tpu_custom_call.1} parent=1 // pred_fallthru
      _
    // Predicated region
    $region50: #{tpu_custom_call.1} parent=1 // pred_check
      _
    $region51: #{tpu_custom_call.1} parent=1 // pred_check_branch
      %2737 = sbr.rel (0) target = $region53
    $region52: #{tpu_custom_call.1} parent=1 // pred_region
      %2738 = dma.done [#allocation6], 128
    $region53: #{tpu_custom_call.1} parent=1 // pred_fallthru
      _
    // Predicated region
    $region54: #{tpu_custom_call.1} parent=1 // pred_check
      _
    $region55: #{tpu_custom_call.1} parent=1 // pred_check_branch
      %2740 = sbr.rel (0) target = $region57
    $region56: #{tpu_custom_call.1} parent=1 // pred_region
      %2741 = dma.done [#allocation14], 32
    $region57: #{tpu_custom_call.1} parent=1 // pred_fallthru
      _
    %2742 = vsyncpa [#allocation5], 1
    %2743 = vsyncpa [#allocation8], 1
    %2744 = vsyncpa [#allocation11], 1
    %2745 = vsyncpa [#allocation6], 1
    %2746 = vsyncpa [#allocation14], 1

</llo_original>
